<compile_context>
chip_gen: v6e
topology: v6e:2x2x1
jax: 0.10.0
libtpu: 0.0.40
codegen_flags: <defaults>
</compile_context>

<pallas_src>
import math

import jax
import jax.numpy as jnp
from jax.experimental import pallas as pl
from jax.experimental.pallas import tpu as pltpu


def shatt_kernel(x_ref, wt_ref, b_ref, out_ref, att_ref):
    # x_ref:   (bblk*L, d_model)    row-major tokens for bblk batch elements
    # wt_ref:  (d_model, 3*d_k)     fc_qkv weight, pre-transposed in the wrapper
    # b_ref:   (1, 3*d_k)           fc_qkv bias (row-broadcast)
    # out_ref: (d_k, bblk*L)        lane-dense output slab
    # att_ref: (d_k, bblk*d_k)      lane-dense attention slab
    d_k = out_ref.shape[0]
    bblk = att_ref.shape[1] // d_k
    L = out_ref.shape[1] // bblk
    d_qkv = 3 * d_k

    # One fat MXU matmul for all bblk*L tokens.
    qkv = jnp.dot(x_ref[...], wt_ref[...],
                  preferred_element_type=jnp.float32) + b_ref[...]      # (bblk*L, 3*d_k)

    # Split the token rows per batch (tile-aligned: L == 8 == f32 sublane tile),
    # then put channels on the sublane axis so q/k/v are free sublane slices.
    qkv = qkv.reshape(bblk, L, d_qkv)
    qkv = jnp.swapaxes(qkv, 1, 2)                                        # (bblk, 3*d_k, L)
    q = qkv[:, :d_k, :]                                                  # (bblk, d_k, L)
    k = qkv[:, d_k:2 * d_k, :]
    v = qkv[:, 2 * d_k:, :]

    # Scaled dot product over the channel rows; scale = sqrt(q.shape[-1]) = sqrt(L),
    # matching the PyTorch module's layout quirk.
    logits = jnp.einsum('bil,bjl->bij', q, k,
                        preferred_element_type=jnp.float32)              # (bblk, d_k, d_k)
    logits = logits * (1.0 / math.sqrt(L))

    # Numerically-stable softmax; the divide becomes an EUP reciprocal.
    logits = logits - jnp.max(logits, axis=-1, keepdims=True)
    e = jnp.exp(logits)
    att = e * pl.reciprocal(jnp.sum(e, axis=-1, keepdims=True), approx=True)

    out = jnp.einsum('bij,bjl->bil', att, v,
                     preferred_element_type=jnp.float32)                 # (bblk, d_k, L)

    # Lane-dense stores: merge the major dims (trivial reshape), then one 2-D
    # XLU transpose each.
    out_slab = jnp.swapaxes(out, 1, 2).reshape(bblk * L, d_k).T          # (d_k, bblk*L)
    att_slab = att.reshape(bblk * d_k, d_k).T                            # (d_k, bblk*d_k)
    out_ref[...] = out_slab.astype(out_ref.dtype)
    att_ref[...] = att_slab.astype(att_ref.dtype)


def _pick_bblk(B, L, max_lanes=256):
    """Largest divisor of B whose slab width bblk*L is a multiple of 128 lanes
    (and <= max_lanes).  Falls back to the whole batch (full-extent blocks are
    always legal).  Because the search excludes B itself, the grid keeps >= 2
    steps whenever a qualifying divisor exists (feeds both v7x TensorCores)."""
    best = B
    for cand in range(1, B):
        if B % cand == 0 and (cand * L) % 128 == 0 and cand * L <= max_lanes:
            best = cand
    return best


def shatt_forward(x, w, b, *, bblk=None):
    """x: (B, d_model, L); w: (3*d_k, d_model)  (PyTorch Linear layout); b: (3*d_k,)."""
    B, d_model, L = x.shape
    d_qkv = w.shape[0]
    d_k = d_qkv // 3
    if bblk is None:
        bblk = _pick_bblk(B, L)
    assert B % bblk == 0
    grid = (B // bblk,)

    # Layout plumbing outside the kernel (cheap one-time XLA ops):
    # tokens as rows (b-major), weight pre-transposed, bias as a broadcast row.
    x_rows = jnp.transpose(x, (0, 2, 1)).reshape(B * L, d_model)   # row b*L+l = x[b, :, l]
    w_t = jnp.transpose(w)                                          # (d_model, 3*d_k)
    b_row = b.reshape(1, d_qkv)

    flops = 2 * B * L * d_model * d_qkv + 4 * B * d_k * d_k * L
    bytes_accessed = 4 * (x.size + w.size + b.size + B * d_k * L + B * d_k * d_k)
    cost = pl.CostEstimate(flops=flops,
                           transcendentals=B * d_k * d_k,
                           bytes_accessed=bytes_accessed)

    out_slab, att_slab = pl.pallas_call(
        shatt_kernel,
        out_shape=(
            jax.ShapeDtypeStruct((d_k, B * L), x.dtype),
            jax.ShapeDtypeStruct((d_k, B * d_k), x.dtype),
        ),
        grid_spec=pltpu.PrefetchScalarGridSpec(
            num_scalar_prefetch=0,
            grid=grid,
            in_specs=[
                pl.BlockSpec((bblk * L, d_model), lambda i: (i, 0)),
                pl.BlockSpec((d_model, d_qkv), lambda i: (0, 0)),    # resident weight
                pl.BlockSpec((1, d_qkv), lambda i: (0, 0)),          # resident bias
            ],
            out_specs=[
                pl.BlockSpec((d_k, bblk * L), lambda i: (0, i)),     # lane-dense slab
                pl.BlockSpec((d_k, bblk * d_k), lambda i: (0, i)),   # lane-dense slab
            ],
        ),
        compiler_params=pltpu.CompilerParams(
            dimension_semantics=("parallel",),
        ),
        cost_estimate=cost,
    )(x_rows, w_t, b_row)

    out = out_slab.reshape(d_k, B, L).transpose(1, 0, 2)             # (B, d_k, L)
    att = att_slab.reshape(d_k, B, d_k).transpose(1, 2, 0)           # (B, d_k, d_k)
    return out, att


def shatt_reference(x, w, b):
    """Plain-JAX replica of the PyTorch forward, for verification."""
    x1 = jnp.transpose(x, (0, 2, 1))                     # (B, L, d_model)
    x2 = jnp.einsum("bld,od->blo", x1, w) + b            # (B, L, 3*d_k)
    x3 = jnp.transpose(x2, (0, 2, 1))                    # (B, 3*d_k, L)
    d_k = w.shape[0] // 3
    q, k, v = x3[:, :d_k], x3[:, d_k:2 * d_k], x3[:, 2 * d_k:]
    scale = math.sqrt(q.shape[-1])                       # == sqrt(L), as in the reference
    logits = jnp.einsum("bil,bjl->bij", q, k) / scale
    att = jax.nn.softmax(logits, axis=-1)
    out = jnp.einsum("bij,bjl->bil", att, v)
    return out, att


if __name__ == "__main__":
    # Small shapes consistent with the module: d_model=32, d_k=16, L=8.
    # B=32 so one grid step packs 16 batch elements (128 lanes) and grid=(2,).
    B, d_model, d_k, L = 32, 32, 16, 8
    d_qkv = 3 * d_k

    key = jax.random.PRNGKey(0)
    kx, kw = jax.random.split(key)

    x = jax.random.normal(kx, (B, d_model, L), dtype=jnp.float32)

    # fc_qkv: Linear(d_model, 3*d_k, bias=True), xavier_uniform weight, zero bias.
    bound = math.sqrt(6.0 / (d_model + d_qkv))
    w = jax.random.uniform(kw, (d_qkv, d_model), dtype=jnp.float32,
                           minval=-bound, maxval=bound)
    b = jnp.zeros((d_qkv,), dtype=jnp.float32)

    out, att = shatt_forward(x, w, b)
    jax.block_until_ready((out, att))

    out_ref, att_ref = shatt_reference(x, w, b)
    assert out.shape == (B, d_k, L) and att.shape == (B, d_k, d_k)
    # approx-reciprocal softmax => slightly looser tolerance than an exact divide
    assert jnp.allclose(out, out_ref, rtol=2e-3, atol=2e-3)
    assert jnp.allclose(att, att_ref, rtol=2e-3, atol=2e-3)

    print("KERNEL_OK")
</pallas_src>

<mosaic_0001>
module attributes {stable_mosaic.version = 11 : i64} {
  func.func @shatt_kernel(%arg0: i32, %arg1: memref<128x32xf32, #tpu.memory_space<vmem>>, %arg2: memref<32x48xf32, #tpu.memory_space<vmem>>, %arg3: memref<1x48xf32, #tpu.memory_space<vmem>>, %arg4: memref<16x128xf32, #tpu.memory_space<vmem>>, %arg5: memref<16x256xf32, #tpu.memory_space<vmem>>) attributes {dimension_semantics = [#tpu.dimension_semantics<parallel>], iteration_bounds = array<i64: 2>, scalar_prefetch = 0 : i64, scratch_operands = 0 : i64, tpu.core_type = #tpu.core_type<tc>, window_params = [{transform_indices = @transform_0, window_bounds = array<i64: 128, 32>}, {pipeline_mode = #tpu.pipeline_mode<synchronous>, transform_indices = @transform_1, window_bounds = array<i64: 32, 48>}, {pipeline_mode = #tpu.pipeline_mode<synchronous>, transform_indices = @transform_2, window_bounds = array<i64: 1, 48>}, {transform_indices = @transform_3, window_bounds = array<i64: 16, 128>}, {transform_indices = @transform_4, window_bounds = array<i64: 16, 256>}]} {
    %c0 = arith.constant 0 : index
    %c0_0 = arith.constant 0 : index
    %0 = vector.load %arg1[%c0, %c0_0] : memref<128x32xf32, #tpu.memory_space<vmem>>, vector<128x32xf32>
    %c0_1 = arith.constant 0 : index
    %c0_2 = arith.constant 0 : index
    %1 = vector.load %arg2[%c0_1, %c0_2] : memref<32x48xf32, #tpu.memory_space<vmem>>, vector<32x48xf32>
    %cst = arith.constant dense<0.000000e+00> : vector<128x48xf32>
    %2 = tpu.matmul %0, %1, %cst {dimension_numbers = #tpu.dot_dimension_numbers<[1], [0], [0], [1], [0, 0, 1, 1], [], []>} : vector<128x32xf32>, vector<32x48xf32>, vector<128x48xf32> -> vector<128x48xf32>
    %c0_3 = arith.constant 0 : index
    %c0_4 = arith.constant 0 : index
    %3 = vector.load %arg3[%c0_3, %c0_4] : memref<1x48xf32, #tpu.memory_space<vmem>>, vector<1x48xf32>
    %4 = vector.broadcast %3 : vector<1x48xf32> to vector<128x48xf32>
    %5 = arith.addf %2, %4 : vector<128x48xf32>
    %6 = vector.shape_cast %5 : vector<128x48xf32> to vector<16x8x48xf32>
    %7 = tpu.transpose %6, [0, 2, 1] : vector<16x8x48xf32> -> vector<16x48x8xf32>
    %8 = vector.extract_strided_slice %7 {offsets = [0, 0, 0], sizes = [16, 16, 8], strides = [1, 1, 1]} : vector<16x48x8xf32> to vector<16x16x8xf32>
    %9 = vector.extract_strided_slice %7 {offsets = [0, 16, 0], sizes = [16, 16, 8], strides = [1, 1, 1]} : vector<16x48x8xf32> to vector<16x16x8xf32>
    %10 = vector.extract_strided_slice %7 {offsets = [0, 32, 0], sizes = [16, 16, 8], strides = [1, 1, 1]} : vector<16x48x8xf32> to vector<16x16x8xf32>
    "tpu.trace_start"() <{level = 10 : i32, message = "bil,bjl->bij"}> : () -> ()
    %cst_5 = arith.constant dense<0.000000e+00> : vector<16x16x16xf32>
    %11 = tpu.matmul %8, %9, %cst_5 {dimension_numbers = #tpu.dot_dimension_numbers<[2], [2], [1], [1], [0, 0, 0, 1, 1, 1], [0], [0]>} : vector<16x16x8xf32>, vector<16x16x8xf32>, vector<16x16x16xf32> -> vector<16x16x16xf32>
    "tpu.trace_stop"() : () -> ()
    %cst_6 = arith.constant 0.353553385 : f32
    %12 = vector.broadcast %cst_6 : f32 to vector<16x16x16xf32>
    %13 = arith.mulf %11, %12 : vector<16x16x16xf32>
    %cst_7 = arith.constant dense<0xFF800000> : vector<16x16xf32>
    %14 = vector.multi_reduction <maximumf>, %13, %cst_7 [2] : vector<16x16x16xf32> to vector<16x16xf32>
    %15 = vector.shape_cast %14 : vector<16x16xf32> to vector<16x16x1xf32>
    %16 = vector.broadcast %15 : vector<16x16x1xf32> to vector<16x16x16xf32>
    %17 = arith.subf %13, %16 : vector<16x16x16xf32>
    %18 = math.exp %17 : vector<16x16x16xf32>
    %cst_8 = arith.constant dense<0.000000e+00> : vector<16x16xf32>
    %19 = vector.multi_reduction <add>, %18, %cst_8 [2] : vector<16x16x16xf32> to vector<16x16xf32>
    %20 = vector.shape_cast %19 : vector<16x16xf32> to vector<16x16x1xf32>
    %21 = tpu.reciprocal %20 {approx = true} : vector<16x16x1xf32> -> vector<16x16x1xf32>
    %22 = vector.broadcast %21 : vector<16x16x1xf32> to vector<16x16x16xf32>
    %23 = arith.mulf %18, %22 : vector<16x16x16xf32>
    "tpu.trace_start"() <{level = 10 : i32, message = "bij,bjl->bil"}> : () -> ()
    %cst_9 = arith.constant dense<0.000000e+00> : vector<16x16x8xf32>
    %24 = tpu.matmul %23, %10, %cst_9 {dimension_numbers = #tpu.dot_dimension_numbers<[2], [1], [1], [2], [0, 0, 0, 1, 1, 2], [0], [0]>} : vector<16x16x16xf32>, vector<16x16x8xf32>, vector<16x16x8xf32> -> vector<16x16x8xf32>
    "tpu.trace_stop"() : () -> ()
    %25 = tpu.transpose %24, [0, 2, 1] : vector<16x16x8xf32> -> vector<16x8x16xf32>
    %26 = vector.shape_cast %25 : vector<16x8x16xf32> to vector<128x16xf32>
    %27 = tpu.transpose %26, [1, 0] : vector<128x16xf32> -> vector<16x128xf32>
    %28 = vector.shape_cast %23 : vector<16x16x16xf32> to vector<256x16xf32>
    %29 = tpu.transpose %28, [1, 0] : vector<256x16xf32> -> vector<16x256xf32>
    %c0_10 = arith.constant 0 : index
    %c0_11 = arith.constant 0 : index
    %30 = vector.load %arg4[%c0_10, %c0_11] : memref<16x128xf32, #tpu.memory_space<vmem>>, vector<16x128xf32>
    tpu.vector_store %arg4[%c0_10, %c0_11], %27 {strides = array<i32>} : memref<16x128xf32, #tpu.memory_space<vmem>>, vector<16x128xf32>,
    %c0_12 = arith.constant 0 : index
    %c0_13 = arith.constant 0 : index
    %31 = vector.load %arg5[%c0_12, %c0_13] : memref<16x256xf32, #tpu.memory_space<vmem>>, vector<16x256xf32>
    tpu.vector_store %arg5[%c0_12, %c0_13], %29 {strides = array<i32>} : memref<16x256xf32, #tpu.memory_space<vmem>>, vector<16x256xf32>,
    return
  }
  func.func @transform_0(%arg0: i32) -> (i32, i32) {
    %c0_i32 = arith.constant 0 : i32
    %c0_i32_0 = arith.constant 0 : i32
    return %arg0, %c0_i32 : i32, i32
  }
  func.func @transform_1(%arg0: i32) -> (i32, i32) {
    %c0_i32 = arith.constant 0 : i32
    %c0_i32_0 = arith.constant 0 : i32
    %c0_i32_1 = arith.constant 0 : i32
    return %c0_i32, %c0_i32_0 : i32, i32
  }
  func.func @transform_2(%arg0: i32) -> (i32, i32) {
    %c0_i32 = arith.constant 0 : i32
    %c0_i32_0 = arith.constant 0 : i32
    %c0_i32_1 = arith.constant 0 : i32
    return %c0_i32, %c0_i32_0 : i32, i32
  }
  func.func @transform_3(%arg0: i32) -> (i32, i32) {
    %c0_i32 = arith.constant 0 : i32
    %c0_i32_0 = arith.constant 0 : i32
    return %c0_i32, %arg0 : i32, i32
  }
  func.func @transform_4(%arg0: i32) -> (i32, i32) {
    %c0_i32 = arith.constant 0 : i32
    %c0_i32_0 = arith.constant 0 : i32
    return %c0_i32, %arg0 : i32, i32
  }
}

</mosaic_0001>

<llo_original>
// kernel: tpu_custom_call.1
$region0: #{tpu_custom_call.1}
  #allocation0 [shape = 'u32[]', space=smem, size = 0x4, offset = 0x4, fixed_abs, tag = 'smem constant byte address 0x4 - core index']
  #allocation1 [shape = 'u32[144,128]{1,0:T(1,128)}', space=vmem, size = 0x12000, scoped, tag = 'internal scratch']
  %s0 = inlined_call_operand.vmem [shape: f32[256,32], index: 0, kind: input, shape index: {}]
  %s1 = inlined_call_operand.vmem [shape: f32[32,48], index: 1, kind: input, shape index: {}]
  %s2 = inlined_call_operand.vmem [shape: f32[1,48], index: 2, kind: input, shape index: {}]
  %s3 = inlined_call_operand.hbm [shape: f32[16,256], index: 3, kind: output, shape index: {0}]
  %s4 = inlined_call_operand.hbm [shape: f32[16,512], index: 4, kind: output, shape index: {1}]
  %5 = xla_tuple %s3, %s4
  %s6 = sld [smem:[#allocation0]]
  $region53: #{tpu_custom_call.1} parent=0
    _
  %s8 = ssub.s32 1, %s6
  %s9 = scalar_select 0, %s8, %s6
  $region1: #{tpu_custom_call.1} parent=0
    #allocation2 [shape = 'u8[16384]{0}', space=vmem, size = 0x4000, scoped, tag = 'output window, operand 0']
    #allocation3 [shape = 's32[2]{0}', space=sflag, size = 0x8, scoped, tag = 'scoped memory for tpu_custom_call.1']
    #allocation4 [shape = 'u8[32768]{0}', space=vmem, size = 0x8000, scoped, tag = 'output window, operand 1']
    #allocation5 [shape = 's32[2]{0}', space=sflag, size = 0x8, scoped, tag = 'scoped memory for tpu_custom_call.1']
    %10 = vsyncpa [#allocation3], 0
    %s11 = scalar_lea.sflag [#allocation3], 1
    %12 = vsyncpa %s11, 0
    %13 = vsyncpa [#allocation5], 0
    %s14 = scalar_lea.sflag [#allocation5], 1
    %15 = vsyncpa %s14, 0
    loop: start=0, step=1, limit=4
    $region2: #{tpu_custom_call.1} parent=1 // loop_pre_header
      _
    $region3: #{tpu_custom_call.1} parent=1 // loop_header
      %s17 = sphi 0, %s21
      %p18 = scmp.ge.s32.totalorder %s17, 4
      %s27 = sphi 0, %s29
      %s30 = sphi 0, %s27
      %s31 = sphi 0, %s30
      %s47 = sphi 0, %s31
      %s51 = sphi 0, %s51
      %s53 = sphi 0, %s51
      %s54 = sphi 0, %s53
      %s68 = sphi 0, %s54
      %s72 = sphi 0, %s72
      %s74 = sphi 0, %s72
      %s75 = sphi 0, %s74
      %s89 = sphi 0, %s75
      %s95 = sphi 0, %s97
      %s98 = sphi 0, %s95
      %s99 = sphi 0, %s98
      %s115 = sphi 0, %s99
      %s121 = sphi 0, %s123
      %s124 = sphi 0, %s121
      %s125 = sphi 0, %s124
      %s141 = sphi 0, %s125
    $region4: #{tpu_custom_call.1} parent=1 // loop_header_branch
      %20 = sbr.rel (%p18) target = $region8
    $region5: #{tpu_custom_call.1} parent=1 // loop_body
      %s22 = ssub.s32 %s17, 1
      %s23 = ssub.s32 %s17, 2
      %s24 = sadd.s32 %s17, 1
      %s25 = ssub.s32 %s17, %s24
      %p26 = scmp.eq.s32.totalorder %s25, 0
      %s28 = sadd.s32 %s27, 1
      %s29 = scalar_select %p26, %s27, %s28
      %p32 = pneg %p26
      %p33 = scmp.eq.s32.totalorder %s17, 1
      %p34 = por %p32, %p33
      %p35 = scmp.ne.s32.totalorder %s27, %s30
      %p36 = scmp.eq.s32.totalorder %s17, 0
      %p37 = por %p35, %p36
      %p38 = scmp.ne.s32.totalorder %s27, %s30
      %p39 = scmp.eq.s32.totalorder %s22, 1
      %p40 = por %p38, %p39
      %p41 = scmp.ne.s32.totalorder %s30, %s31
      %p42 = scmp.eq.s32.totalorder %s22, 0
      %p43 = por %p41, %p42
      %p44 = scmp.ne.s32.totalorder %s30, %s31
      %p45 = scmp.eq.s32.totalorder %s23, 1
      %p46 = por %p44, %p45
      %p48 = scmp.ne.s32.totalorder %s31, %s47
      %p49 = scmp.eq.s32.totalorder %s23, 0
      %p50 = por %p48, %p49
      %s52 = sadd.s32 %s51, 1
      %p55 = scmp.eq.s32.totalorder %s17, 1
      %p56 = scmp.ne.s32.totalorder %s51, %s53
      %p57 = scmp.eq.s32.totalorder %s17, 0
      %p58 = por %p56, %p57
      %p59 = scmp.ne.s32.totalorder %s51, %s53
      %p60 = scmp.eq.s32.totalorder %s22, 1
      %p61 = por %p59, %p60
      %p62 = scmp.ne.s32.totalorder %s53, %s54
      %p63 = scmp.eq.s32.totalorder %s22, 0
      %p64 = por %p62, %p63
      %p65 = scmp.ne.s32.totalorder %s53, %s54
      %p66 = scmp.eq.s32.totalorder %s23, 1
      %p67 = por %p65, %p66
      %p69 = scmp.ne.s32.totalorder %s54, %s68
      %p70 = scmp.eq.s32.totalorder %s23, 0
      %p71 = por %p69, %p70
      %s73 = sadd.s32 %s72, 1
      %p76 = scmp.eq.s32.totalorder %s17, 1
      %p77 = scmp.ne.s32.totalorder %s72, %s74
      %p78 = scmp.eq.s32.totalorder %s17, 0
      %p79 = por %p77, %p78
      %p80 = scmp.ne.s32.totalorder %s72, %s74
      %p81 = scmp.eq.s32.totalorder %s22, 1
      %p82 = por %p80, %p81
      %p83 = scmp.ne.s32.totalorder %s74, %s75
      %p84 = scmp.eq.s32.totalorder %s22, 0
      %p85 = por %p83, %p84
      %p86 = scmp.ne.s32.totalorder %s74, %s75
      %p87 = scmp.eq.s32.totalorder %s23, 1
      %p88 = por %p86, %p87
      %p90 = scmp.ne.s32.totalorder %s75, %s89
      %p91 = scmp.eq.s32.totalorder %s23, 0
      %p92 = por %p90, %p91
      %s93 = ssub.s32 %s17, %s24
      %p94 = scmp.eq.s32.totalorder %s93, 0
      %s96 = sadd.s32 %s95, 1
      %s97 = scalar_select %p94, %s95, %s96
      %p100 = pneg %p94
      %p101 = scmp.eq.s32.totalorder %s17, 1
      %p102 = por %p100, %p101
      %p103 = scmp.ne.s32.totalorder %s95, %s98
      %p104 = scmp.eq.s32.totalorder %s17, 0
      %p105 = por %p103, %p104
      %p106 = scmp.ne.s32.totalorder %s95, %s98
      %p107 = scmp.eq.s32.totalorder %s22, 1
      %p108 = por %p106, %p107
      %p109 = scmp.ne.s32.totalorder %s98, %s99
      %p110 = scmp.eq.s32.totalorder %s22, 0
      %p111 = por %p109, %p110
      %p112 = scmp.ne.s32.totalorder %s98, %s99
      %p113 = scmp.eq.s32.totalorder %s23, 1
      %p114 = por %p112, %p113
      %p116 = scmp.ne.s32.totalorder %s99, %s115
      %p117 = scmp.eq.s32.totalorder %s23, 0
      %p118 = por %p116, %p117
      %s119 = ssub.s32 %s17, %s24
      %p120 = scmp.eq.s32.totalorder %s119, 0
      %s122 = sadd.s32 %s121, 1
      %s123 = scalar_select %p120, %s121, %s122
      %p126 = pneg %p120
      %p127 = scmp.eq.s32.totalorder %s17, 1
      %p128 = por %p126, %p127
      %p129 = scmp.ne.s32.totalorder %s121, %s124
      %p130 = scmp.eq.s32.totalorder %s17, 0
      %p131 = por %p129, %p130
      %p132 = scmp.ne.s32.totalorder %s121, %s124
      %p133 = scmp.eq.s32.totalorder %s22, 1
      %p134 = por %p132, %p133
      %p135 = scmp.ne.s32.totalorder %s124, %s125
      %p136 = scmp.eq.s32.totalorder %s22, 0
      %p137 = por %p135, %p136
      %p138 = scmp.ne.s32.totalorder %s124, %s125
      %p139 = scmp.eq.s32.totalorder %s23, 1
      %p140 = por %p138, %p139
      %p142 = scmp.ne.s32.totalorder %s125, %s141
      %p143 = scmp.eq.s32.totalorder %s23, 0
      %p144 = por %p142, %p143
      %p145 = scmp.le.s32.totalorder 1, %s17
      %p146 = scmp.lt.s32.totalorder %s17, 3
      %p147 = pnand %p145, %p146
      %p148 = pneg %p147
      // Predicated region
      $region9: #{tpu_custom_call.1} parent=5 // pred_check
        _
      $region10: #{tpu_custom_call.1} parent=5 // pred_check_branch
        %150 = sbr.rel (%p147) target = $region12
      $region11: #{tpu_custom_call.1} parent=5 // pred_region
        %s151 = ssub.s32 %s17, 1
        // Predicated region
        $region13: #{tpu_custom_call.1} parent=11 // pred_check
          %p152 = pneg %p64
        $region14: #{tpu_custom_call.1} parent=11 // pred_check_branch
          %154 = sbr.rel (%p152) target = $region16
        $region15: #{tpu_custom_call.1} parent=11 // pred_region
          _
        $region16: #{tpu_custom_call.1} parent=11 // pred_fallthru
          _
        // Predicated region
        $region17: #{tpu_custom_call.1} parent=11 // pred_check
          %p155 = pneg %p85
        $region18: #{tpu_custom_call.1} parent=11 // pred_check_branch
          %157 = sbr.rel (%p155) target = $region20
        $region19: #{tpu_custom_call.1} parent=11 // pred_region
          _
        $region20: #{tpu_custom_call.1} parent=11 // pred_fallthru
          _
      $region12: #{tpu_custom_call.1} parent=5 // pred_fallthru
        _
      %p158 = scmp.lt.s32.totalorder %s17, 2
      // Predicated region
      $region21: #{tpu_custom_call.1} parent=5 // pred_check
        %p159 = pneg %p158
      $region22: #{tpu_custom_call.1} parent=5 // pred_check_branch
        %161 = sbr.rel (%p159) target = $region24
      $region23: #{tpu_custom_call.1} parent=5 // pred_region
        // Predicated region
        $region25: #{tpu_custom_call.1} parent=23 // pred_check
          %p162 = pneg %p37
        $region26: #{tpu_custom_call.1} parent=23 // pred_check_branch
          %164 = sbr.rel (%p162) target = $region28
        $region27: #{tpu_custom_call.1} parent=23 // pred_region
          %s165 = smul.u32 16, %s17
          %p166 = scmp.lt.s32.totalorder %s165, 31
          %s167 = scalar_select %p166, %s165, 31
          %s168 = smul.addr %s167, 8
          %s169 = scalar_lea.vmem %s0, %s168
          %s170 = smul.u32 16, %s17
        $region28: #{tpu_custom_call.1} parent=23 // pred_fallthru
          _
      $region24: #{tpu_custom_call.1} parent=5 // pred_fallthru
        _
      %p171 = scmp.le.s32.totalorder 1, %s17
      %p172 = scmp.lt.s32.totalorder %s17, 3
      %p173 = pnand %p171, %p172
      %p174 = pneg %p173
      // Predicated region
      $region29: #{tpu_custom_call.1} parent=5 // pred_check
        _
      $region30: #{tpu_custom_call.1} parent=5 // pred_check_branch
        %176 = sbr.rel (%p173) target = $region32
      $region31: #{tpu_custom_call.1} parent=5 // pred_region
        %s177 = ssub.s32 %s17, 1
        %s178 = smul.u32 16, %s22
        %p179 = scmp.lt.s32.totalorder %s178, 31
        %s180 = scalar_select %p179, %s178, 31
        %s181 = smul.addr %s180, 8
        %s182 = scalar_lea.vmem %s0, %s181
        %p183 = pneg %p43
        %p184 = pneg %p40
        %p185 = pneg %p64
        %p186 = pneg %p61
        %p187 = pneg %p85
        %p188 = pneg %p82
        %p189 = pneg %p111
        %p190 = pneg %p108
        %s191 = sand.u32 %s98, 1
        %s192 = scalar_lea.sflag [#allocation3], %s191
        %s193 = sand.u32 %s98, 1
        %s194 = smul.addr %s193, 16
        %s195 = scalar_lea.vmem [#allocation2], %s194
        %p196 = pneg %p137
        %p197 = pneg %p134
        %s198 = sand.u32 %s124, 1
        %s199 = scalar_lea.sflag [#allocation5], %s198
        %s200 = sand.u32 %s124, 1
        %s201 = smul.addr %s200, 32
        %s202 = scalar_lea.vmem [#allocation4], %s201
        %s203 = smul.u32 16, %s22
        %p204 = scmp.lt.s32.totalorder %s203, 31
        %s205 = scalar_select %p204, %s203, 31
        %s206 = smul.addr %s205, 8
        %s207 = scalar_lea.vmem %s0, %s206
        %s208 = smul.u32 16, %s22
        %s209 = smul.u32 2, %s22
        %v210 = vld [vmem:[%s207] sm:$0xff]
        %v211 = vld [vmem:[%s207 + $0x8] sm:$0xff]
        %v212 = vld [vmem:[%s207 + $0x10] sm:$0xff]
        %v213 = vld [vmem:[%s207 + $0x18] sm:$0xff]
        %v214 = vld [vmem:[%s207 + $0x20] sm:$0xff]
        %v215 = vld [vmem:[%s207 + $0x28] sm:$0xff]
        %v216 = vld [vmem:[%s207 + $0x30] sm:$0xff]
        %v217 = vld [vmem:[%s207 + $0x38] sm:$0xff]
        %v218 = vld [vmem:[%s207 + $0x40] sm:$0xff]
        %v219 = vld [vmem:[%s207 + $0x48] sm:$0xff]
        %v220 = vld [vmem:[%s207 + $0x50] sm:$0xff]
        %v221 = vld [vmem:[%s207 + $0x58] sm:$0xff]
        %v222 = vld [vmem:[%s207 + $0x60] sm:$0xff]
        %v223 = vld [vmem:[%s207 + $0x68] sm:$0xff]
        %v224 = vld [vmem:[%s207 + $0x70] sm:$0xff]
        %v225 = vld [vmem:[%s207 + $0x78] sm:$0xff]
        %v226 = vld [vmem:[%s1] sm:$0xff]
        %v227 = vld [vmem:[%s1 + $0x8] sm:$0xff]
        %v228 = vld [vmem:[%s1 + $0x10] sm:$0xff]
        %v229 = vld [vmem:[%s1 + $0x18] sm:$0xff]
        %v230 = vld [vmem:[%s2] sm:$0x1]
        %v232 = vlaneseq
        %v233 = vshrl.u32 %v232, 7
        %v234 = vsub.s32 0, %v233
        %v235 = vrot.slane %v230, %v234
        %vm237 = vcmask 261120
        %v239 = vsel %vm237, %v210, 0
        %v242 = vsel %vm237, %v211, 0
        %v245 = vsel %vm237, %v212, 0
        %v248 = vsel %vm237, %v213, 0
        %v251 = vsel %vm237, %v214, 0
        %v254 = vsel %vm237, %v215, 0
        %v257 = vsel %vm237, %v216, 0
        %v260 = vsel %vm237, %v217, 0
        %v263 = vsel %vm237, %v218, 0
        %v266 = vsel %vm237, %v219, 0
        %v269 = vsel %vm237, %v220, 0
        %v272 = vsel %vm237, %v221, 0
        %v275 = vsel %vm237, %v222, 0
        %v278 = vsel %vm237, %v223, 0
        %v281 = vsel %vm237, %v224, 0
        %v284 = vsel %vm237, %v225, 0
        %286 = vmatprep.subr.mxu0 0.0
        %287 = vmatpush1.msra.mxu0 0.0
        %288 = vmatprep.subr.mxu0 0.0
        %289 = vmatpush1.msra.mxu0 0.0
        %290 = vmatprep.subr.mxu0 0.0
        %291 = vmatpush1.msra.mxu0 0.0
        %292 = vmatprep.subr.mxu0 0.0
        %293 = vmatpush1.msra.mxu0 0.0
        %294 = vmatprep.subr.mxu0 0.0
        %295 = vmatpush1.msra.mxu0 0.0
        %296 = vmatprep.subr.mxu0 0.0
        %297 = vmatpush1.msra.mxu0 0.0
        %298 = vmatprep.subr.mxu0 0.0
        %299 = vmatpush1.msra.mxu0 0.0
        %300 = vmatprep.subr.mxu0 0.0
        %301 = vmatpush1.msra.mxu0 0.0
        %302 = vmatprep.subr.mxu0 0.0
        %303 = vmatpush1.msra.mxu0 0.0
        %304 = vmatprep.subr.mxu0 0.0
        %305 = vmatpush1.msra.mxu0 0.0
        %306 = vmatprep.subr.mxu0 0.0
        %307 = vmatpush1.msra.mxu0 0.0
        %308 = vmatprep.subr.mxu0 0.0
        %309 = vmatpush1.msra.mxu0 0.0
        %310 = vmatprep.subr.mxu0 0.0
        %311 = vmatpush1.msra.mxu0 %v229
        %312 = vmatprep.subr.mxu0 0.0
        %313 = vmatpush1.msra.mxu0 %v228
        %314 = vmatprep.subr.mxu0 0.0
        %315 = vmatpush1.msra.mxu0 %v227
        %316 = vmatprep.subr.mxu0 0.0
        %317 = vmatpush1.msra.mxu0 %v226
        %318 = vmatprep.subr.mxu0 0.0
        %319 = vmatpush2.msra.mxu0 0.0
        %320 = vmatprep.subr.mxu0 0.0
        %321 = vmatpush2.msra.mxu0 0.0
        %322 = vmatprep.subr.mxu0 0.0
        %323 = vmatpush2.msra.mxu0 0.0
        %324 = vmatprep.subr.mxu0 0.0
        %325 = vmatpush2.msra.mxu0 0.0
        %326 = vmatprep.subr.mxu0 0.0
        %327 = vmatpush2.msra.mxu0 0.0
        %328 = vmatprep.subr.mxu0 0.0
        %329 = vmatpush2.msra.mxu0 0.0
        %330 = vmatprep.subr.mxu0 0.0
        %331 = vmatpush2.msra.mxu0 0.0
        %332 = vmatprep.subr.mxu0 0.0
        %333 = vmatpush2.msra.mxu0 0.0
        %334 = vmatprep.subr.mxu0 0.0
        %335 = vmatpush2.msra.mxu0 0.0
        %336 = vmatprep.subr.mxu0 0.0
        %337 = vmatpush2.msra.mxu0 0.0
        %338 = vmatprep.subr.mxu0 0.0
        %339 = vmatpush2.msra.mxu0 0.0
        %340 = vmatprep.subr.mxu0 0.0
        %341 = vmatpush2.msra.mxu0 0.0
        %342 = vmatprep.subr.mxu0 0.0
        %343 = vmatpush2.msra.mxu0 0.0
        %344 = vmatprep.subr.mxu0 0.0
        %345 = vmatpush2.msra.mxu0 0.0
        %346 = vmatprep.subr.mxu0 0.0
        %347 = vmatpush2.msra.mxu0 0.0
        %348 = vmatprep.subr.mxu0 0.0
        %349 = vmatpush2.msra.mxu0 0.0
        %350 = vmatprep.mubr.f32.mxu0 0.0
        %351 = vmatmul.mubr.f32.gmra.mxu0 %v239
        %v352 = vpop.f32.mrf.mxu0
        %v353 = vadd.f32 %v235, %v352
        %v354 = vpop.f32.mrf.mxu0
        %355 = vmatprep.mubr.f32.mxu0 0.0
        %356 = vmatmul.mubr.f32.gmra.mxu0 %v242
        %v357 = vpop.f32.mrf.mxu0
        %v358 = vadd.f32 %v235, %v357
        %v359 = vpop.f32.mrf.mxu0
        %360 = vmatprep.mubr.f32.mxu0 0.0
        %361 = vmatmul.mubr.f32.gmra.mxu0 %v245
        %v362 = vpop.f32.mrf.mxu0
        %v363 = vadd.f32 %v235, %v362
        %v364 = vpop.f32.mrf.mxu0
        %365 = vmatprep.mubr.f32.mxu0 0.0
        %366 = vmatmul.mubr.f32.gmra.mxu0 %v248
        %v367 = vpop.f32.mrf.mxu0
        %v368 = vadd.f32 %v235, %v367
        %v369 = vpop.f32.mrf.mxu0
        %370 = vmatprep.mubr.f32.mxu0 0.0
        %371 = vmatmul.mubr.f32.gmra.mxu0 %v251
        %v372 = vpop.f32.mrf.mxu0
        %v373 = vadd.f32 %v235, %v372
        %v374 = vpop.f32.mrf.mxu0
        %375 = vmatprep.mubr.f32.mxu0 0.0
        %376 = vmatmul.mubr.f32.gmra.mxu0 %v254
        %v377 = vpop.f32.mrf.mxu0
        %v378 = vadd.f32 %v235, %v377
        %v379 = vpop.f32.mrf.mxu0
        %380 = vmatprep.mubr.f32.mxu0 0.0
        %381 = vmatmul.mubr.f32.gmra.mxu0 %v257
        %v382 = vpop.f32.mrf.mxu0
        %v383 = vadd.f32 %v235, %v382
        %v384 = vpop.f32.mrf.mxu0
        %385 = vmatprep.mubr.f32.mxu0 0.0
        %386 = vmatmul.mubr.f32.gmra.mxu0 %v260
        %v387 = vpop.f32.mrf.mxu0
        %v388 = vadd.f32 %v235, %v387
        %v389 = vpop.f32.mrf.mxu0
        %390 = vmatprep.mubr.f32.mxu0 0.0
        %391 = vmatmul.mubr.f32.gmra.mxu0 %v263
        %v392 = vpop.f32.mrf.mxu0
        %v393 = vadd.f32 %v235, %v392
        %v394 = vpop.f32.mrf.mxu0
        %395 = vmatprep.mubr.f32.mxu0 0.0
        %396 = vmatmul.mubr.f32.gmra.mxu0 %v266
        %v397 = vpop.f32.mrf.mxu0
        %v398 = vadd.f32 %v235, %v397
        %v399 = vpop.f32.mrf.mxu0
        %400 = vmatprep.mubr.f32.mxu0 0.0
        %401 = vmatmul.mubr.f32.gmra.mxu0 %v269
        %v402 = vpop.f32.mrf.mxu0
        %v403 = vadd.f32 %v235, %v402
        %v404 = vpop.f32.mrf.mxu0
        %405 = vmatprep.mubr.f32.mxu0 0.0
        %406 = vmatmul.mubr.f32.gmra.mxu0 %v272
        %v407 = vpop.f32.mrf.mxu0
        %v408 = vadd.f32 %v235, %v407
        %v409 = vpop.f32.mrf.mxu0
        %410 = vmatprep.mubr.f32.mxu0 0.0
        %411 = vmatmul.mubr.f32.gmra.mxu0 %v275
        %v412 = vpop.f32.mrf.mxu0
        %v413 = vadd.f32 %v235, %v412
        %v414 = vpop.f32.mrf.mxu0
        %415 = vmatprep.mubr.f32.mxu0 0.0
        %416 = vmatmul.mubr.f32.gmra.mxu0 %v278
        %v417 = vpop.f32.mrf.mxu0
        %v418 = vadd.f32 %v235, %v417
        %v419 = vpop.f32.mrf.mxu0
        %420 = vmatprep.mubr.f32.mxu0 0.0
        %421 = vmatmul.mubr.f32.gmra.mxu0 %v281
        %v422 = vpop.f32.mrf.mxu0
        %v423 = vadd.f32 %v235, %v422
        %v424 = vpop.f32.mrf.mxu0
        %425 = vmatprep.mubr.f32.mxu0 0.0
        %426 = vmatmul.mubr.f32.gmra.mxu0 %v284
        %v427 = vpop.f32.mrf.mxu0
        %v428 = vadd.f32 %v235, %v427
        %v429 = vpop.f32.mrf.mxu0
        %430 = vdwg.mxu0
        %431 = vxpose.xlu0.b32.start [1/16] %v353, 128
        %432 = vxpose.xlu0.b32.cont [2/16] 0.0, 128
        %433 = vxpose.xlu0.b32.cont [3/16] 0.0, 128
        %434 = vxpose.xlu0.b32.cont [4/16] 0.0, 128
        %435 = vxpose.xlu0.b32.cont [5/16] 0.0, 128
        %436 = vxpose.xlu0.b32.cont [6/16] 0.0, 128
        %437 = vxpose.xlu0.b32.cont [7/16] 0.0, 128
        %438 = vxpose.xlu0.b32.cont [8/16] 0.0, 128
        %439 = vxpose.xlu0.b32.cont [9/16] 0.0, 128
        %440 = vxpose.xlu0.b32.cont [10/16] 0.0, 128
        %441 = vxpose.xlu0.b32.cont [11/16] 0.0, 128
        %442 = vxpose.xlu0.b32.cont [12/16] 0.0, 128
        %443 = vxpose.xlu0.b32.cont [13/16] 0.0, 128
        %444 = vxpose.xlu0.b32.cont [14/16] 0.0, 128
        %445 = vxpose.xlu0.b32.cont [15/16] 0.0, 128
        %446 = vxpose.xlu0.b32.end [16/16] 0.0, 128
        %v447 = vpop.trf.xlu0
        %v448 = vpop.trf.xlu0
        %v449 = vpop.trf.xlu0
        %v450 = vpop.trf.xlu0
        %v451 = vpop.trf.xlu0
        %v452 = vpop.trf.xlu0
        %v453 = vpop.trf.xlu0
        %v454 = vpop.trf.xlu0
        %v455 = vpop.trf.xlu0
        %v456 = vpop.trf.xlu0
        %v457 = vpop.trf.xlu0
        %v458 = vpop.trf.xlu0
        %v459 = vpop.trf.xlu0
        %v460 = vpop.trf.xlu0
        %v461 = vpop.trf.xlu0
        %v462 = vpop.trf.xlu0
        %463 = vxpose.xlu0.b32.start [1/16] %v358, 128
        %464 = vxpose.xlu0.b32.cont [2/16] 0.0, 128
        %465 = vxpose.xlu0.b32.cont [3/16] 0.0, 128
        %466 = vxpose.xlu0.b32.cont [4/16] 0.0, 128
        %467 = vxpose.xlu0.b32.cont [5/16] 0.0, 128
        %468 = vxpose.xlu0.b32.cont [6/16] 0.0, 128
        %469 = vxpose.xlu0.b32.cont [7/16] 0.0, 128
        %470 = vxpose.xlu0.b32.cont [8/16] 0.0, 128
        %471 = vxpose.xlu0.b32.cont [9/16] 0.0, 128
        %472 = vxpose.xlu0.b32.cont [10/16] 0.0, 128
        %473 = vxpose.xlu0.b32.cont [11/16] 0.0, 128
        %474 = vxpose.xlu0.b32.cont [12/16] 0.0, 128
        %475 = vxpose.xlu0.b32.cont [13/16] 0.0, 128
        %476 = vxpose.xlu0.b32.cont [14/16] 0.0, 128
        %477 = vxpose.xlu0.b32.cont [15/16] 0.0, 128
        %478 = vxpose.xlu0.b32.end [16/16] 0.0, 128
        %v479 = vpop.trf.xlu0
        %v480 = vpop.trf.xlu0
        %v481 = vpop.trf.xlu0
        %v482 = vpop.trf.xlu0
        %v483 = vpop.trf.xlu0
        %v484 = vpop.trf.xlu0
        %v485 = vpop.trf.xlu0
        %v486 = vpop.trf.xlu0
        %v487 = vpop.trf.xlu0
        %v488 = vpop.trf.xlu0
        %v489 = vpop.trf.xlu0
        %v490 = vpop.trf.xlu0
        %v491 = vpop.trf.xlu0
        %v492 = vpop.trf.xlu0
        %v493 = vpop.trf.xlu0
        %v494 = vpop.trf.xlu0
        %495 = vxpose.xlu0.b32.start [1/16] %v363, 128
        %496 = vxpose.xlu0.b32.cont [2/16] 0.0, 128
        %497 = vxpose.xlu0.b32.cont [3/16] 0.0, 128
        %498 = vxpose.xlu0.b32.cont [4/16] 0.0, 128
        %499 = vxpose.xlu0.b32.cont [5/16] 0.0, 128
        %500 = vxpose.xlu0.b32.cont [6/16] 0.0, 128
        %501 = vxpose.xlu0.b32.cont [7/16] 0.0, 128
        %502 = vxpose.xlu0.b32.cont [8/16] 0.0, 128
        %503 = vxpose.xlu0.b32.cont [9/16] 0.0, 128
        %504 = vxpose.xlu0.b32.cont [10/16] 0.0, 128
        %505 = vxpose.xlu0.b32.cont [11/16] 0.0, 128
        %506 = vxpose.xlu0.b32.cont [12/16] 0.0, 128
        %507 = vxpose.xlu0.b32.cont [13/16] 0.0, 128
        %508 = vxpose.xlu0.b32.cont [14/16] 0.0, 128
        %509 = vxpose.xlu0.b32.cont [15/16] 0.0, 128
        %510 = vxpose.xlu0.b32.end [16/16] 0.0, 128
        %v511 = vpop.trf.xlu0
        %v512 = vpop.trf.xlu0
        %v513 = vpop.trf.xlu0
        %v514 = vpop.trf.xlu0
        %v515 = vpop.trf.xlu0
        %v516 = vpop.trf.xlu0
        %v517 = vpop.trf.xlu0
        %v518 = vpop.trf.xlu0
        %v519 = vpop.trf.xlu0
        %v520 = vpop.trf.xlu0
        %v521 = vpop.trf.xlu0
        %v522 = vpop.trf.xlu0
        %v523 = vpop.trf.xlu0
        %v524 = vpop.trf.xlu0
        %v525 = vpop.trf.xlu0
        %v526 = vpop.trf.xlu0
        %527 = vxpose.xlu0.b32.start [1/16] %v368, 128
        %528 = vxpose.xlu0.b32.cont [2/16] 0.0, 128
        %529 = vxpose.xlu0.b32.cont [3/16] 0.0, 128
        %530 = vxpose.xlu0.b32.cont [4/16] 0.0, 128
        %531 = vxpose.xlu0.b32.cont [5/16] 0.0, 128
        %532 = vxpose.xlu0.b32.cont [6/16] 0.0, 128
        %533 = vxpose.xlu0.b32.cont [7/16] 0.0, 128
        %534 = vxpose.xlu0.b32.cont [8/16] 0.0, 128
        %535 = vxpose.xlu0.b32.cont [9/16] 0.0, 128
        %536 = vxpose.xlu0.b32.cont [10/16] 0.0, 128
        %537 = vxpose.xlu0.b32.cont [11/16] 0.0, 128
        %538 = vxpose.xlu0.b32.cont [12/16] 0.0, 128
        %539 = vxpose.xlu0.b32.cont [13/16] 0.0, 128
        %540 = vxpose.xlu0.b32.cont [14/16] 0.0, 128
        %541 = vxpose.xlu0.b32.cont [15/16] 0.0, 128
        %542 = vxpose.xlu0.b32.end [16/16] 0.0, 128
        %v543 = vpop.trf.xlu0
        %v544 = vpop.trf.xlu0
        %v545 = vpop.trf.xlu0
        %v546 = vpop.trf.xlu0
        %v547 = vpop.trf.xlu0
        %v548 = vpop.trf.xlu0
        %v549 = vpop.trf.xlu0
        %v550 = vpop.trf.xlu0
        %v551 = vpop.trf.xlu0
        %v552 = vpop.trf.xlu0
        %v553 = vpop.trf.xlu0
        %v554 = vpop.trf.xlu0
        %v555 = vpop.trf.xlu0
        %v556 = vpop.trf.xlu0
        %v557 = vpop.trf.xlu0
        %v558 = vpop.trf.xlu0
        %559 = vxpose.xlu0.b32.start [1/16] %v373, 128
        %560 = vxpose.xlu0.b32.cont [2/16] 0.0, 128
        %561 = vxpose.xlu0.b32.cont [3/16] 0.0, 128
        %562 = vxpose.xlu0.b32.cont [4/16] 0.0, 128
        %563 = vxpose.xlu0.b32.cont [5/16] 0.0, 128
        %564 = vxpose.xlu0.b32.cont [6/16] 0.0, 128
        %565 = vxpose.xlu0.b32.cont [7/16] 0.0, 128
        %566 = vxpose.xlu0.b32.cont [8/16] 0.0, 128
        %567 = vxpose.xlu0.b32.cont [9/16] 0.0, 128
        %568 = vxpose.xlu0.b32.cont [10/16] 0.0, 128
        %569 = vxpose.xlu0.b32.cont [11/16] 0.0, 128
        %570 = vxpose.xlu0.b32.cont [12/16] 0.0, 128
        %571 = vxpose.xlu0.b32.cont [13/16] 0.0, 128
        %572 = vxpose.xlu0.b32.cont [14/16] 0.0, 128
        %573 = vxpose.xlu0.b32.cont [15/16] 0.0, 128
        %574 = vxpose.xlu0.b32.end [16/16] 0.0, 128
        %v575 = vpop.trf.xlu0
        %v576 = vpop.trf.xlu0
        %v577 = vpop.trf.xlu0
        %v578 = vpop.trf.xlu0
        %v579 = vpop.trf.xlu0
        %v580 = vpop.trf.xlu0
        %v581 = vpop.trf.xlu0
        %v582 = vpop.trf.xlu0
        %v583 = vpop.trf.xlu0
        %v584 = vpop.trf.xlu0
        %v585 = vpop.trf.xlu0
        %v586 = vpop.trf.xlu0
        %v587 = vpop.trf.xlu0
        %v588 = vpop.trf.xlu0
        %v589 = vpop.trf.xlu0
        %v590 = vpop.trf.xlu0
        %591 = vxpose.xlu0.b32.start [1/16] %v378, 128
        %592 = vxpose.xlu0.b32.cont [2/16] 0.0, 128
        %593 = vxpose.xlu0.b32.cont [3/16] 0.0, 128
        %594 = vxpose.xlu0.b32.cont [4/16] 0.0, 128
        %595 = vxpose.xlu0.b32.cont [5/16] 0.0, 128
        %596 = vxpose.xlu0.b32.cont [6/16] 0.0, 128
        %597 = vxpose.xlu0.b32.cont [7/16] 0.0, 128
        %598 = vxpose.xlu0.b32.cont [8/16] 0.0, 128
        %599 = vxpose.xlu0.b32.cont [9/16] 0.0, 128
        %600 = vxpose.xlu0.b32.cont [10/16] 0.0, 128
        %601 = vxpose.xlu0.b32.cont [11/16] 0.0, 128
        %602 = vxpose.xlu0.b32.cont [12/16] 0.0, 128
        %603 = vxpose.xlu0.b32.cont [13/16] 0.0, 128
        %604 = vxpose.xlu0.b32.cont [14/16] 0.0, 128
        %605 = vxpose.xlu0.b32.cont [15/16] 0.0, 128
        %606 = vxpose.xlu0.b32.end [16/16] 0.0, 128
        %v607 = vpop.trf.xlu0
        %v608 = vpop.trf.xlu0
        %v609 = vpop.trf.xlu0
        %v610 = vpop.trf.xlu0
        %v611 = vpop.trf.xlu0
        %v612 = vpop.trf.xlu0
        %v613 = vpop.trf.xlu0
        %v614 = vpop.trf.xlu0
        %v615 = vpop.trf.xlu0
        %v616 = vpop.trf.xlu0
        %v617 = vpop.trf.xlu0
        %v618 = vpop.trf.xlu0
        %v619 = vpop.trf.xlu0
        %v620 = vpop.trf.xlu0
        %v621 = vpop.trf.xlu0
        %v622 = vpop.trf.xlu0
        %623 = vxpose.xlu0.b32.start [1/16] %v383, 128
        %624 = vxpose.xlu0.b32.cont [2/16] 0.0, 128
        %625 = vxpose.xlu0.b32.cont [3/16] 0.0, 128
        %626 = vxpose.xlu0.b32.cont [4/16] 0.0, 128
        %627 = vxpose.xlu0.b32.cont [5/16] 0.0, 128
        %628 = vxpose.xlu0.b32.cont [6/16] 0.0, 128
        %629 = vxpose.xlu0.b32.cont [7/16] 0.0, 128
        %630 = vxpose.xlu0.b32.cont [8/16] 0.0, 128
        %631 = vxpose.xlu0.b32.cont [9/16] 0.0, 128
        %632 = vxpose.xlu0.b32.cont [10/16] 0.0, 128
        %633 = vxpose.xlu0.b32.cont [11/16] 0.0, 128
        %634 = vxpose.xlu0.b32.cont [12/16] 0.0, 128
        %635 = vxpose.xlu0.b32.cont [13/16] 0.0, 128
        %636 = vxpose.xlu0.b32.cont [14/16] 0.0, 128
        %637 = vxpose.xlu0.b32.cont [15/16] 0.0, 128
        %638 = vxpose.xlu0.b32.end [16/16] 0.0, 128
        %v639 = vpop.trf.xlu0
        %v640 = vpop.trf.xlu0
        %v641 = vpop.trf.xlu0
        %v642 = vpop.trf.xlu0
        %v643 = vpop.trf.xlu0
        %v644 = vpop.trf.xlu0
        %v645 = vpop.trf.xlu0
        %v646 = vpop.trf.xlu0
        %v647 = vpop.trf.xlu0
        %v648 = vpop.trf.xlu0
        %v649 = vpop.trf.xlu0
        %v650 = vpop.trf.xlu0
        %v651 = vpop.trf.xlu0
        %v652 = vpop.trf.xlu0
        %v653 = vpop.trf.xlu0
        %v654 = vpop.trf.xlu0
        %655 = vxpose.xlu0.b32.start [1/16] %v388, 128
        %656 = vxpose.xlu0.b32.cont [2/16] 0.0, 128
        %657 = vxpose.xlu0.b32.cont [3/16] 0.0, 128
        %658 = vxpose.xlu0.b32.cont [4/16] 0.0, 128
        %659 = vxpose.xlu0.b32.cont [5/16] 0.0, 128
        %660 = vxpose.xlu0.b32.cont [6/16] 0.0, 128
        %661 = vxpose.xlu0.b32.cont [7/16] 0.0, 128
        %662 = vxpose.xlu0.b32.cont [8/16] 0.0, 128
        %663 = vxpose.xlu0.b32.cont [9/16] 0.0, 128
        %664 = vxpose.xlu0.b32.cont [10/16] 0.0, 128
        %665 = vxpose.xlu0.b32.cont [11/16] 0.0, 128
        %666 = vxpose.xlu0.b32.cont [12/16] 0.0, 128
        %667 = vxpose.xlu0.b32.cont [13/16] 0.0, 128
        %668 = vxpose.xlu0.b32.cont [14/16] 0.0, 128
        %669 = vxpose.xlu0.b32.cont [15/16] 0.0, 128
        %670 = vxpose.xlu0.b32.end [16/16] 0.0, 128
        %v671 = vpop.trf.xlu0
        %v672 = vpop.trf.xlu0
        %v673 = vpop.trf.xlu0
        %v674 = vpop.trf.xlu0
        %v675 = vpop.trf.xlu0
        %v676 = vpop.trf.xlu0
        %v677 = vpop.trf.xlu0
        %v678 = vpop.trf.xlu0
        %v679 = vpop.trf.xlu0
        %v680 = vpop.trf.xlu0
        %v681 = vpop.trf.xlu0
        %v682 = vpop.trf.xlu0
        %v683 = vpop.trf.xlu0
        %v684 = vpop.trf.xlu0
        %v685 = vpop.trf.xlu0
        %v686 = vpop.trf.xlu0
        %687 = vxpose.xlu0.b32.start [1/16] %v393, 128
        %688 = vxpose.xlu0.b32.cont [2/16] 0.0, 128
        %689 = vxpose.xlu0.b32.cont [3/16] 0.0, 128
        %690 = vxpose.xlu0.b32.cont [4/16] 0.0, 128
        %691 = vxpose.xlu0.b32.cont [5/16] 0.0, 128
        %692 = vxpose.xlu0.b32.cont [6/16] 0.0, 128
        %693 = vxpose.xlu0.b32.cont [7/16] 0.0, 128
        %694 = vxpose.xlu0.b32.cont [8/16] 0.0, 128
        %695 = vxpose.xlu0.b32.cont [9/16] 0.0, 128
        %696 = vxpose.xlu0.b32.cont [10/16] 0.0, 128
        %697 = vxpose.xlu0.b32.cont [11/16] 0.0, 128
        %698 = vxpose.xlu0.b32.cont [12/16] 0.0, 128
        %699 = vxpose.xlu0.b32.cont [13/16] 0.0, 128
        %700 = vxpose.xlu0.b32.cont [14/16] 0.0, 128
        %701 = vxpose.xlu0.b32.cont [15/16] 0.0, 128
        %702 = vxpose.xlu0.b32.end [16/16] 0.0, 128
        %v703 = vpop.trf.xlu0
        %v704 = vpop.trf.xlu0
        %v705 = vpop.trf.xlu0
        %v706 = vpop.trf.xlu0
        %v707 = vpop.trf.xlu0
        %v708 = vpop.trf.xlu0
        %v709 = vpop.trf.xlu0
        %v710 = vpop.trf.xlu0
        %v711 = vpop.trf.xlu0
        %v712 = vpop.trf.xlu0
        %v713 = vpop.trf.xlu0
        %v714 = vpop.trf.xlu0
        %v715 = vpop.trf.xlu0
        %v716 = vpop.trf.xlu0
        %v717 = vpop.trf.xlu0
        %v718 = vpop.trf.xlu0
        %719 = vxpose.xlu0.b32.start [1/16] %v398, 128
        %720 = vxpose.xlu0.b32.cont [2/16] 0.0, 128
        %721 = vxpose.xlu0.b32.cont [3/16] 0.0, 128
        %722 = vxpose.xlu0.b32.cont [4/16] 0.0, 128
        %723 = vxpose.xlu0.b32.cont [5/16] 0.0, 128
        %724 = vxpose.xlu0.b32.cont [6/16] 0.0, 128
        %725 = vxpose.xlu0.b32.cont [7/16] 0.0, 128
        %726 = vxpose.xlu0.b32.cont [8/16] 0.0, 128
        %727 = vxpose.xlu0.b32.cont [9/16] 0.0, 128
        %728 = vxpose.xlu0.b32.cont [10/16] 0.0, 128
        %729 = vxpose.xlu0.b32.cont [11/16] 0.0, 128
        %730 = vxpose.xlu0.b32.cont [12/16] 0.0, 128
        %731 = vxpose.xlu0.b32.cont [13/16] 0.0, 128
        %732 = vxpose.xlu0.b32.cont [14/16] 0.0, 128
        %733 = vxpose.xlu0.b32.cont [15/16] 0.0, 128
        %734 = vxpose.xlu0.b32.end [16/16] 0.0, 128
        %v735 = vpop.trf.xlu0
        %v736 = vpop.trf.xlu0
        %v737 = vpop.trf.xlu0
        %v738 = vpop.trf.xlu0
        %v739 = vpop.trf.xlu0
        %v740 = vpop.trf.xlu0
        %v741 = vpop.trf.xlu0
        %v742 = vpop.trf.xlu0
        %v743 = vpop.trf.xlu0
        %v744 = vpop.trf.xlu0
        %v745 = vpop.trf.xlu0
        %v746 = vpop.trf.xlu0
        %v747 = vpop.trf.xlu0
        %v748 = vpop.trf.xlu0
        %v749 = vpop.trf.xlu0
        %v750 = vpop.trf.xlu0
        %751 = vxpose.xlu0.b32.start [1/16] %v403, 128
        %752 = vxpose.xlu0.b32.cont [2/16] 0.0, 128
        %753 = vxpose.xlu0.b32.cont [3/16] 0.0, 128
        %754 = vxpose.xlu0.b32.cont [4/16] 0.0, 128
        %755 = vxpose.xlu0.b32.cont [5/16] 0.0, 128
        %756 = vxpose.xlu0.b32.cont [6/16] 0.0, 128
        %757 = vxpose.xlu0.b32.cont [7/16] 0.0, 128
        %758 = vxpose.xlu0.b32.cont [8/16] 0.0, 128
        %759 = vxpose.xlu0.b32.cont [9/16] 0.0, 128
        %760 = vxpose.xlu0.b32.cont [10/16] 0.0, 128
        %761 = vxpose.xlu0.b32.cont [11/16] 0.0, 128
        %762 = vxpose.xlu0.b32.cont [12/16] 0.0, 128
        %763 = vxpose.xlu0.b32.cont [13/16] 0.0, 128
        %764 = vxpose.xlu0.b32.cont [14/16] 0.0, 128
        %765 = vxpose.xlu0.b32.cont [15/16] 0.0, 128
        %766 = vxpose.xlu0.b32.end [16/16] 0.0, 128
        %v767 = vpop.trf.xlu0
        %v768 = vpop.trf.xlu0
        %v769 = vpop.trf.xlu0
        %v770 = vpop.trf.xlu0
        %v771 = vpop.trf.xlu0
        %v772 = vpop.trf.xlu0
        %v773 = vpop.trf.xlu0
        %v774 = vpop.trf.xlu0
        %v775 = vpop.trf.xlu0
        %v776 = vpop.trf.xlu0
        %v777 = vpop.trf.xlu0
        %v778 = vpop.trf.xlu0
        %v779 = vpop.trf.xlu0
        %v780 = vpop.trf.xlu0
        %v781 = vpop.trf.xlu0
        %v782 = vpop.trf.xlu0
        %783 = vxpose.xlu0.b32.start [1/16] %v408, 128
        %784 = vxpose.xlu0.b32.cont [2/16] 0.0, 128
        %785 = vxpose.xlu0.b32.cont [3/16] 0.0, 128
        %786 = vxpose.xlu0.b32.cont [4/16] 0.0, 128
        %787 = vxpose.xlu0.b32.cont [5/16] 0.0, 128
        %788 = vxpose.xlu0.b32.cont [6/16] 0.0, 128
        %789 = vxpose.xlu0.b32.cont [7/16] 0.0, 128
        %790 = vxpose.xlu0.b32.cont [8/16] 0.0, 128
        %791 = vxpose.xlu0.b32.cont [9/16] 0.0, 128
        %792 = vxpose.xlu0.b32.cont [10/16] 0.0, 128
        %793 = vxpose.xlu0.b32.cont [11/16] 0.0, 128
        %794 = vxpose.xlu0.b32.cont [12/16] 0.0, 128
        %795 = vxpose.xlu0.b32.cont [13/16] 0.0, 128
        %796 = vxpose.xlu0.b32.cont [14/16] 0.0, 128
        %797 = vxpose.xlu0.b32.cont [15/16] 0.0, 128
        %798 = vxpose.xlu0.b32.end [16/16] 0.0, 128
        %v799 = vpop.trf.xlu0
        %v800 = vpop.trf.xlu0
        %v801 = vpop.trf.xlu0
        %v802 = vpop.trf.xlu0
        %v803 = vpop.trf.xlu0
        %v804 = vpop.trf.xlu0
        %v805 = vpop.trf.xlu0
        %v806 = vpop.trf.xlu0
        %v807 = vpop.trf.xlu0
        %v808 = vpop.trf.xlu0
        %v809 = vpop.trf.xlu0
        %v810 = vpop.trf.xlu0
        %v811 = vpop.trf.xlu0
        %v812 = vpop.trf.xlu0
        %v813 = vpop.trf.xlu0
        %v814 = vpop.trf.xlu0
        %815 = vxpose.xlu0.b32.start [1/16] %v413, 128
        %816 = vxpose.xlu0.b32.cont [2/16] 0.0, 128
        %817 = vxpose.xlu0.b32.cont [3/16] 0.0, 128
        %818 = vxpose.xlu0.b32.cont [4/16] 0.0, 128
        %819 = vxpose.xlu0.b32.cont [5/16] 0.0, 128
        %820 = vxpose.xlu0.b32.cont [6/16] 0.0, 128
        %821 = vxpose.xlu0.b32.cont [7/16] 0.0, 128
        %822 = vxpose.xlu0.b32.cont [8/16] 0.0, 128
        %823 = vxpose.xlu0.b32.cont [9/16] 0.0, 128
        %824 = vxpose.xlu0.b32.cont [10/16] 0.0, 128
        %825 = vxpose.xlu0.b32.cont [11/16] 0.0, 128
        %826 = vxpose.xlu0.b32.cont [12/16] 0.0, 128
        %827 = vxpose.xlu0.b32.cont [13/16] 0.0, 128
        %828 = vxpose.xlu0.b32.cont [14/16] 0.0, 128
        %829 = vxpose.xlu0.b32.cont [15/16] 0.0, 128
        %830 = vxpose.xlu0.b32.end [16/16] 0.0, 128
        %v831 = vpop.trf.xlu0
        %v832 = vpop.trf.xlu0
        %v833 = vpop.trf.xlu0
        %v834 = vpop.trf.xlu0
        %v835 = vpop.trf.xlu0
        %v836 = vpop.trf.xlu0
        %v837 = vpop.trf.xlu0
        %v838 = vpop.trf.xlu0
        %v839 = vpop.trf.xlu0
        %v840 = vpop.trf.xlu0
        %v841 = vpop.trf.xlu0
        %v842 = vpop.trf.xlu0
        %v843 = vpop.trf.xlu0
        %v844 = vpop.trf.xlu0
        %v845 = vpop.trf.xlu0
        %v846 = vpop.trf.xlu0
        %847 = vxpose.xlu0.b32.start [1/16] %v418, 128
        %848 = vxpose.xlu0.b32.cont [2/16] 0.0, 128
        %849 = vxpose.xlu0.b32.cont [3/16] 0.0, 128
        %850 = vxpose.xlu0.b32.cont [4/16] 0.0, 128
        %851 = vxpose.xlu0.b32.cont [5/16] 0.0, 128
        %852 = vxpose.xlu0.b32.cont [6/16] 0.0, 128
        %853 = vxpose.xlu0.b32.cont [7/16] 0.0, 128
        %854 = vxpose.xlu0.b32.cont [8/16] 0.0, 128
        %855 = vxpose.xlu0.b32.cont [9/16] 0.0, 128
        %856 = vxpose.xlu0.b32.cont [10/16] 0.0, 128
        %857 = vxpose.xlu0.b32.cont [11/16] 0.0, 128
        %858 = vxpose.xlu0.b32.cont [12/16] 0.0, 128
        %859 = vxpose.xlu0.b32.cont [13/16] 0.0, 128
        %860 = vxpose.xlu0.b32.cont [14/16] 0.0, 128
        %861 = vxpose.xlu0.b32.cont [15/16] 0.0, 128
        %862 = vxpose.xlu0.b32.end [16/16] 0.0, 128
        %v863 = vpop.trf.xlu0
        %v864 = vpop.trf.xlu0
        %v865 = vpop.trf.xlu0
        %v866 = vpop.trf.xlu0
        %v867 = vpop.trf.xlu0
        %v868 = vpop.trf.xlu0
        %v869 = vpop.trf.xlu0
        %v870 = vpop.trf.xlu0
        %v871 = vpop.trf.xlu0
        %v872 = vpop.trf.xlu0
        %v873 = vpop.trf.xlu0
        %v874 = vpop.trf.xlu0
        %v875 = vpop.trf.xlu0
        %v876 = vpop.trf.xlu0
        %v877 = vpop.trf.xlu0
        %v878 = vpop.trf.xlu0
        %879 = vxpose.xlu0.b32.start [1/16] %v423, 128
        %880 = vxpose.xlu0.b32.cont [2/16] 0.0, 128
        %881 = vxpose.xlu0.b32.cont [3/16] 0.0, 128
        %882 = vxpose.xlu0.b32.cont [4/16] 0.0, 128
        %883 = vxpose.xlu0.b32.cont [5/16] 0.0, 128
        %884 = vxpose.xlu0.b32.cont [6/16] 0.0, 128
        %885 = vxpose.xlu0.b32.cont [7/16] 0.0, 128
        %886 = vxpose.xlu0.b32.cont [8/16] 0.0, 128
        %887 = vxpose.xlu0.b32.cont [9/16] 0.0, 128
        %888 = vxpose.xlu0.b32.cont [10/16] 0.0, 128
        %889 = vxpose.xlu0.b32.cont [11/16] 0.0, 128
        %890 = vxpose.xlu0.b32.cont [12/16] 0.0, 128
        %891 = vxpose.xlu0.b32.cont [13/16] 0.0, 128
        %892 = vxpose.xlu0.b32.cont [14/16] 0.0, 128
        %893 = vxpose.xlu0.b32.cont [15/16] 0.0, 128
        %894 = vxpose.xlu0.b32.end [16/16] 0.0, 128
        %v895 = vpop.trf.xlu0
        %v896 = vpop.trf.xlu0
        %v897 = vpop.trf.xlu0
        %v898 = vpop.trf.xlu0
        %v899 = vpop.trf.xlu0
        %v900 = vpop.trf.xlu0
        %v901 = vpop.trf.xlu0
        %v902 = vpop.trf.xlu0
        %v903 = vpop.trf.xlu0
        %v904 = vpop.trf.xlu0
        %v905 = vpop.trf.xlu0
        %v906 = vpop.trf.xlu0
        %v907 = vpop.trf.xlu0
        %v908 = vpop.trf.xlu0
        %v909 = vpop.trf.xlu0
        %v910 = vpop.trf.xlu0
        %911 = vxpose.xlu0.b32.start [1/16] %v428, 128
        %912 = vxpose.xlu0.b32.cont [2/16] 0.0, 128
        %913 = vxpose.xlu0.b32.cont [3/16] 0.0, 128
        %914 = vxpose.xlu0.b32.cont [4/16] 0.0, 128
        %915 = vxpose.xlu0.b32.cont [5/16] 0.0, 128
        %916 = vxpose.xlu0.b32.cont [6/16] 0.0, 128
        %917 = vxpose.xlu0.b32.cont [7/16] 0.0, 128
        %918 = vxpose.xlu0.b32.cont [8/16] 0.0, 128
        %919 = vxpose.xlu0.b32.cont [9/16] 0.0, 128
        %920 = vxpose.xlu0.b32.cont [10/16] 0.0, 128
        %921 = vxpose.xlu0.b32.cont [11/16] 0.0, 128
        %922 = vxpose.xlu0.b32.cont [12/16] 0.0, 128
        %923 = vxpose.xlu0.b32.cont [13/16] 0.0, 128
        %924 = vxpose.xlu0.b32.cont [14/16] 0.0, 128
        %925 = vxpose.xlu0.b32.cont [15/16] 0.0, 128
        %926 = vxpose.xlu0.b32.end [16/16] 0.0, 128
        %v927 = vpop.trf.xlu0
        %v928 = vpop.trf.xlu0
        %v929 = vpop.trf.xlu0
        %v930 = vpop.trf.xlu0
        %v931 = vpop.trf.xlu0
        %v932 = vpop.trf.xlu0
        %v933 = vpop.trf.xlu0
        %v934 = vpop.trf.xlu0
        %v935 = vpop.trf.xlu0
        %v936 = vpop.trf.xlu0
        %v937 = vpop.trf.xlu0
        %v938 = vpop.trf.xlu0
        %v939 = vpop.trf.xlu0
        %v940 = vpop.trf.xlu0
        %v941 = vpop.trf.xlu0
        %v942 = vpop.trf.xlu0
        %vm943 = vcmask 64512
        %v945 = vsel %vm943, %v447, 0
        %v948 = vsel %vm943, %v448, 0
        %v951 = vsel %vm943, %v449, 0
        %v954 = vsel %vm943, %v450, 0
        %956 = vmatprep.subr.mxu0 0.0
        %957 = vmatpush1.xpose.msra.mxu0 0.0
        %958 = vmatprep.subr.mxu0 0.0
        %959 = vmatpush1.xpose.msra.mxu0 0.0
        %960 = vmatprep.subr.mxu0 0.0
        %961 = vmatpush1.xpose.msra.mxu0 0.0
        %962 = vmatprep.subr.mxu0 0.0
        %963 = vmatpush1.xpose.msra.mxu0 0.0
        %964 = vmatprep.subr.mxu0 0.0
        %965 = vmatpush1.xpose.msra.mxu0 0.0
        %966 = vmatprep.subr.mxu0 0.0
        %967 = vmatpush1.xpose.msra.mxu0 0.0
        %968 = vmatprep.subr.mxu0 0.0
        %969 = vmatpush1.xpose.msra.mxu0 0.0
        %970 = vmatprep.subr.mxu0 0.0
        %971 = vmatpush1.xpose.msra.mxu0 0.0
        %972 = vmatprep.subr.mxu0 0.0
        %973 = vmatpush1.xpose.msra.mxu0 0.0
        %974 = vmatprep.subr.mxu0 0.0
        %975 = vmatpush1.xpose.msra.mxu0 0.0
        %976 = vmatprep.subr.mxu0 0.0
        %977 = vmatpush1.xpose.msra.mxu0 0.0
        %978 = vmatprep.subr.mxu0 0.0
        %979 = vmatpush1.xpose.msra.mxu0 0.0
        %980 = vmatprep.subr.mxu0 0.0
        %981 = vmatpush1.xpose.msra.mxu0 0.0
        %982 = vmatprep.subr.mxu0 0.0
        %983 = vmatpush1.xpose.msra.mxu0 0.0
        %984 = vmatprep.subr.mxu0 0.0
        %985 = vmatpush1.xpose.msra.mxu0 %v954
        %986 = vmatprep.subr.mxu0 0.0
        %987 = vmatpush1.xpose.msra.mxu0 %v951
        %988 = vmatprep.subr.mxu0 0.0
        %989 = vmatpush2.xpose.msra.mxu0 0.0
        %990 = vmatprep.subr.mxu0 0.0
        %991 = vmatpush2.xpose.msra.mxu0 0.0
        %992 = vmatprep.subr.mxu0 0.0
        %993 = vmatpush2.xpose.msra.mxu0 0.0
        %994 = vmatprep.subr.mxu0 0.0
        %995 = vmatpush2.xpose.msra.mxu0 0.0
        %996 = vmatprep.subr.mxu0 0.0
        %997 = vmatpush2.xpose.msra.mxu0 0.0
        %998 = vmatprep.subr.mxu0 0.0
        %999 = vmatpush2.xpose.msra.mxu0 0.0
        %1000 = vmatprep.subr.mxu0 0.0
        %1001 = vmatpush2.xpose.msra.mxu0 0.0
        %1002 = vmatprep.subr.mxu0 0.0
        %1003 = vmatpush2.xpose.msra.mxu0 0.0
        %1004 = vmatprep.subr.mxu0 0.0
        %1005 = vmatpush2.xpose.msra.mxu0 0.0
        %1006 = vmatprep.subr.mxu0 0.0
        %1007 = vmatpush2.xpose.msra.mxu0 0.0
        %1008 = vmatprep.subr.mxu0 0.0
        %1009 = vmatpush2.xpose.msra.mxu0 0.0
        %1010 = vmatprep.subr.mxu0 0.0
        %1011 = vmatpush2.xpose.msra.mxu0 0.0
        %1012 = vmatprep.subr.mxu0 0.0
        %1013 = vmatpush2.xpose.msra.mxu0 0.0
        %1014 = vmatprep.subr.mxu0 0.0
        %1015 = vmatpush2.xpose.msra.mxu0 0.0
        %1016 = vmatprep.subr.mxu0 0.0
        %1017 = vmatpush2.xpose.msra.mxu0 0.0
        %1018 = vmatprep.subr.mxu0 0.0
        %1019 = vmatpush2.xpose.msra.mxu0 0.0
        %1020 = vmatprep.mubr.f32.mxu0 0.0
        %1021 = vmatmul.mubr.f32.gmra.mxu0 %v945
        %v1022 = vpop.f32.mrf.mxu0
        %v1023 = vadd.f32 0.0, %v1022
        %v1024 = vpop.f32.mrf.mxu0
        %1025 = vmatprep.mubr.f32.mxu0 0.0
        %1026 = vmatmul.mubr.f32.gmra.mxu0 %v948
        %v1027 = vpop.f32.mrf.mxu0
        %v1028 = vadd.f32 0.0, %v1027
        %v1029 = vpop.f32.mrf.mxu0
        %1030 = vdwg.mxu0
        %v1032 = vsel %vm943, %v479, 0
        %v1035 = vsel %vm943, %v480, 0
        %v1038 = vsel %vm943, %v481, 0
        %v1041 = vsel %vm943, %v482, 0
        %1043 = vmatprep.subr.mxu0 0.0
        %1044 = vmatpush1.xpose.msra.mxu0 0.0
        %1045 = vmatprep.subr.mxu0 0.0
        %1046 = vmatpush1.xpose.msra.mxu0 0.0
        %1047 = vmatprep.subr.mxu0 0.0
        %1048 = vmatpush1.xpose.msra.mxu0 0.0
        %1049 = vmatprep.subr.mxu0 0.0
        %1050 = vmatpush1.xpose.msra.mxu0 0.0
        %1051 = vmatprep.subr.mxu0 0.0
        %1052 = vmatpush1.xpose.msra.mxu0 0.0
        %1053 = vmatprep.subr.mxu0 0.0
        %1054 = vmatpush1.xpose.msra.mxu0 0.0
        %1055 = vmatprep.subr.mxu0 0.0
        %1056 = vmatpush1.xpose.msra.mxu0 0.0
        %1057 = vmatprep.subr.mxu0 0.0
        %1058 = vmatpush1.xpose.msra.mxu0 0.0
        %1059 = vmatprep.subr.mxu0 0.0
        %1060 = vmatpush1.xpose.msra.mxu0 0.0
        %1061 = vmatprep.subr.mxu0 0.0
        %1062 = vmatpush1.xpose.msra.mxu0 0.0
        %1063 = vmatprep.subr.mxu0 0.0
        %1064 = vmatpush1.xpose.msra.mxu0 0.0
        %1065 = vmatprep.subr.mxu0 0.0
        %1066 = vmatpush1.xpose.msra.mxu0 0.0
        %1067 = vmatprep.subr.mxu0 0.0
        %1068 = vmatpush1.xpose.msra.mxu0 0.0
        %1069 = vmatprep.subr.mxu0 0.0
        %1070 = vmatpush1.xpose.msra.mxu0 0.0
        %1071 = vmatprep.subr.mxu0 0.0
        %1072 = vmatpush1.xpose.msra.mxu0 %v1041
        %1073 = vmatprep.subr.mxu0 0.0
        %1074 = vmatpush1.xpose.msra.mxu0 %v1038
        %1075 = vmatprep.subr.mxu0 0.0
        %1076 = vmatpush2.xpose.msra.mxu0 0.0
        %1077 = vmatprep.subr.mxu0 0.0
        %1078 = vmatpush2.xpose.msra.mxu0 0.0
        %1079 = vmatprep.subr.mxu0 0.0
        %1080 = vmatpush2.xpose.msra.mxu0 0.0
        %1081 = vmatprep.subr.mxu0 0.0
        %1082 = vmatpush2.xpose.msra.mxu0 0.0
        %1083 = vmatprep.subr.mxu0 0.0
        %1084 = vmatpush2.xpose.msra.mxu0 0.0
        %1085 = vmatprep.subr.mxu0 0.0
        %1086 = vmatpush2.xpose.msra.mxu0 0.0
        %1087 = vmatprep.subr.mxu0 0.0
        %1088 = vmatpush2.xpose.msra.mxu0 0.0
        %1089 = vmatprep.subr.mxu0 0.0
        %1090 = vmatpush2.xpose.msra.mxu0 0.0
        %1091 = vmatprep.subr.mxu0 0.0
        %1092 = vmatpush2.xpose.msra.mxu0 0.0
        %1093 = vmatprep.subr.mxu0 0.0
        %1094 = vmatpush2.xpose.msra.mxu0 0.0
        %1095 = vmatprep.subr.mxu0 0.0
        %1096 = vmatpush2.xpose.msra.mxu0 0.0
        %1097 = vmatprep.subr.mxu0 0.0
        %1098 = vmatpush2.xpose.msra.mxu0 0.0
        %1099 = vmatprep.subr.mxu0 0.0
        %1100 = vmatpush2.xpose.msra.mxu0 0.0
        %1101 = vmatprep.subr.mxu0 0.0
        %1102 = vmatpush2.xpose.msra.mxu0 0.0
        %1103 = vmatprep.subr.mxu0 0.0
        %1104 = vmatpush2.xpose.msra.mxu0 0.0
        %1105 = vmatprep.subr.mxu0 0.0
        %1106 = vmatpush2.xpose.msra.mxu0 0.0
        %1107 = vmatprep.mubr.f32.mxu0 0.0
        %1108 = vmatmul.mubr.f32.gmra.mxu0 %v1032
        %v1109 = vpop.f32.mrf.mxu0
        %v1110 = vadd.f32 0.0, %v1109
        %v1111 = vpop.f32.mrf.mxu0
        %1112 = vmatprep.mubr.f32.mxu0 0.0
        %1113 = vmatmul.mubr.f32.gmra.mxu0 %v1035
        %v1114 = vpop.f32.mrf.mxu0
        %v1115 = vadd.f32 0.0, %v1114
        %v1116 = vpop.f32.mrf.mxu0
        %1117 = vdwg.mxu0
        %v1119 = vsel %vm943, %v511, 0
        %v1122 = vsel %vm943, %v512, 0
        %v1125 = vsel %vm943, %v513, 0
        %v1128 = vsel %vm943, %v514, 0
        %1130 = vmatprep.subr.mxu0 0.0
        %1131 = vmatpush1.xpose.msra.mxu0 0.0
        %1132 = vmatprep.subr.mxu0 0.0
        %1133 = vmatpush1.xpose.msra.mxu0 0.0
        %1134 = vmatprep.subr.mxu0 0.0
        %1135 = vmatpush1.xpose.msra.mxu0 0.0
        %1136 = vmatprep.subr.mxu0 0.0
        %1137 = vmatpush1.xpose.msra.mxu0 0.0
        %1138 = vmatprep.subr.mxu0 0.0
        %1139 = vmatpush1.xpose.msra.mxu0 0.0
        %1140 = vmatprep.subr.mxu0 0.0
        %1141 = vmatpush1.xpose.msra.mxu0 0.0
        %1142 = vmatprep.subr.mxu0 0.0
        %1143 = vmatpush1.xpose.msra.mxu0 0.0
        %1144 = vmatprep.subr.mxu0 0.0
        %1145 = vmatpush1.xpose.msra.mxu0 0.0
        %1146 = vmatprep.subr.mxu0 0.0
        %1147 = vmatpush1.xpose.msra.mxu0 0.0
        %1148 = vmatprep.subr.mxu0 0.0
        %1149 = vmatpush1.xpose.msra.mxu0 0.0
        %1150 = vmatprep.subr.mxu0 0.0
        %1151 = vmatpush1.xpose.msra.mxu0 0.0
        %1152 = vmatprep.subr.mxu0 0.0
        %1153 = vmatpush1.xpose.msra.mxu0 0.0
        %1154 = vmatprep.subr.mxu0 0.0
        %1155 = vmatpush1.xpose.msra.mxu0 0.0
        %1156 = vmatprep.subr.mxu0 0.0
        %1157 = vmatpush1.xpose.msra.mxu0 0.0
        %1158 = vmatprep.subr.mxu0 0.0
        %1159 = vmatpush1.xpose.msra.mxu0 %v1128
        %1160 = vmatprep.subr.mxu0 0.0
        %1161 = vmatpush1.xpose.msra.mxu0 %v1125
        %1162 = vmatprep.subr.mxu0 0.0
        %1163 = vmatpush2.xpose.msra.mxu0 0.0
        %1164 = vmatprep.subr.mxu0 0.0
        %1165 = vmatpush2.xpose.msra.mxu0 0.0
        %1166 = vmatprep.subr.mxu0 0.0
        %1167 = vmatpush2.xpose.msra.mxu0 0.0
        %1168 = vmatprep.subr.mxu0 0.0
        %1169 = vmatpush2.xpose.msra.mxu0 0.0
        %1170 = vmatprep.subr.mxu0 0.0
        %1171 = vmatpush2.xpose.msra.mxu0 0.0
        %1172 = vmatprep.subr.mxu0 0.0
        %1173 = vmatpush2.xpose.msra.mxu0 0.0
        %1174 = vmatprep.subr.mxu0 0.0
        %1175 = vmatpush2.xpose.msra.mxu0 0.0
        %1176 = vmatprep.subr.mxu0 0.0
        %1177 = vmatpush2.xpose.msra.mxu0 0.0
        %1178 = vmatprep.subr.mxu0 0.0
        %1179 = vmatpush2.xpose.msra.mxu0 0.0
        %1180 = vmatprep.subr.mxu0 0.0
        %1181 = vmatpush2.xpose.msra.mxu0 0.0
        %1182 = vmatprep.subr.mxu0 0.0
        %1183 = vmatpush2.xpose.msra.mxu0 0.0
        %1184 = vmatprep.subr.mxu0 0.0
        %1185 = vmatpush2.xpose.msra.mxu0 0.0
        %1186 = vmatprep.subr.mxu0 0.0
        %1187 = vmatpush2.xpose.msra.mxu0 0.0
        %1188 = vmatprep.subr.mxu0 0.0
        %1189 = vmatpush2.xpose.msra.mxu0 0.0
        %1190 = vmatprep.subr.mxu0 0.0
        %1191 = vmatpush2.xpose.msra.mxu0 0.0
        %1192 = vmatprep.subr.mxu0 0.0
        %1193 = vmatpush2.xpose.msra.mxu0 0.0
        %1194 = vmatprep.mubr.f32.mxu0 0.0
        %1195 = vmatmul.mubr.f32.gmra.mxu0 %v1119
        %v1196 = vpop.f32.mrf.mxu0
        %v1197 = vadd.f32 0.0, %v1196
        %v1198 = vpop.f32.mrf.mxu0
        %1199 = vmatprep.mubr.f32.mxu0 0.0
        %1200 = vmatmul.mubr.f32.gmra.mxu0 %v1122
        %v1201 = vpop.f32.mrf.mxu0
        %v1202 = vadd.f32 0.0, %v1201
        %v1203 = vpop.f32.mrf.mxu0
        %1204 = vdwg.mxu0
        %v1206 = vsel %vm943, %v543, 0
        %v1209 = vsel %vm943, %v544, 0
        %v1212 = vsel %vm943, %v545, 0
        %v1215 = vsel %vm943, %v546, 0
        %1217 = vmatprep.subr.mxu0 0.0
        %1218 = vmatpush1.xpose.msra.mxu0 0.0
        %1219 = vmatprep.subr.mxu0 0.0
        %1220 = vmatpush1.xpose.msra.mxu0 0.0
        %1221 = vmatprep.subr.mxu0 0.0
        %1222 = vmatpush1.xpose.msra.mxu0 0.0
        %1223 = vmatprep.subr.mxu0 0.0
        %1224 = vmatpush1.xpose.msra.mxu0 0.0
        %1225 = vmatprep.subr.mxu0 0.0
        %1226 = vmatpush1.xpose.msra.mxu0 0.0
        %1227 = vmatprep.subr.mxu0 0.0
        %1228 = vmatpush1.xpose.msra.mxu0 0.0
        %1229 = vmatprep.subr.mxu0 0.0
        %1230 = vmatpush1.xpose.msra.mxu0 0.0
        %1231 = vmatprep.subr.mxu0 0.0
        %1232 = vmatpush1.xpose.msra.mxu0 0.0
        %1233 = vmatprep.subr.mxu0 0.0
        %1234 = vmatpush1.xpose.msra.mxu0 0.0
        %1235 = vmatprep.subr.mxu0 0.0
        %1236 = vmatpush1.xpose.msra.mxu0 0.0
        %1237 = vmatprep.subr.mxu0 0.0
        %1238 = vmatpush1.xpose.msra.mxu0 0.0
        %1239 = vmatprep.subr.mxu0 0.0
        %1240 = vmatpush1.xpose.msra.mxu0 0.0
        %1241 = vmatprep.subr.mxu0 0.0
        %1242 = vmatpush1.xpose.msra.mxu0 0.0
        %1243 = vmatprep.subr.mxu0 0.0
        %1244 = vmatpush1.xpose.msra.mxu0 0.0
        %1245 = vmatprep.subr.mxu0 0.0
        %1246 = vmatpush1.xpose.msra.mxu0 %v1215
        %1247 = vmatprep.subr.mxu0 0.0
        %1248 = vmatpush1.xpose.msra.mxu0 %v1212
        %1249 = vmatprep.subr.mxu0 0.0
        %1250 = vmatpush2.xpose.msra.mxu0 0.0
        %1251 = vmatprep.subr.mxu0 0.0
        %1252 = vmatpush2.xpose.msra.mxu0 0.0
        %1253 = vmatprep.subr.mxu0 0.0
        %1254 = vmatpush2.xpose.msra.mxu0 0.0
        %1255 = vmatprep.subr.mxu0 0.0
        %1256 = vmatpush2.xpose.msra.mxu0 0.0
        %1257 = vmatprep.subr.mxu0 0.0
        %1258 = vmatpush2.xpose.msra.mxu0 0.0
        %1259 = vmatprep.subr.mxu0 0.0
        %1260 = vmatpush2.xpose.msra.mxu0 0.0
        %1261 = vmatprep.subr.mxu0 0.0
        %1262 = vmatpush2.xpose.msra.mxu0 0.0
        %1263 = vmatprep.subr.mxu0 0.0
        %1264 = vmatpush2.xpose.msra.mxu0 0.0
        %1265 = vmatprep.subr.mxu0 0.0
        %1266 = vmatpush2.xpose.msra.mxu0 0.0
        %1267 = vmatprep.subr.mxu0 0.0
        %1268 = vmatpush2.xpose.msra.mxu0 0.0
        %1269 = vmatprep.subr.mxu0 0.0
        %1270 = vmatpush2.xpose.msra.mxu0 0.0
        %1271 = vmatprep.subr.mxu0 0.0
        %1272 = vmatpush2.xpose.msra.mxu0 0.0
        %1273 = vmatprep.subr.mxu0 0.0
        %1274 = vmatpush2.xpose.msra.mxu0 0.0
        %1275 = vmatprep.subr.mxu0 0.0
        %1276 = vmatpush2.xpose.msra.mxu0 0.0
        %1277 = vmatprep.subr.mxu0 0.0
        %1278 = vmatpush2.xpose.msra.mxu0 0.0
        %1279 = vmatprep.subr.mxu0 0.0
        %1280 = vmatpush2.xpose.msra.mxu0 0.0
        %1281 = vmatprep.mubr.f32.mxu0 0.0
        %1282 = vmatmul.mubr.f32.gmra.mxu0 %v1206
        %v1283 = vpop.f32.mrf.mxu0
        %v1284 = vadd.f32 0.0, %v1283
        %v1285 = vpop.f32.mrf.mxu0
        %1286 = vmatprep.mubr.f32.mxu0 0.0
        %1287 = vmatmul.mubr.f32.gmra.mxu0 %v1209
        %v1288 = vpop.f32.mrf.mxu0
        %v1289 = vadd.f32 0.0, %v1288
        %v1290 = vpop.f32.mrf.mxu0
        %1291 = vdwg.mxu0
        %v1293 = vsel %vm943, %v575, 0
        %v1296 = vsel %vm943, %v576, 0
        %v1299 = vsel %vm943, %v577, 0
        %v1302 = vsel %vm943, %v578, 0
        %1304 = vmatprep.subr.mxu0 0.0
        %1305 = vmatpush1.xpose.msra.mxu0 0.0
        %1306 = vmatprep.subr.mxu0 0.0
        %1307 = vmatpush1.xpose.msra.mxu0 0.0
        %1308 = vmatprep.subr.mxu0 0.0
        %1309 = vmatpush1.xpose.msra.mxu0 0.0
        %1310 = vmatprep.subr.mxu0 0.0
        %1311 = vmatpush1.xpose.msra.mxu0 0.0
        %1312 = vmatprep.subr.mxu0 0.0
        %1313 = vmatpush1.xpose.msra.mxu0 0.0
        %1314 = vmatprep.subr.mxu0 0.0
        %1315 = vmatpush1.xpose.msra.mxu0 0.0
        %1316 = vmatprep.subr.mxu0 0.0
        %1317 = vmatpush1.xpose.msra.mxu0 0.0
        %1318 = vmatprep.subr.mxu0 0.0
        %1319 = vmatpush1.xpose.msra.mxu0 0.0
        %1320 = vmatprep.subr.mxu0 0.0
        %1321 = vmatpush1.xpose.msra.mxu0 0.0
        %1322 = vmatprep.subr.mxu0 0.0
        %1323 = vmatpush1.xpose.msra.mxu0 0.0
        %1324 = vmatprep.subr.mxu0 0.0
        %1325 = vmatpush1.xpose.msra.mxu0 0.0
        %1326 = vmatprep.subr.mxu0 0.0
        %1327 = vmatpush1.xpose.msra.mxu0 0.0
        %1328 = vmatprep.subr.mxu0 0.0
        %1329 = vmatpush1.xpose.msra.mxu0 0.0
        %1330 = vmatprep.subr.mxu0 0.0
        %1331 = vmatpush1.xpose.msra.mxu0 0.0
        %1332 = vmatprep.subr.mxu0 0.0
        %1333 = vmatpush1.xpose.msra.mxu0 %v1302
        %1334 = vmatprep.subr.mxu0 0.0
        %1335 = vmatpush1.xpose.msra.mxu0 %v1299
        %1336 = vmatprep.subr.mxu0 0.0
        %1337 = vmatpush2.xpose.msra.mxu0 0.0
        %1338 = vmatprep.subr.mxu0 0.0
        %1339 = vmatpush2.xpose.msra.mxu0 0.0
        %1340 = vmatprep.subr.mxu0 0.0
        %1341 = vmatpush2.xpose.msra.mxu0 0.0
        %1342 = vmatprep.subr.mxu0 0.0
        %1343 = vmatpush2.xpose.msra.mxu0 0.0
        %1344 = vmatprep.subr.mxu0 0.0
        %1345 = vmatpush2.xpose.msra.mxu0 0.0
        %1346 = vmatprep.subr.mxu0 0.0
        %1347 = vmatpush2.xpose.msra.mxu0 0.0
        %1348 = vmatprep.subr.mxu0 0.0
        %1349 = vmatpush2.xpose.msra.mxu0 0.0
        %1350 = vmatprep.subr.mxu0 0.0
        %1351 = vmatpush2.xpose.msra.mxu0 0.0
        %1352 = vmatprep.subr.mxu0 0.0
        %1353 = vmatpush2.xpose.msra.mxu0 0.0
        %1354 = vmatprep.subr.mxu0 0.0
        %1355 = vmatpush2.xpose.msra.mxu0 0.0
        %1356 = vmatprep.subr.mxu0 0.0
        %1357 = vmatpush2.xpose.msra.mxu0 0.0
        %1358 = vmatprep.subr.mxu0 0.0
        %1359 = vmatpush2.xpose.msra.mxu0 0.0
        %1360 = vmatprep.subr.mxu0 0.0
        %1361 = vmatpush2.xpose.msra.mxu0 0.0
        %1362 = vmatprep.subr.mxu0 0.0
        %1363 = vmatpush2.xpose.msra.mxu0 0.0
        %1364 = vmatprep.subr.mxu0 0.0
        %1365 = vmatpush2.xpose.msra.mxu0 0.0
        %1366 = vmatprep.subr.mxu0 0.0
        %1367 = vmatpush2.xpose.msra.mxu0 0.0
        %1368 = vmatprep.mubr.f32.mxu0 0.0
        %1369 = vmatmul.mubr.f32.gmra.mxu0 %v1293
        %v1370 = vpop.f32.mrf.mxu0
        %v1371 = vadd.f32 0.0, %v1370
        %v1372 = vpop.f32.mrf.mxu0
        %1373 = vmatprep.mubr.f32.mxu0 0.0
        %1374 = vmatmul.mubr.f32.gmra.mxu0 %v1296
        %v1375 = vpop.f32.mrf.mxu0
        %v1376 = vadd.f32 0.0, %v1375
        %v1377 = vpop.f32.mrf.mxu0
        %1378 = vdwg.mxu0
        %v1380 = vsel %vm943, %v607, 0
        %v1383 = vsel %vm943, %v608, 0
        %v1386 = vsel %vm943, %v609, 0
        %v1389 = vsel %vm943, %v610, 0
        %1391 = vmatprep.subr.mxu0 0.0
        %1392 = vmatpush1.xpose.msra.mxu0 0.0
        %1393 = vmatprep.subr.mxu0 0.0
        %1394 = vmatpush1.xpose.msra.mxu0 0.0
        %1395 = vmatprep.subr.mxu0 0.0
        %1396 = vmatpush1.xpose.msra.mxu0 0.0
        %1397 = vmatprep.subr.mxu0 0.0
        %1398 = vmatpush1.xpose.msra.mxu0 0.0
        %1399 = vmatprep.subr.mxu0 0.0
        %1400 = vmatpush1.xpose.msra.mxu0 0.0
        %1401 = vmatprep.subr.mxu0 0.0
        %1402 = vmatpush1.xpose.msra.mxu0 0.0
        %1403 = vmatprep.subr.mxu0 0.0
        %1404 = vmatpush1.xpose.msra.mxu0 0.0
        %1405 = vmatprep.subr.mxu0 0.0
        %1406 = vmatpush1.xpose.msra.mxu0 0.0
        %1407 = vmatprep.subr.mxu0 0.0
        %1408 = vmatpush1.xpose.msra.mxu0 0.0
        %1409 = vmatprep.subr.mxu0 0.0
        %1410 = vmatpush1.xpose.msra.mxu0 0.0
        %1411 = vmatprep.subr.mxu0 0.0
        %1412 = vmatpush1.xpose.msra.mxu0 0.0
        %1413 = vmatprep.subr.mxu0 0.0
        %1414 = vmatpush1.xpose.msra.mxu0 0.0
        %1415 = vmatprep.subr.mxu0 0.0
        %1416 = vmatpush1.xpose.msra.mxu0 0.0
        %1417 = vmatprep.subr.mxu0 0.0
        %1418 = vmatpush1.xpose.msra.mxu0 0.0
        %1419 = vmatprep.subr.mxu0 0.0
        %1420 = vmatpush1.xpose.msra.mxu0 %v1389
        %1421 = vmatprep.subr.mxu0 0.0
        %1422 = vmatpush1.xpose.msra.mxu0 %v1386
        %1423 = vmatprep.subr.mxu0 0.0
        %1424 = vmatpush2.xpose.msra.mxu0 0.0
        %1425 = vmatprep.subr.mxu0 0.0
        %1426 = vmatpush2.xpose.msra.mxu0 0.0
        %1427 = vmatprep.subr.mxu0 0.0
        %1428 = vmatpush2.xpose.msra.mxu0 0.0
        %1429 = vmatprep.subr.mxu0 0.0
        %1430 = vmatpush2.xpose.msra.mxu0 0.0
        %1431 = vmatprep.subr.mxu0 0.0
        %1432 = vmatpush2.xpose.msra.mxu0 0.0
        %1433 = vmatprep.subr.mxu0 0.0
        %1434 = vmatpush2.xpose.msra.mxu0 0.0
        %1435 = vmatprep.subr.mxu0 0.0
        %1436 = vmatpush2.xpose.msra.mxu0 0.0
        %1437 = vmatprep.subr.mxu0 0.0
        %1438 = vmatpush2.xpose.msra.mxu0 0.0
        %1439 = vmatprep.subr.mxu0 0.0
        %1440 = vmatpush2.xpose.msra.mxu0 0.0
        %1441 = vmatprep.subr.mxu0 0.0
        %1442 = vmatpush2.xpose.msra.mxu0 0.0
        %1443 = vmatprep.subr.mxu0 0.0
        %1444 = vmatpush2.xpose.msra.mxu0 0.0
        %1445 = vmatprep.subr.mxu0 0.0
        %1446 = vmatpush2.xpose.msra.mxu0 0.0
        %1447 = vmatprep.subr.mxu0 0.0
        %1448 = vmatpush2.xpose.msra.mxu0 0.0
        %1449 = vmatprep.subr.mxu0 0.0
        %1450 = vmatpush2.xpose.msra.mxu0 0.0
        %1451 = vmatprep.subr.mxu0 0.0
        %1452 = vmatpush2.xpose.msra.mxu0 0.0
        %1453 = vmatprep.subr.mxu0 0.0
        %1454 = vmatpush2.xpose.msra.mxu0 0.0
        %1455 = vmatprep.mubr.f32.mxu0 0.0
        %1456 = vmatmul.mubr.f32.gmra.mxu0 %v1380
        %v1457 = vpop.f32.mrf.mxu0
        %v1458 = vadd.f32 0.0, %v1457
        %v1459 = vpop.f32.mrf.mxu0
        %1460 = vmatprep.mubr.f32.mxu0 0.0
        %1461 = vmatmul.mubr.f32.gmra.mxu0 %v1383
        %v1462 = vpop.f32.mrf.mxu0
        %v1463 = vadd.f32 0.0, %v1462
        %v1464 = vpop.f32.mrf.mxu0
        %1465 = vdwg.mxu0
        %v1467 = vsel %vm943, %v639, 0
        %v1470 = vsel %vm943, %v640, 0
        %v1473 = vsel %vm943, %v641, 0
        %v1476 = vsel %vm943, %v642, 0
        %1478 = vmatprep.subr.mxu0 0.0
        %1479 = vmatpush1.xpose.msra.mxu0 0.0
        %1480 = vmatprep.subr.mxu0 0.0
        %1481 = vmatpush1.xpose.msra.mxu0 0.0
        %1482 = vmatprep.subr.mxu0 0.0
        %1483 = vmatpush1.xpose.msra.mxu0 0.0
        %1484 = vmatprep.subr.mxu0 0.0
        %1485 = vmatpush1.xpose.msra.mxu0 0.0
        %1486 = vmatprep.subr.mxu0 0.0
        %1487 = vmatpush1.xpose.msra.mxu0 0.0
        %1488 = vmatprep.subr.mxu0 0.0
        %1489 = vmatpush1.xpose.msra.mxu0 0.0
        %1490 = vmatprep.subr.mxu0 0.0
        %1491 = vmatpush1.xpose.msra.mxu0 0.0
        %1492 = vmatprep.subr.mxu0 0.0
        %1493 = vmatpush1.xpose.msra.mxu0 0.0
        %1494 = vmatprep.subr.mxu0 0.0
        %1495 = vmatpush1.xpose.msra.mxu0 0.0
        %1496 = vmatprep.subr.mxu0 0.0
        %1497 = vmatpush1.xpose.msra.mxu0 0.0
        %1498 = vmatprep.subr.mxu0 0.0
        %1499 = vmatpush1.xpose.msra.mxu0 0.0
        %1500 = vmatprep.subr.mxu0 0.0
        %1501 = vmatpush1.xpose.msra.mxu0 0.0
        %1502 = vmatprep.subr.mxu0 0.0
        %1503 = vmatpush1.xpose.msra.mxu0 0.0
        %1504 = vmatprep.subr.mxu0 0.0
        %1505 = vmatpush1.xpose.msra.mxu0 0.0
        %1506 = vmatprep.subr.mxu0 0.0
        %1507 = vmatpush1.xpose.msra.mxu0 %v1476
        %1508 = vmatprep.subr.mxu0 0.0
        %1509 = vmatpush1.xpose.msra.mxu0 %v1473
        %1510 = vmatprep.subr.mxu0 0.0
        %1511 = vmatpush2.xpose.msra.mxu0 0.0
        %1512 = vmatprep.subr.mxu0 0.0
        %1513 = vmatpush2.xpose.msra.mxu0 0.0
        %1514 = vmatprep.subr.mxu0 0.0
        %1515 = vmatpush2.xpose.msra.mxu0 0.0
        %1516 = vmatprep.subr.mxu0 0.0
        %1517 = vmatpush2.xpose.msra.mxu0 0.0
        %1518 = vmatprep.subr.mxu0 0.0
        %1519 = vmatpush2.xpose.msra.mxu0 0.0
        %1520 = vmatprep.subr.mxu0 0.0
        %1521 = vmatpush2.xpose.msra.mxu0 0.0
        %1522 = vmatprep.subr.mxu0 0.0
        %1523 = vmatpush2.xpose.msra.mxu0 0.0
        %1524 = vmatprep.subr.mxu0 0.0
        %1525 = vmatpush2.xpose.msra.mxu0 0.0
        %1526 = vmatprep.subr.mxu0 0.0
        %1527 = vmatpush2.xpose.msra.mxu0 0.0
        %1528 = vmatprep.subr.mxu0 0.0
        %1529 = vmatpush2.xpose.msra.mxu0 0.0
        %1530 = vmatprep.subr.mxu0 0.0
        %1531 = vmatpush2.xpose.msra.mxu0 0.0
        %1532 = vmatprep.subr.mxu0 0.0
        %1533 = vmatpush2.xpose.msra.mxu0 0.0
        %1534 = vmatprep.subr.mxu0 0.0
        %1535 = vmatpush2.xpose.msra.mxu0 0.0
        %1536 = vmatprep.subr.mxu0 0.0
        %1537 = vmatpush2.xpose.msra.mxu0 0.0
        %1538 = vmatprep.subr.mxu0 0.0
        %1539 = vmatpush2.xpose.msra.mxu0 0.0
        %1540 = vmatprep.subr.mxu0 0.0
        %1541 = vmatpush2.xpose.msra.mxu0 0.0
        %1542 = vmatprep.mubr.f32.mxu0 0.0
        %1543 = vmatmul.mubr.f32.gmra.mxu0 %v1467
        %v1544 = vpop.f32.mrf.mxu0
        %v1545 = vadd.f32 0.0, %v1544
        %v1546 = vpop.f32.mrf.mxu0
        %1547 = vmatprep.mubr.f32.mxu0 0.0
        %1548 = vmatmul.mubr.f32.gmra.mxu0 %v1470
        %v1549 = vpop.f32.mrf.mxu0
        %v1550 = vadd.f32 0.0, %v1549
        %v1551 = vpop.f32.mrf.mxu0
        %1552 = vdwg.mxu0
        %v1554 = vsel %vm943, %v671, 0
        %v1557 = vsel %vm943, %v672, 0
        %v1560 = vsel %vm943, %v673, 0
        %v1563 = vsel %vm943, %v674, 0
        %1565 = vmatprep.subr.mxu0 0.0
        %1566 = vmatpush1.xpose.msra.mxu0 0.0
        %1567 = vmatprep.subr.mxu0 0.0
        %1568 = vmatpush1.xpose.msra.mxu0 0.0
        %1569 = vmatprep.subr.mxu0 0.0
        %1570 = vmatpush1.xpose.msra.mxu0 0.0
        %1571 = vmatprep.subr.mxu0 0.0
        %1572 = vmatpush1.xpose.msra.mxu0 0.0
        %1573 = vmatprep.subr.mxu0 0.0
        %1574 = vmatpush1.xpose.msra.mxu0 0.0
        %1575 = vmatprep.subr.mxu0 0.0
        %1576 = vmatpush1.xpose.msra.mxu0 0.0
        %1577 = vmatprep.subr.mxu0 0.0
        %1578 = vmatpush1.xpose.msra.mxu0 0.0
        %1579 = vmatprep.subr.mxu0 0.0
        %1580 = vmatpush1.xpose.msra.mxu0 0.0
        %1581 = vmatprep.subr.mxu0 0.0
        %1582 = vmatpush1.xpose.msra.mxu0 0.0
        %1583 = vmatprep.subr.mxu0 0.0
        %1584 = vmatpush1.xpose.msra.mxu0 0.0
        %1585 = vmatprep.subr.mxu0 0.0
        %1586 = vmatpush1.xpose.msra.mxu0 0.0
        %1587 = vmatprep.subr.mxu0 0.0
        %1588 = vmatpush1.xpose.msra.mxu0 0.0
        %1589 = vmatprep.subr.mxu0 0.0
        %1590 = vmatpush1.xpose.msra.mxu0 0.0
        %1591 = vmatprep.subr.mxu0 0.0
        %1592 = vmatpush1.xpose.msra.mxu0 0.0
        %1593 = vmatprep.subr.mxu0 0.0
        %1594 = vmatpush1.xpose.msra.mxu0 %v1563
        %1595 = vmatprep.subr.mxu0 0.0
        %1596 = vmatpush1.xpose.msra.mxu0 %v1560
        %1597 = vmatprep.subr.mxu0 0.0
        %1598 = vmatpush2.xpose.msra.mxu0 0.0
        %1599 = vmatprep.subr.mxu0 0.0
        %1600 = vmatpush2.xpose.msra.mxu0 0.0
        %1601 = vmatprep.subr.mxu0 0.0
        %1602 = vmatpush2.xpose.msra.mxu0 0.0
        %1603 = vmatprep.subr.mxu0 0.0
        %1604 = vmatpush2.xpose.msra.mxu0 0.0
        %1605 = vmatprep.subr.mxu0 0.0
        %1606 = vmatpush2.xpose.msra.mxu0 0.0
        %1607 = vmatprep.subr.mxu0 0.0
        %1608 = vmatpush2.xpose.msra.mxu0 0.0
        %1609 = vmatprep.subr.mxu0 0.0
        %1610 = vmatpush2.xpose.msra.mxu0 0.0
        %1611 = vmatprep.subr.mxu0 0.0
        %1612 = vmatpush2.xpose.msra.mxu0 0.0
        %1613 = vmatprep.subr.mxu0 0.0
        %1614 = vmatpush2.xpose.msra.mxu0 0.0
        %1615 = vmatprep.subr.mxu0 0.0
        %1616 = vmatpush2.xpose.msra.mxu0 0.0
        %1617 = vmatprep.subr.mxu0 0.0
        %1618 = vmatpush2.xpose.msra.mxu0 0.0
        %1619 = vmatprep.subr.mxu0 0.0
        %1620 = vmatpush2.xpose.msra.mxu0 0.0
        %1621 = vmatprep.subr.mxu0 0.0
        %1622 = vmatpush2.xpose.msra.mxu0 0.0
        %1623 = vmatprep.subr.mxu0 0.0
        %1624 = vmatpush2.xpose.msra.mxu0 0.0
        %1625 = vmatprep.subr.mxu0 0.0
        %1626 = vmatpush2.xpose.msra.mxu0 0.0
        %1627 = vmatprep.subr.mxu0 0.0
        %1628 = vmatpush2.xpose.msra.mxu0 0.0
        %1629 = vmatprep.mubr.f32.mxu0 0.0
        %1630 = vmatmul.mubr.f32.gmra.mxu0 %v1554
        %v1631 = vpop.f32.mrf.mxu0
        %v1632 = vadd.f32 0.0, %v1631
        %v1633 = vpop.f32.mrf.mxu0
        %1634 = vmatprep.mubr.f32.mxu0 0.0
        %1635 = vmatmul.mubr.f32.gmra.mxu0 %v1557
        %v1636 = vpop.f32.mrf.mxu0
        %v1637 = vadd.f32 0.0, %v1636
        %v1638 = vpop.f32.mrf.mxu0
        %1639 = vdwg.mxu0
        %v1641 = vsel %vm943, %v703, 0
        %v1644 = vsel %vm943, %v704, 0
        %v1647 = vsel %vm943, %v705, 0
        %v1650 = vsel %vm943, %v706, 0
        %1652 = vmatprep.subr.mxu0 0.0
        %1653 = vmatpush1.xpose.msra.mxu0 0.0
        %1654 = vmatprep.subr.mxu0 0.0
        %1655 = vmatpush1.xpose.msra.mxu0 0.0
        %1656 = vmatprep.subr.mxu0 0.0
        %1657 = vmatpush1.xpose.msra.mxu0 0.0
        %1658 = vmatprep.subr.mxu0 0.0
        %1659 = vmatpush1.xpose.msra.mxu0 0.0
        %1660 = vmatprep.subr.mxu0 0.0
        %1661 = vmatpush1.xpose.msra.mxu0 0.0
        %1662 = vmatprep.subr.mxu0 0.0
        %1663 = vmatpush1.xpose.msra.mxu0 0.0
        %1664 = vmatprep.subr.mxu0 0.0
        %1665 = vmatpush1.xpose.msra.mxu0 0.0
        %1666 = vmatprep.subr.mxu0 0.0
        %1667 = vmatpush1.xpose.msra.mxu0 0.0
        %1668 = vmatprep.subr.mxu0 0.0
        %1669 = vmatpush1.xpose.msra.mxu0 0.0
        %1670 = vmatprep.subr.mxu0 0.0
        %1671 = vmatpush1.xpose.msra.mxu0 0.0
        %1672 = vmatprep.subr.mxu0 0.0
        %1673 = vmatpush1.xpose.msra.mxu0 0.0
        %1674 = vmatprep.subr.mxu0 0.0
        %1675 = vmatpush1.xpose.msra.mxu0 0.0
        %1676 = vmatprep.subr.mxu0 0.0
        %1677 = vmatpush1.xpose.msra.mxu0 0.0
        %1678 = vmatprep.subr.mxu0 0.0
        %1679 = vmatpush1.xpose.msra.mxu0 0.0
        %1680 = vmatprep.subr.mxu0 0.0
        %1681 = vmatpush1.xpose.msra.mxu0 %v1650
        %1682 = vmatprep.subr.mxu0 0.0
        %1683 = vmatpush1.xpose.msra.mxu0 %v1647
        %1684 = vmatprep.subr.mxu0 0.0
        %1685 = vmatpush2.xpose.msra.mxu0 0.0
        %1686 = vmatprep.subr.mxu0 0.0
        %1687 = vmatpush2.xpose.msra.mxu0 0.0
        %1688 = vmatprep.subr.mxu0 0.0
        %1689 = vmatpush2.xpose.msra.mxu0 0.0
        %1690 = vmatprep.subr.mxu0 0.0
        %1691 = vmatpush2.xpose.msra.mxu0 0.0
        %1692 = vmatprep.subr.mxu0 0.0
        %1693 = vmatpush2.xpose.msra.mxu0 0.0
        %1694 = vmatprep.subr.mxu0 0.0
        %1695 = vmatpush2.xpose.msra.mxu0 0.0
        %1696 = vmatprep.subr.mxu0 0.0
        %1697 = vmatpush2.xpose.msra.mxu0 0.0
        %1698 = vmatprep.subr.mxu0 0.0
        %1699 = vmatpush2.xpose.msra.mxu0 0.0
        %1700 = vmatprep.subr.mxu0 0.0
        %1701 = vmatpush2.xpose.msra.mxu0 0.0
        %1702 = vmatprep.subr.mxu0 0.0
        %1703 = vmatpush2.xpose.msra.mxu0 0.0
        %1704 = vmatprep.subr.mxu0 0.0
        %1705 = vmatpush2.xpose.msra.mxu0 0.0
        %1706 = vmatprep.subr.mxu0 0.0
        %1707 = vmatpush2.xpose.msra.mxu0 0.0
        %1708 = vmatprep.subr.mxu0 0.0
        %1709 = vmatpush2.xpose.msra.mxu0 0.0
        %1710 = vmatprep.subr.mxu0 0.0
        %1711 = vmatpush2.xpose.msra.mxu0 0.0
        %1712 = vmatprep.subr.mxu0 0.0
        %1713 = vmatpush2.xpose.msra.mxu0 0.0
        %1714 = vmatprep.subr.mxu0 0.0
        %1715 = vmatpush2.xpose.msra.mxu0 0.0
        %1716 = vmatprep.mubr.f32.mxu0 0.0
        %1717 = vmatmul.mubr.f32.gmra.mxu0 %v1641
        %v1718 = vpop.f32.mrf.mxu0
        %v1719 = vadd.f32 0.0, %v1718
        %v1720 = vpop.f32.mrf.mxu0
        %1721 = vmatprep.mubr.f32.mxu0 0.0
        %1722 = vmatmul.mubr.f32.gmra.mxu0 %v1644
        %v1723 = vpop.f32.mrf.mxu0
        %v1724 = vadd.f32 0.0, %v1723
        %v1725 = vpop.f32.mrf.mxu0
        %1726 = vdwg.mxu0
        %v1728 = vsel %vm943, %v735, 0
        %v1731 = vsel %vm943, %v736, 0
        %v1734 = vsel %vm943, %v737, 0
        %v1737 = vsel %vm943, %v738, 0
        %1739 = vmatprep.subr.mxu0 0.0
        %1740 = vmatpush1.xpose.msra.mxu0 0.0
        %1741 = vmatprep.subr.mxu0 0.0
        %1742 = vmatpush1.xpose.msra.mxu0 0.0
        %1743 = vmatprep.subr.mxu0 0.0
        %1744 = vmatpush1.xpose.msra.mxu0 0.0
        %1745 = vmatprep.subr.mxu0 0.0
        %1746 = vmatpush1.xpose.msra.mxu0 0.0
        %1747 = vmatprep.subr.mxu0 0.0
        %1748 = vmatpush1.xpose.msra.mxu0 0.0
        %1749 = vmatprep.subr.mxu0 0.0
        %1750 = vmatpush1.xpose.msra.mxu0 0.0
        %1751 = vmatprep.subr.mxu0 0.0
        %1752 = vmatpush1.xpose.msra.mxu0 0.0
        %1753 = vmatprep.subr.mxu0 0.0
        %1754 = vmatpush1.xpose.msra.mxu0 0.0
        %1755 = vmatprep.subr.mxu0 0.0
        %1756 = vmatpush1.xpose.msra.mxu0 0.0
        %1757 = vmatprep.subr.mxu0 0.0
        %1758 = vmatpush1.xpose.msra.mxu0 0.0
        %1759 = vmatprep.subr.mxu0 0.0
        %1760 = vmatpush1.xpose.msra.mxu0 0.0
        %1761 = vmatprep.subr.mxu0 0.0
        %1762 = vmatpush1.xpose.msra.mxu0 0.0
        %1763 = vmatprep.subr.mxu0 0.0
        %1764 = vmatpush1.xpose.msra.mxu0 0.0
        %1765 = vmatprep.subr.mxu0 0.0
        %1766 = vmatpush1.xpose.msra.mxu0 0.0
        %1767 = vmatprep.subr.mxu0 0.0
        %1768 = vmatpush1.xpose.msra.mxu0 %v1737
        %1769 = vmatprep.subr.mxu0 0.0
        %1770 = vmatpush1.xpose.msra.mxu0 %v1734
        %1771 = vmatprep.subr.mxu0 0.0
        %1772 = vmatpush2.xpose.msra.mxu0 0.0
        %1773 = vmatprep.subr.mxu0 0.0
        %1774 = vmatpush2.xpose.msra.mxu0 0.0
        %1775 = vmatprep.subr.mxu0 0.0
        %1776 = vmatpush2.xpose.msra.mxu0 0.0
        %1777 = vmatprep.subr.mxu0 0.0
        %1778 = vmatpush2.xpose.msra.mxu0 0.0
        %1779 = vmatprep.subr.mxu0 0.0
        %1780 = vmatpush2.xpose.msra.mxu0 0.0
        %1781 = vmatprep.subr.mxu0 0.0
        %1782 = vmatpush2.xpose.msra.mxu0 0.0
        %1783 = vmatprep.subr.mxu0 0.0
        %1784 = vmatpush2.xpose.msra.mxu0 0.0
        %1785 = vmatprep.subr.mxu0 0.0
        %1786 = vmatpush2.xpose.msra.mxu0 0.0
        %1787 = vmatprep.subr.mxu0 0.0
        %1788 = vmatpush2.xpose.msra.mxu0 0.0
        %1789 = vmatprep.subr.mxu0 0.0
        %1790 = vmatpush2.xpose.msra.mxu0 0.0
        %1791 = vmatprep.subr.mxu0 0.0
        %1792 = vmatpush2.xpose.msra.mxu0 0.0
        %1793 = vmatprep.subr.mxu0 0.0
        %1794 = vmatpush2.xpose.msra.mxu0 0.0
        %1795 = vmatprep.subr.mxu0 0.0
        %1796 = vmatpush2.xpose.msra.mxu0 0.0
        %1797 = vmatprep.subr.mxu0 0.0
        %1798 = vmatpush2.xpose.msra.mxu0 0.0
        %1799 = vmatprep.subr.mxu0 0.0
        %1800 = vmatpush2.xpose.msra.mxu0 0.0
        %1801 = vmatprep.subr.mxu0 0.0
        %1802 = vmatpush2.xpose.msra.mxu0 0.0
        %1803 = vmatprep.mubr.f32.mxu0 0.0
        %1804 = vmatmul.mubr.f32.gmra.mxu0 %v1728
        %v1805 = vpop.f32.mrf.mxu0
        %v1806 = vadd.f32 0.0, %v1805
        %v1807 = vpop.f32.mrf.mxu0
        %1808 = vmatprep.mubr.f32.mxu0 0.0
        %1809 = vmatmul.mubr.f32.gmra.mxu0 %v1731
        %v1810 = vpop.f32.mrf.mxu0
        %v1811 = vadd.f32 0.0, %v1810
        %v1812 = vpop.f32.mrf.mxu0
        %1813 = vdwg.mxu0
        %v1815 = vsel %vm943, %v767, 0
        %v1818 = vsel %vm943, %v768, 0
        %v1821 = vsel %vm943, %v769, 0
        %v1824 = vsel %vm943, %v770, 0
        %1826 = vmatprep.subr.mxu0 0.0
        %1827 = vmatpush1.xpose.msra.mxu0 0.0
        %1828 = vmatprep.subr.mxu0 0.0
        %1829 = vmatpush1.xpose.msra.mxu0 0.0
        %1830 = vmatprep.subr.mxu0 0.0
        %1831 = vmatpush1.xpose.msra.mxu0 0.0
        %1832 = vmatprep.subr.mxu0 0.0
        %1833 = vmatpush1.xpose.msra.mxu0 0.0
        %1834 = vmatprep.subr.mxu0 0.0
        %1835 = vmatpush1.xpose.msra.mxu0 0.0
        %1836 = vmatprep.subr.mxu0 0.0
        %1837 = vmatpush1.xpose.msra.mxu0 0.0
        %1838 = vmatprep.subr.mxu0 0.0
        %1839 = vmatpush1.xpose.msra.mxu0 0.0
        %1840 = vmatprep.subr.mxu0 0.0
        %1841 = vmatpush1.xpose.msra.mxu0 0.0
        %1842 = vmatprep.subr.mxu0 0.0
        %1843 = vmatpush1.xpose.msra.mxu0 0.0
        %1844 = vmatprep.subr.mxu0 0.0
        %1845 = vmatpush1.xpose.msra.mxu0 0.0
        %1846 = vmatprep.subr.mxu0 0.0
        %1847 = vmatpush1.xpose.msra.mxu0 0.0
        %1848 = vmatprep.subr.mxu0 0.0
        %1849 = vmatpush1.xpose.msra.mxu0 0.0
        %1850 = vmatprep.subr.mxu0 0.0
        %1851 = vmatpush1.xpose.msra.mxu0 0.0
        %1852 = vmatprep.subr.mxu0 0.0
        %1853 = vmatpush1.xpose.msra.mxu0 0.0
        %1854 = vmatprep.subr.mxu0 0.0
        %1855 = vmatpush1.xpose.msra.mxu0 %v1824
        %1856 = vmatprep.subr.mxu0 0.0
        %1857 = vmatpush1.xpose.msra.mxu0 %v1821
        %1858 = vmatprep.subr.mxu0 0.0
        %1859 = vmatpush2.xpose.msra.mxu0 0.0
        %1860 = vmatprep.subr.mxu0 0.0
        %1861 = vmatpush2.xpose.msra.mxu0 0.0
        %1862 = vmatprep.subr.mxu0 0.0
        %1863 = vmatpush2.xpose.msra.mxu0 0.0
        %1864 = vmatprep.subr.mxu0 0.0
        %1865 = vmatpush2.xpose.msra.mxu0 0.0
        %1866 = vmatprep.subr.mxu0 0.0
        %1867 = vmatpush2.xpose.msra.mxu0 0.0
        %1868 = vmatprep.subr.mxu0 0.0
        %1869 = vmatpush2.xpose.msra.mxu0 0.0
        %1870 = vmatprep.subr.mxu0 0.0
        %1871 = vmatpush2.xpose.msra.mxu0 0.0
        %1872 = vmatprep.subr.mxu0 0.0
        %1873 = vmatpush2.xpose.msra.mxu0 0.0
        %1874 = vmatprep.subr.mxu0 0.0
        %1875 = vmatpush2.xpose.msra.mxu0 0.0
        %1876 = vmatprep.subr.mxu0 0.0
        %1877 = vmatpush2.xpose.msra.mxu0 0.0
        %1878 = vmatprep.subr.mxu0 0.0
        %1879 = vmatpush2.xpose.msra.mxu0 0.0
        %1880 = vmatprep.subr.mxu0 0.0
        %1881 = vmatpush2.xpose.msra.mxu0 0.0
        %1882 = vmatprep.subr.mxu0 0.0
        %1883 = vmatpush2.xpose.msra.mxu0 0.0
        %1884 = vmatprep.subr.mxu0 0.0
        %1885 = vmatpush2.xpose.msra.mxu0 0.0
        %1886 = vmatprep.subr.mxu0 0.0
        %1887 = vmatpush2.xpose.msra.mxu0 0.0
        %1888 = vmatprep.subr.mxu0 0.0
        %1889 = vmatpush2.xpose.msra.mxu0 0.0
        %1890 = vmatprep.mubr.f32.mxu0 0.0
        %1891 = vmatmul.mubr.f32.gmra.mxu0 %v1815
        %v1892 = vpop.f32.mrf.mxu0
        %v1893 = vadd.f32 0.0, %v1892
        %v1894 = vpop.f32.mrf.mxu0
        %1895 = vmatprep.mubr.f32.mxu0 0.0
        %1896 = vmatmul.mubr.f32.gmra.mxu0 %v1818
        %v1897 = vpop.f32.mrf.mxu0
        %v1898 = vadd.f32 0.0, %v1897
        %v1899 = vpop.f32.mrf.mxu0
        %1900 = vdwg.mxu0
        %v1902 = vsel %vm943, %v799, 0
        %v1905 = vsel %vm943, %v800, 0
        %v1908 = vsel %vm943, %v801, 0
        %v1911 = vsel %vm943, %v802, 0
        %1913 = vmatprep.subr.mxu0 0.0
        %1914 = vmatpush1.xpose.msra.mxu0 0.0
        %1915 = vmatprep.subr.mxu0 0.0
        %1916 = vmatpush1.xpose.msra.mxu0 0.0
        %1917 = vmatprep.subr.mxu0 0.0
        %1918 = vmatpush1.xpose.msra.mxu0 0.0
        %1919 = vmatprep.subr.mxu0 0.0
        %1920 = vmatpush1.xpose.msra.mxu0 0.0
        %1921 = vmatprep.subr.mxu0 0.0
        %1922 = vmatpush1.xpose.msra.mxu0 0.0
        %1923 = vmatprep.subr.mxu0 0.0
        %1924 = vmatpush1.xpose.msra.mxu0 0.0
        %1925 = vmatprep.subr.mxu0 0.0
        %1926 = vmatpush1.xpose.msra.mxu0 0.0
        %1927 = vmatprep.subr.mxu0 0.0
        %1928 = vmatpush1.xpose.msra.mxu0 0.0
        %1929 = vmatprep.subr.mxu0 0.0
        %1930 = vmatpush1.xpose.msra.mxu0 0.0
        %1931 = vmatprep.subr.mxu0 0.0
        %1932 = vmatpush1.xpose.msra.mxu0 0.0
        %1933 = vmatprep.subr.mxu0 0.0
        %1934 = vmatpush1.xpose.msra.mxu0 0.0
        %1935 = vmatprep.subr.mxu0 0.0
        %1936 = vmatpush1.xpose.msra.mxu0 0.0
        %1937 = vmatprep.subr.mxu0 0.0
        %1938 = vmatpush1.xpose.msra.mxu0 0.0
        %1939 = vmatprep.subr.mxu0 0.0
        %1940 = vmatpush1.xpose.msra.mxu0 0.0
        %1941 = vmatprep.subr.mxu0 0.0
        %1942 = vmatpush1.xpose.msra.mxu0 %v1911
        %1943 = vmatprep.subr.mxu0 0.0
        %1944 = vmatpush1.xpose.msra.mxu0 %v1908
        %1945 = vmatprep.subr.mxu0 0.0
        %1946 = vmatpush2.xpose.msra.mxu0 0.0
        %1947 = vmatprep.subr.mxu0 0.0
        %1948 = vmatpush2.xpose.msra.mxu0 0.0
        %1949 = vmatprep.subr.mxu0 0.0
        %1950 = vmatpush2.xpose.msra.mxu0 0.0
        %1951 = vmatprep.subr.mxu0 0.0
        %1952 = vmatpush2.xpose.msra.mxu0 0.0
        %1953 = vmatprep.subr.mxu0 0.0
        %1954 = vmatpush2.xpose.msra.mxu0 0.0
        %1955 = vmatprep.subr.mxu0 0.0
        %1956 = vmatpush2.xpose.msra.mxu0 0.0
        %1957 = vmatprep.subr.mxu0 0.0
        %1958 = vmatpush2.xpose.msra.mxu0 0.0
        %1959 = vmatprep.subr.mxu0 0.0
        %1960 = vmatpush2.xpose.msra.mxu0 0.0
        %1961 = vmatprep.subr.mxu0 0.0
        %1962 = vmatpush2.xpose.msra.mxu0 0.0
        %1963 = vmatprep.subr.mxu0 0.0
        %1964 = vmatpush2.xpose.msra.mxu0 0.0
        %1965 = vmatprep.subr.mxu0 0.0
        %1966 = vmatpush2.xpose.msra.mxu0 0.0
        %1967 = vmatprep.subr.mxu0 0.0
        %1968 = vmatpush2.xpose.msra.mxu0 0.0
        %1969 = vmatprep.subr.mxu0 0.0
        %1970 = vmatpush2.xpose.msra.mxu0 0.0
        %1971 = vmatprep.subr.mxu0 0.0
        %1972 = vmatpush2.xpose.msra.mxu0 0.0
        %1973 = vmatprep.subr.mxu0 0.0
        %1974 = vmatpush2.xpose.msra.mxu0 0.0
        %1975 = vmatprep.subr.mxu0 0.0
        %1976 = vmatpush2.xpose.msra.mxu0 0.0
        %1977 = vmatprep.mubr.f32.mxu0 0.0
        %1978 = vmatmul.mubr.f32.gmra.mxu0 %v1902
        %v1979 = vpop.f32.mrf.mxu0
        %v1980 = vadd.f32 0.0, %v1979
        %v1981 = vpop.f32.mrf.mxu0
        %1982 = vmatprep.mubr.f32.mxu0 0.0
        %1983 = vmatmul.mubr.f32.gmra.mxu0 %v1905
        %v1984 = vpop.f32.mrf.mxu0
        %v1985 = vadd.f32 0.0, %v1984
        %v1986 = vpop.f32.mrf.mxu0
        %1987 = vdwg.mxu0
        %v1989 = vsel %vm943, %v831, 0
        %v1992 = vsel %vm943, %v832, 0
        %v1995 = vsel %vm943, %v833, 0
        %v1998 = vsel %vm943, %v834, 0
        %2000 = vmatprep.subr.mxu0 0.0
        %2001 = vmatpush1.xpose.msra.mxu0 0.0
        %2002 = vmatprep.subr.mxu0 0.0
        %2003 = vmatpush1.xpose.msra.mxu0 0.0
        %2004 = vmatprep.subr.mxu0 0.0
        %2005 = vmatpush1.xpose.msra.mxu0 0.0
        %2006 = vmatprep.subr.mxu0 0.0
        %2007 = vmatpush1.xpose.msra.mxu0 0.0
        %2008 = vmatprep.subr.mxu0 0.0
        %2009 = vmatpush1.xpose.msra.mxu0 0.0
        %2010 = vmatprep.subr.mxu0 0.0
        %2011 = vmatpush1.xpose.msra.mxu0 0.0
        %2012 = vmatprep.subr.mxu0 0.0
        %2013 = vmatpush1.xpose.msra.mxu0 0.0
        %2014 = vmatprep.subr.mxu0 0.0
        %2015 = vmatpush1.xpose.msra.mxu0 0.0
        %2016 = vmatprep.subr.mxu0 0.0
        %2017 = vmatpush1.xpose.msra.mxu0 0.0
        %2018 = vmatprep.subr.mxu0 0.0
        %2019 = vmatpush1.xpose.msra.mxu0 0.0
        %2020 = vmatprep.subr.mxu0 0.0
        %2021 = vmatpush1.xpose.msra.mxu0 0.0
        %2022 = vmatprep.subr.mxu0 0.0
        %2023 = vmatpush1.xpose.msra.mxu0 0.0
        %2024 = vmatprep.subr.mxu0 0.0
        %2025 = vmatpush1.xpose.msra.mxu0 0.0
        %2026 = vmatprep.subr.mxu0 0.0
        %2027 = vmatpush1.xpose.msra.mxu0 0.0
        %2028 = vmatprep.subr.mxu0 0.0
        %2029 = vmatpush1.xpose.msra.mxu0 %v1998
        %2030 = vmatprep.subr.mxu0 0.0
        %2031 = vmatpush1.xpose.msra.mxu0 %v1995
        %2032 = vmatprep.subr.mxu0 0.0
        %2033 = vmatpush2.xpose.msra.mxu0 0.0
        %2034 = vmatprep.subr.mxu0 0.0
        %2035 = vmatpush2.xpose.msra.mxu0 0.0
        %2036 = vmatprep.subr.mxu0 0.0
        %2037 = vmatpush2.xpose.msra.mxu0 0.0
        %2038 = vmatprep.subr.mxu0 0.0
        %2039 = vmatpush2.xpose.msra.mxu0 0.0
        %2040 = vmatprep.subr.mxu0 0.0
        %2041 = vmatpush2.xpose.msra.mxu0 0.0
        %2042 = vmatprep.subr.mxu0 0.0
        %2043 = vmatpush2.xpose.msra.mxu0 0.0
        %2044 = vmatprep.subr.mxu0 0.0
        %2045 = vmatpush2.xpose.msra.mxu0 0.0
        %2046 = vmatprep.subr.mxu0 0.0
        %2047 = vmatpush2.xpose.msra.mxu0 0.0
        %2048 = vmatprep.subr.mxu0 0.0
        %2049 = vmatpush2.xpose.msra.mxu0 0.0
        %2050 = vmatprep.subr.mxu0 0.0
        %2051 = vmatpush2.xpose.msra.mxu0 0.0
        %2052 = vmatprep.subr.mxu0 0.0
        %2053 = vmatpush2.xpose.msra.mxu0 0.0
        %2054 = vmatprep.subr.mxu0 0.0
        %2055 = vmatpush2.xpose.msra.mxu0 0.0
        %2056 = vmatprep.subr.mxu0 0.0
        %2057 = vmatpush2.xpose.msra.mxu0 0.0
        %2058 = vmatprep.subr.mxu0 0.0
        %2059 = vmatpush2.xpose.msra.mxu0 0.0
        %2060 = vmatprep.subr.mxu0 0.0
        %2061 = vmatpush2.xpose.msra.mxu0 0.0
        %2062 = vmatprep.subr.mxu0 0.0
        %2063 = vmatpush2.xpose.msra.mxu0 0.0
        %2064 = vmatprep.mubr.f32.mxu0 0.0
        %2065 = vmatmul.mubr.f32.gmra.mxu0 %v1989
        %v2066 = vpop.f32.mrf.mxu0
        %v2067 = vadd.f32 0.0, %v2066
        %v2068 = vpop.f32.mrf.mxu0
        %2069 = vmatprep.mubr.f32.mxu0 0.0
        %2070 = vmatmul.mubr.f32.gmra.mxu0 %v1992
        %v2071 = vpop.f32.mrf.mxu0
        %v2072 = vadd.f32 0.0, %v2071
        %v2073 = vpop.f32.mrf.mxu0
        %2074 = vdwg.mxu0
        %v2076 = vsel %vm943, %v863, 0
        %v2079 = vsel %vm943, %v864, 0
        %v2082 = vsel %vm943, %v865, 0
        %v2085 = vsel %vm943, %v866, 0
        %2087 = vmatprep.subr.mxu0 0.0
        %2088 = vmatpush1.xpose.msra.mxu0 0.0
        %2089 = vmatprep.subr.mxu0 0.0
        %2090 = vmatpush1.xpose.msra.mxu0 0.0
        %2091 = vmatprep.subr.mxu0 0.0
        %2092 = vmatpush1.xpose.msra.mxu0 0.0
        %2093 = vmatprep.subr.mxu0 0.0
        %2094 = vmatpush1.xpose.msra.mxu0 0.0
        %2095 = vmatprep.subr.mxu0 0.0
        %2096 = vmatpush1.xpose.msra.mxu0 0.0
        %2097 = vmatprep.subr.mxu0 0.0
        %2098 = vmatpush1.xpose.msra.mxu0 0.0
        %2099 = vmatprep.subr.mxu0 0.0
        %2100 = vmatpush1.xpose.msra.mxu0 0.0
        %2101 = vmatprep.subr.mxu0 0.0
        %2102 = vmatpush1.xpose.msra.mxu0 0.0
        %2103 = vmatprep.subr.mxu0 0.0
        %2104 = vmatpush1.xpose.msra.mxu0 0.0
        %2105 = vmatprep.subr.mxu0 0.0
        %2106 = vmatpush1.xpose.msra.mxu0 0.0
        %2107 = vmatprep.subr.mxu0 0.0
        %2108 = vmatpush1.xpose.msra.mxu0 0.0
        %2109 = vmatprep.subr.mxu0 0.0
        %2110 = vmatpush1.xpose.msra.mxu0 0.0
        %2111 = vmatprep.subr.mxu0 0.0
        %2112 = vmatpush1.xpose.msra.mxu0 0.0
        %2113 = vmatprep.subr.mxu0 0.0
        %2114 = vmatpush1.xpose.msra.mxu0 0.0
        %2115 = vmatprep.subr.mxu0 0.0
        %2116 = vmatpush1.xpose.msra.mxu0 %v2085
        %2117 = vmatprep.subr.mxu0 0.0
        %2118 = vmatpush1.xpose.msra.mxu0 %v2082
        %2119 = vmatprep.subr.mxu0 0.0
        %2120 = vmatpush2.xpose.msra.mxu0 0.0
        %2121 = vmatprep.subr.mxu0 0.0
        %2122 = vmatpush2.xpose.msra.mxu0 0.0
        %2123 = vmatprep.subr.mxu0 0.0
        %2124 = vmatpush2.xpose.msra.mxu0 0.0
        %2125 = vmatprep.subr.mxu0 0.0
        %2126 = vmatpush2.xpose.msra.mxu0 0.0
        %2127 = vmatprep.subr.mxu0 0.0
        %2128 = vmatpush2.xpose.msra.mxu0 0.0
        %2129 = vmatprep.subr.mxu0 0.0
        %2130 = vmatpush2.xpose.msra.mxu0 0.0
        %2131 = vmatprep.subr.mxu0 0.0
        %2132 = vmatpush2.xpose.msra.mxu0 0.0
        %2133 = vmatprep.subr.mxu0 0.0
        %2134 = vmatpush2.xpose.msra.mxu0 0.0
        %2135 = vmatprep.subr.mxu0 0.0
        %2136 = vmatpush2.xpose.msra.mxu0 0.0
        %2137 = vmatprep.subr.mxu0 0.0
        %2138 = vmatpush2.xpose.msra.mxu0 0.0
        %2139 = vmatprep.subr.mxu0 0.0
        %2140 = vmatpush2.xpose.msra.mxu0 0.0
        %2141 = vmatprep.subr.mxu0 0.0
        %2142 = vmatpush2.xpose.msra.mxu0 0.0
        %2143 = vmatprep.subr.mxu0 0.0
        %2144 = vmatpush2.xpose.msra.mxu0 0.0
        %2145 = vmatprep.subr.mxu0 0.0
        %2146 = vmatpush2.xpose.msra.mxu0 0.0
        %2147 = vmatprep.subr.mxu0 0.0
        %2148 = vmatpush2.xpose.msra.mxu0 0.0
        %2149 = vmatprep.subr.mxu0 0.0
        %2150 = vmatpush2.xpose.msra.mxu0 0.0
        %2151 = vmatprep.mubr.f32.mxu0 0.0
        %2152 = vmatmul.mubr.f32.gmra.mxu0 %v2076
        %v2153 = vpop.f32.mrf.mxu0
        %v2154 = vadd.f32 0.0, %v2153
        %v2155 = vpop.f32.mrf.mxu0
        %2156 = vmatprep.mubr.f32.mxu0 0.0
        %2157 = vmatmul.mubr.f32.gmra.mxu0 %v2079
        %v2158 = vpop.f32.mrf.mxu0
        %v2159 = vadd.f32 0.0, %v2158
        %v2160 = vpop.f32.mrf.mxu0
        %2161 = vdwg.mxu0
        %v2163 = vsel %vm943, %v895, 0
        %v2166 = vsel %vm943, %v896, 0
        %v2169 = vsel %vm943, %v897, 0
        %v2172 = vsel %vm943, %v898, 0
        %2174 = vmatprep.subr.mxu0 0.0
        %2175 = vmatpush1.xpose.msra.mxu0 0.0
        %2176 = vmatprep.subr.mxu0 0.0
        %2177 = vmatpush1.xpose.msra.mxu0 0.0
        %2178 = vmatprep.subr.mxu0 0.0
        %2179 = vmatpush1.xpose.msra.mxu0 0.0
        %2180 = vmatprep.subr.mxu0 0.0
        %2181 = vmatpush1.xpose.msra.mxu0 0.0
        %2182 = vmatprep.subr.mxu0 0.0
        %2183 = vmatpush1.xpose.msra.mxu0 0.0
        %2184 = vmatprep.subr.mxu0 0.0
        %2185 = vmatpush1.xpose.msra.mxu0 0.0
        %2186 = vmatprep.subr.mxu0 0.0
        %2187 = vmatpush1.xpose.msra.mxu0 0.0
        %2188 = vmatprep.subr.mxu0 0.0
        %2189 = vmatpush1.xpose.msra.mxu0 0.0
        %2190 = vmatprep.subr.mxu0 0.0
        %2191 = vmatpush1.xpose.msra.mxu0 0.0
        %2192 = vmatprep.subr.mxu0 0.0
        %2193 = vmatpush1.xpose.msra.mxu0 0.0
        %2194 = vmatprep.subr.mxu0 0.0
        %2195 = vmatpush1.xpose.msra.mxu0 0.0
        %2196 = vmatprep.subr.mxu0 0.0
        %2197 = vmatpush1.xpose.msra.mxu0 0.0
        %2198 = vmatprep.subr.mxu0 0.0
        %2199 = vmatpush1.xpose.msra.mxu0 0.0
        %2200 = vmatprep.subr.mxu0 0.0
        %2201 = vmatpush1.xpose.msra.mxu0 0.0
        %2202 = vmatprep.subr.mxu0 0.0
        %2203 = vmatpush1.xpose.msra.mxu0 %v2172
        %2204 = vmatprep.subr.mxu0 0.0
        %2205 = vmatpush1.xpose.msra.mxu0 %v2169
        %2206 = vmatprep.subr.mxu0 0.0
        %2207 = vmatpush2.xpose.msra.mxu0 0.0
        %2208 = vmatprep.subr.mxu0 0.0
        %2209 = vmatpush2.xpose.msra.mxu0 0.0
        %2210 = vmatprep.subr.mxu0 0.0
        %2211 = vmatpush2.xpose.msra.mxu0 0.0
        %2212 = vmatprep.subr.mxu0 0.0
        %2213 = vmatpush2.xpose.msra.mxu0 0.0
        %2214 = vmatprep.subr.mxu0 0.0
        %2215 = vmatpush2.xpose.msra.mxu0 0.0
        %2216 = vmatprep.subr.mxu0 0.0
        %2217 = vmatpush2.xpose.msra.mxu0 0.0
        %2218 = vmatprep.subr.mxu0 0.0
        %2219 = vmatpush2.xpose.msra.mxu0 0.0
        %2220 = vmatprep.subr.mxu0 0.0
        %2221 = vmatpush2.xpose.msra.mxu0 0.0
        %2222 = vmatprep.subr.mxu0 0.0
        %2223 = vmatpush2.xpose.msra.mxu0 0.0
        %2224 = vmatprep.subr.mxu0 0.0
        %2225 = vmatpush2.xpose.msra.mxu0 0.0
        %2226 = vmatprep.subr.mxu0 0.0
        %2227 = vmatpush2.xpose.msra.mxu0 0.0
        %2228 = vmatprep.subr.mxu0 0.0
        %2229 = vmatpush2.xpose.msra.mxu0 0.0
        %2230 = vmatprep.subr.mxu0 0.0
        %2231 = vmatpush2.xpose.msra.mxu0 0.0
        %2232 = vmatprep.subr.mxu0 0.0
        %2233 = vmatpush2.xpose.msra.mxu0 0.0
        %2234 = vmatprep.subr.mxu0 0.0
        %2235 = vmatpush2.xpose.msra.mxu0 0.0
        %2236 = vmatprep.subr.mxu0 0.0
        %2237 = vmatpush2.xpose.msra.mxu0 0.0
        %2238 = vmatprep.mubr.f32.mxu0 0.0
        %2239 = vmatmul.mubr.f32.gmra.mxu0 %v2163
        %v2240 = vpop.f32.mrf.mxu0
        %v2241 = vadd.f32 0.0, %v2240
        %v2242 = vpop.f32.mrf.mxu0
        %2243 = vmatprep.mubr.f32.mxu0 0.0
        %2244 = vmatmul.mubr.f32.gmra.mxu0 %v2166
        %v2245 = vpop.f32.mrf.mxu0
        %v2246 = vadd.f32 0.0, %v2245
        %v2247 = vpop.f32.mrf.mxu0
        %2248 = vdwg.mxu0
        %v2250 = vsel %vm943, %v927, 0
        %v2253 = vsel %vm943, %v928, 0
        %v2256 = vsel %vm943, %v929, 0
        %v2259 = vsel %vm943, %v930, 0
        %2261 = vmatprep.subr.mxu0 0.0
        %2262 = vmatpush1.xpose.msra.mxu0 0.0
        %2263 = vmatprep.subr.mxu0 0.0
        %2264 = vmatpush1.xpose.msra.mxu0 0.0
        %2265 = vmatprep.subr.mxu0 0.0
        %2266 = vmatpush1.xpose.msra.mxu0 0.0
        %2267 = vmatprep.subr.mxu0 0.0
        %2268 = vmatpush1.xpose.msra.mxu0 0.0
        %2269 = vmatprep.subr.mxu0 0.0
        %2270 = vmatpush1.xpose.msra.mxu0 0.0
        %2271 = vmatprep.subr.mxu0 0.0
        %2272 = vmatpush1.xpose.msra.mxu0 0.0
        %2273 = vmatprep.subr.mxu0 0.0
        %2274 = vmatpush1.xpose.msra.mxu0 0.0
        %2275 = vmatprep.subr.mxu0 0.0
        %2276 = vmatpush1.xpose.msra.mxu0 0.0
        %2277 = vmatprep.subr.mxu0 0.0
        %2278 = vmatpush1.xpose.msra.mxu0 0.0
        %2279 = vmatprep.subr.mxu0 0.0
        %2280 = vmatpush1.xpose.msra.mxu0 0.0
        %2281 = vmatprep.subr.mxu0 0.0
        %2282 = vmatpush1.xpose.msra.mxu0 0.0
        %2283 = vmatprep.subr.mxu0 0.0
        %2284 = vmatpush1.xpose.msra.mxu0 0.0
        %2285 = vmatprep.subr.mxu0 0.0
        %2286 = vmatpush1.xpose.msra.mxu0 0.0
        %2287 = vmatprep.subr.mxu0 0.0
        %2288 = vmatpush1.xpose.msra.mxu0 0.0
        %2289 = vmatprep.subr.mxu0 0.0
        %2290 = vmatpush1.xpose.msra.mxu0 %v2259
        %2291 = vmatprep.subr.mxu0 0.0
        %2292 = vmatpush1.xpose.msra.mxu0 %v2256
        %2293 = vmatprep.subr.mxu0 0.0
        %2294 = vmatpush2.xpose.msra.mxu0 0.0
        %2295 = vmatprep.subr.mxu0 0.0
        %2296 = vmatpush2.xpose.msra.mxu0 0.0
        %2297 = vmatprep.subr.mxu0 0.0
        %2298 = vmatpush2.xpose.msra.mxu0 0.0
        %2299 = vmatprep.subr.mxu0 0.0
        %2300 = vmatpush2.xpose.msra.mxu0 0.0
        %2301 = vmatprep.subr.mxu0 0.0
        %2302 = vmatpush2.xpose.msra.mxu0 0.0
        %2303 = vmatprep.subr.mxu0 0.0
        %2304 = vmatpush2.xpose.msra.mxu0 0.0
        %2305 = vmatprep.subr.mxu0 0.0
        %2306 = vmatpush2.xpose.msra.mxu0 0.0
        %2307 = vmatprep.subr.mxu0 0.0
        %2308 = vmatpush2.xpose.msra.mxu0 0.0
        %2309 = vmatprep.subr.mxu0 0.0
        %2310 = vmatpush2.xpose.msra.mxu0 0.0
        %2311 = vmatprep.subr.mxu0 0.0
        %2312 = vmatpush2.xpose.msra.mxu0 0.0
        %2313 = vmatprep.subr.mxu0 0.0
        %2314 = vmatpush2.xpose.msra.mxu0 0.0
        %2315 = vmatprep.subr.mxu0 0.0
        %2316 = vmatpush2.xpose.msra.mxu0 0.0
        %2317 = vmatprep.subr.mxu0 0.0
        %2318 = vmatpush2.xpose.msra.mxu0 0.0
        %2319 = vmatprep.subr.mxu0 0.0
        %2320 = vmatpush2.xpose.msra.mxu0 0.0
        %2321 = vmatprep.subr.mxu0 0.0
        %2322 = vmatpush2.xpose.msra.mxu0 0.0
        %2323 = vmatprep.subr.mxu0 0.0
        %2324 = vmatpush2.xpose.msra.mxu0 0.0
        %2325 = vmatprep.mubr.f32.mxu0 0.0
        %2326 = vmatmul.mubr.f32.gmra.mxu0 %v2250
        %v2327 = vpop.f32.mrf.mxu0
        %v2328 = vadd.f32 0.0, %v2327
        %v2329 = vpop.f32.mrf.mxu0
        %2330 = vmatprep.mubr.f32.mxu0 0.0
        %2331 = vmatmul.mubr.f32.gmra.mxu0 %v2253
        %v2332 = vpop.f32.mrf.mxu0
        %v2333 = vadd.f32 0.0, %v2332
        %v2334 = vpop.f32.mrf.mxu0
        %2335 = vdwg.mxu0
        %v2336 = vmul.f32 %v1023, 0.35355338
        %v2337 = vmul.f32 %v1028, 0.35355338
        %v2338 = vmul.f32 %v1110, 0.35355338
        %v2339 = vmul.f32 %v1115, 0.35355338
        %v2340 = vmul.f32 %v1197, 0.35355338
        %v2341 = vmul.f32 %v1202, 0.35355338
        %v2342 = vmul.f32 %v1284, 0.35355338
        %v2343 = vmul.f32 %v1289, 0.35355338
        %v2344 = vmul.f32 %v1371, 0.35355338
        %v2345 = vmul.f32 %v1376, 0.35355338
        %v2346 = vmul.f32 %v1458, 0.35355338
        %v2347 = vmul.f32 %v1463, 0.35355338
        %v2348 = vmul.f32 %v1545, 0.35355338
        %v2349 = vmul.f32 %v1550, 0.35355338
        %v2350 = vmul.f32 %v1632, 0.35355338
        %v2351 = vmul.f32 %v1637, 0.35355338
        %v2352 = vmul.f32 %v1719, 0.35355338
        %v2353 = vmul.f32 %v1724, 0.35355338
        %v2354 = vmul.f32 %v1806, 0.35355338
        %v2355 = vmul.f32 %v1811, 0.35355338
        %v2356 = vmul.f32 %v1893, 0.35355338
        %v2357 = vmul.f32 %v1898, 0.35355338
        %v2358 = vmul.f32 %v1980, 0.35355338
        %v2359 = vmul.f32 %v1985, 0.35355338
        %v2360 = vmul.f32 %v2067, 0.35355338
        %v2361 = vmul.f32 %v2072, 0.35355338
        %v2362 = vmul.f32 %v2154, 0.35355338
        %v2363 = vmul.f32 %v2159, 0.35355338
        %v2364 = vmul.f32 %v2241, 0.35355338
        %v2365 = vmul.f32 %v2246, 0.35355338
        %v2366 = vmul.f32 %v2328, 0.35355338
        %v2367 = vmul.f32 %v2333, 0.35355338
        %vm2368 = vcmask 130048
        %v2369 = vsel %vm2368, %v2336, -inf
        %2370 = vmax.xlane.f32.xlu0 %v2369
        %v2371 = vpop.xlane.xlu0 %2370
        %v2372 = vsel %vm2368, %v2337, -inf
        %2373 = vmax.xlane.f32.xlu0 %v2372
        %v2374 = vpop.xlane.xlu0 %2373
        %v2375 = vsel %vm2368, %v2338, -inf
        %2376 = vmax.xlane.f32.xlu0 %v2375
        %v2377 = vpop.xlane.xlu0 %2376
        %v2378 = vsel %vm2368, %v2339, -inf
        %2379 = vmax.xlane.f32.xlu0 %v2378
        %v2380 = vpop.xlane.xlu0 %2379
        %v2381 = vsel %vm2368, %v2340, -inf
        %2382 = vmax.xlane.f32.xlu0 %v2381
        %v2383 = vpop.xlane.xlu0 %2382
        %v2384 = vsel %vm2368, %v2341, -inf
        %2385 = vmax.xlane.f32.xlu0 %v2384
        %v2386 = vpop.xlane.xlu0 %2385
        %v2387 = vsel %vm2368, %v2342, -inf
        %2388 = vmax.xlane.f32.xlu0 %v2387
        %v2389 = vpop.xlane.xlu0 %2388
        %v2390 = vsel %vm2368, %v2343, -inf
        %2391 = vmax.xlane.f32.xlu0 %v2390
        %v2392 = vpop.xlane.xlu0 %2391
        %v2393 = vsel %vm2368, %v2344, -inf
        %2394 = vmax.xlane.f32.xlu0 %v2393
        %v2395 = vpop.xlane.xlu0 %2394
        %v2396 = vsel %vm2368, %v2345, -inf
        %2397 = vmax.xlane.f32.xlu0 %v2396
        %v2398 = vpop.xlane.xlu0 %2397
        %v2399 = vsel %vm2368, %v2346, -inf
        %2400 = vmax.xlane.f32.xlu0 %v2399
        %v2401 = vpop.xlane.xlu0 %2400
        %v2402 = vsel %vm2368, %v2347, -inf
        %2403 = vmax.xlane.f32.xlu0 %v2402
        %v2404 = vpop.xlane.xlu0 %2403
        %v2405 = vsel %vm2368, %v2348, -inf
        %2406 = vmax.xlane.f32.xlu0 %v2405
        %v2407 = vpop.xlane.xlu0 %2406
        %v2408 = vsel %vm2368, %v2349, -inf
        %2409 = vmax.xlane.f32.xlu0 %v2408
        %v2410 = vpop.xlane.xlu0 %2409
        %v2411 = vsel %vm2368, %v2350, -inf
        %2412 = vmax.xlane.f32.xlu0 %v2411
        %v2413 = vpop.xlane.xlu0 %2412
        %v2414 = vsel %vm2368, %v2351, -inf
        %2415 = vmax.xlane.f32.xlu0 %v2414
        %v2416 = vpop.xlane.xlu0 %2415
        %v2417 = vsel %vm2368, %v2352, -inf
        %2418 = vmax.xlane.f32.xlu0 %v2417
        %v2419 = vpop.xlane.xlu0 %2418
        %v2420 = vsel %vm2368, %v2353, -inf
        %2421 = vmax.xlane.f32.xlu0 %v2420
        %v2422 = vpop.xlane.xlu0 %2421
        %v2423 = vsel %vm2368, %v2354, -inf
        %2424 = vmax.xlane.f32.xlu0 %v2423
        %v2425 = vpop.xlane.xlu0 %2424
        %v2426 = vsel %vm2368, %v2355, -inf
        %2427 = vmax.xlane.f32.xlu0 %v2426
        %v2428 = vpop.xlane.xlu0 %2427
        %v2429 = vsel %vm2368, %v2356, -inf
        %2430 = vmax.xlane.f32.xlu0 %v2429
        %v2431 = vpop.xlane.xlu0 %2430
        %v2432 = vsel %vm2368, %v2357, -inf
        %2433 = vmax.xlane.f32.xlu0 %v2432
        %v2434 = vpop.xlane.xlu0 %2433
        %v2435 = vsel %vm2368, %v2358, -inf
        %2436 = vmax.xlane.f32.xlu0 %v2435
        %v2437 = vpop.xlane.xlu0 %2436
        %v2438 = vsel %vm2368, %v2359, -inf
        %2439 = vmax.xlane.f32.xlu0 %v2438
        %v2440 = vpop.xlane.xlu0 %2439
        %v2441 = vsel %vm2368, %v2360, -inf
        %2442 = vmax.xlane.f32.xlu0 %v2441
        %v2443 = vpop.xlane.xlu0 %2442
        %v2444 = vsel %vm2368, %v2361, -inf
        %2445 = vmax.xlane.f32.xlu0 %v2444
        %v2446 = vpop.xlane.xlu0 %2445
        %v2447 = vsel %vm2368, %v2362, -inf
        %2448 = vmax.xlane.f32.xlu0 %v2447
        %v2449 = vpop.xlane.xlu0 %2448
        %v2450 = vsel %vm2368, %v2363, -inf
        %2451 = vmax.xlane.f32.xlu0 %v2450
        %v2452 = vpop.xlane.xlu0 %2451
        %v2453 = vsel %vm2368, %v2364, -inf
        %2454 = vmax.xlane.f32.xlu0 %v2453
        %v2455 = vpop.xlane.xlu0 %2454
        %v2456 = vsel %vm2368, %v2365, -inf
        %2457 = vmax.xlane.f32.xlu0 %v2456
        %v2458 = vpop.xlane.xlu0 %2457
        %v2459 = vsel %vm2368, %v2366, -inf
        %2460 = vmax.xlane.f32.xlu0 %v2459
        %v2461 = vpop.xlane.xlu0 %2460
        %v2462 = vsel %vm2368, %v2367, -inf
        %2463 = vmax.xlane.f32.xlu0 %v2462
        %v2464 = vpop.xlane.xlu0 %2463
        %v2465 = vsub.f32 %v2336, %v2371
        %v2466 = vsub.f32 %v2337, %v2374
        %v2467 = vsub.f32 %v2338, %v2377
        %v2468 = vsub.f32 %v2339, %v2380
        %v2469 = vsub.f32 %v2340, %v2383
        %v2470 = vsub.f32 %v2341, %v2386
        %v2471 = vsub.f32 %v2342, %v2389
        %v2472 = vsub.f32 %v2343, %v2392
        %v2473 = vsub.f32 %v2344, %v2395
        %v2474 = vsub.f32 %v2345, %v2398
        %v2475 = vsub.f32 %v2346, %v2401
        %v2476 = vsub.f32 %v2347, %v2404
        %v2477 = vsub.f32 %v2348, %v2407
        %v2478 = vsub.f32 %v2349, %v2410
        %v2479 = vsub.f32 %v2350, %v2413
        %v2480 = vsub.f32 %v2351, %v2416
        %v2481 = vsub.f32 %v2352, %v2419
        %v2482 = vsub.f32 %v2353, %v2422
        %v2483 = vsub.f32 %v2354, %v2425
        %v2484 = vsub.f32 %v2355, %v2428
        %v2485 = vsub.f32 %v2356, %v2431
        %v2486 = vsub.f32 %v2357, %v2434
        %v2487 = vsub.f32 %v2358, %v2437
        %v2488 = vsub.f32 %v2359, %v2440
        %v2489 = vsub.f32 %v2360, %v2443
        %v2490 = vsub.f32 %v2361, %v2446
        %v2491 = vsub.f32 %v2362, %v2449
        %v2492 = vsub.f32 %v2363, %v2452
        %v2493 = vsub.f32 %v2364, %v2455
        %v2494 = vsub.f32 %v2365, %v2458
        %v2495 = vsub.f32 %v2366, %v2461
        %v2496 = vsub.f32 %v2367, %v2464
        %v2497 = vmul.f32 %v2465, 1.442695
        %v2498 = vpow.pop %v2497
        %v2499 = vmul.f32 %v2466, 1.442695
        %v2500 = vpow.pop %v2499
        %v2501 = vmul.f32 %v2467, 1.442695
        %v2502 = vpow.pop %v2501
        %v2503 = vmul.f32 %v2468, 1.442695
        %v2504 = vpow.pop %v2503
        %v2505 = vmul.f32 %v2469, 1.442695
        %v2506 = vpow.pop %v2505
        %v2507 = vmul.f32 %v2470, 1.442695
        %v2508 = vpow.pop %v2507
        %v2509 = vmul.f32 %v2471, 1.442695
        %v2510 = vpow.pop %v2509
        %v2511 = vmul.f32 %v2472, 1.442695
        %v2512 = vpow.pop %v2511
        %v2513 = vmul.f32 %v2473, 1.442695
        %v2514 = vpow.pop %v2513
        %v2515 = vmul.f32 %v2474, 1.442695
        %v2516 = vpow.pop %v2515
        %v2517 = vmul.f32 %v2475, 1.442695
        %v2518 = vpow.pop %v2517
        %v2519 = vmul.f32 %v2476, 1.442695
        %v2520 = vpow.pop %v2519
        %v2521 = vmul.f32 %v2477, 1.442695
        %v2522 = vpow.pop %v2521
        %v2523 = vmul.f32 %v2478, 1.442695
        %v2524 = vpow.pop %v2523
        %v2525 = vmul.f32 %v2479, 1.442695
        %v2526 = vpow.pop %v2525
        %v2527 = vmul.f32 %v2480, 1.442695
        %v2528 = vpow.pop %v2527
        %v2529 = vmul.f32 %v2481, 1.442695
        %v2530 = vpow.pop %v2529
        %v2531 = vmul.f32 %v2482, 1.442695
        %v2532 = vpow.pop %v2531
        %v2533 = vmul.f32 %v2483, 1.442695
        %v2534 = vpow.pop %v2533
        %v2535 = vmul.f32 %v2484, 1.442695
        %v2536 = vpow.pop %v2535
        %v2537 = vmul.f32 %v2485, 1.442695
        %v2538 = vpow.pop %v2537
        %v2539 = vmul.f32 %v2486, 1.442695
        %v2540 = vpow.pop %v2539
        %v2541 = vmul.f32 %v2487, 1.442695
        %v2542 = vpow.pop %v2541
        %v2543 = vmul.f32 %v2488, 1.442695
        %v2544 = vpow.pop %v2543
        %v2545 = vmul.f32 %v2489, 1.442695
        %v2546 = vpow.pop %v2545
        %v2547 = vmul.f32 %v2490, 1.442695
        %v2548 = vpow.pop %v2547
        %v2549 = vmul.f32 %v2491, 1.442695
        %v2550 = vpow.pop %v2549
        %v2551 = vmul.f32 %v2492, 1.442695
        %v2552 = vpow.pop %v2551
        %v2553 = vmul.f32 %v2493, 1.442695
        %v2554 = vpow.pop %v2553
        %v2555 = vmul.f32 %v2494, 1.442695
        %v2556 = vpow.pop %v2555
        %v2557 = vmul.f32 %v2495, 1.442695
        %v2558 = vpow.pop %v2557
        %v2559 = vmul.f32 %v2496, 1.442695
        %v2560 = vpow.pop %v2559
        %v2561 = vsel %vm2368, %v2498, 0.0
        %2562 = vadd.xlane.f32.xlu0 %v2561
        %v2563 = vpop.xlane.xlu0 %2562
        %v2564 = vsel %vm2368, %v2500, 0.0
        %2565 = vadd.xlane.f32.xlu0 %v2564
        %v2566 = vpop.xlane.xlu0 %2565
        %v2567 = vsel %vm2368, %v2502, 0.0
        %2568 = vadd.xlane.f32.xlu0 %v2567
        %v2569 = vpop.xlane.xlu0 %2568
        %v2570 = vsel %vm2368, %v2504, 0.0
        %2571 = vadd.xlane.f32.xlu0 %v2570
        %v2572 = vpop.xlane.xlu0 %2571
        %v2573 = vsel %vm2368, %v2506, 0.0
        %2574 = vadd.xlane.f32.xlu0 %v2573
        %v2575 = vpop.xlane.xlu0 %2574
        %v2576 = vsel %vm2368, %v2508, 0.0
        %2577 = vadd.xlane.f32.xlu0 %v2576
        %v2578 = vpop.xlane.xlu0 %2577
        %v2579 = vsel %vm2368, %v2510, 0.0
        %2580 = vadd.xlane.f32.xlu0 %v2579
        %v2581 = vpop.xlane.xlu0 %2580
        %v2582 = vsel %vm2368, %v2512, 0.0
        %2583 = vadd.xlane.f32.xlu0 %v2582
        %v2584 = vpop.xlane.xlu0 %2583
        %v2585 = vsel %vm2368, %v2514, 0.0
        %2586 = vadd.xlane.f32.xlu0 %v2585
        %v2587 = vpop.xlane.xlu0 %2586
        %v2588 = vsel %vm2368, %v2516, 0.0
        %2589 = vadd.xlane.f32.xlu0 %v2588
        %v2590 = vpop.xlane.xlu0 %2589
        %v2591 = vsel %vm2368, %v2518, 0.0
        %2592 = vadd.xlane.f32.xlu0 %v2591
        %v2593 = vpop.xlane.xlu0 %2592
        %v2594 = vsel %vm2368, %v2520, 0.0
        %2595 = vadd.xlane.f32.xlu0 %v2594
        %v2596 = vpop.xlane.xlu0 %2595
        %v2597 = vsel %vm2368, %v2522, 0.0
        %2598 = vadd.xlane.f32.xlu0 %v2597
        %v2599 = vpop.xlane.xlu0 %2598
        %v2600 = vsel %vm2368, %v2524, 0.0
        %2601 = vadd.xlane.f32.xlu0 %v2600
        %v2602 = vpop.xlane.xlu0 %2601
        %v2603 = vsel %vm2368, %v2526, 0.0
        %2604 = vadd.xlane.f32.xlu0 %v2603
        %v2605 = vpop.xlane.xlu0 %2604
        %v2606 = vsel %vm2368, %v2528, 0.0
        %2607 = vadd.xlane.f32.xlu0 %v2606
        %v2608 = vpop.xlane.xlu0 %2607
        %v2609 = vsel %vm2368, %v2530, 0.0
        %2610 = vadd.xlane.f32.xlu0 %v2609
        %v2611 = vpop.xlane.xlu0 %2610
        %v2612 = vsel %vm2368, %v2532, 0.0
        %2613 = vadd.xlane.f32.xlu0 %v2612
        %v2614 = vpop.xlane.xlu0 %2613
        %v2615 = vsel %vm2368, %v2534, 0.0
        %2616 = vadd.xlane.f32.xlu0 %v2615
        %v2617 = vpop.xlane.xlu0 %2616
        %v2618 = vsel %vm2368, %v2536, 0.0
        %2619 = vadd.xlane.f32.xlu0 %v2618
        %v2620 = vpop.xlane.xlu0 %2619
        %v2621 = vsel %vm2368, %v2538, 0.0
        %2622 = vadd.xlane.f32.xlu0 %v2621
        %v2623 = vpop.xlane.xlu0 %2622
        %v2624 = vsel %vm2368, %v2540, 0.0
        %2625 = vadd.xlane.f32.xlu0 %v2624
        %v2626 = vpop.xlane.xlu0 %2625
        %v2627 = vsel %vm2368, %v2542, 0.0
        %2628 = vadd.xlane.f32.xlu0 %v2627
        %v2629 = vpop.xlane.xlu0 %2628
        %v2630 = vsel %vm2368, %v2544, 0.0
        %2631 = vadd.xlane.f32.xlu0 %v2630
        %v2632 = vpop.xlane.xlu0 %2631
        %v2633 = vsel %vm2368, %v2546, 0.0
        %2634 = vadd.xlane.f32.xlu0 %v2633
        %v2635 = vpop.xlane.xlu0 %2634
        %v2636 = vsel %vm2368, %v2548, 0.0
        %2637 = vadd.xlane.f32.xlu0 %v2636
        %v2638 = vpop.xlane.xlu0 %2637
        %v2639 = vsel %vm2368, %v2550, 0.0
        %2640 = vadd.xlane.f32.xlu0 %v2639
        %v2641 = vpop.xlane.xlu0 %2640
        %v2642 = vsel %vm2368, %v2552, 0.0
        %2643 = vadd.xlane.f32.xlu0 %v2642
        %v2644 = vpop.xlane.xlu0 %2643
        %v2645 = vsel %vm2368, %v2554, 0.0
        %2646 = vadd.xlane.f32.xlu0 %v2645
        %v2647 = vpop.xlane.xlu0 %2646
        %v2648 = vsel %vm2368, %v2556, 0.0
        %2649 = vadd.xlane.f32.xlu0 %v2648
        %v2650 = vpop.xlane.xlu0 %2649
        %v2651 = vsel %vm2368, %v2558, 0.0
        %2652 = vadd.xlane.f32.xlu0 %v2651
        %v2653 = vpop.xlane.xlu0 %2652
        %v2654 = vsel %vm2368, %v2560, 0.0
        %2655 = vadd.xlane.f32.xlu0 %v2654
        %v2656 = vpop.xlane.xlu0 %2655
        %v2657 = vrcp.pop %v2563
        %v2658 = vrcp.pop %v2566
        %v2659 = vrcp.pop %v2569
        %v2660 = vrcp.pop %v2572
        %v2661 = vrcp.pop %v2575
        %v2662 = vrcp.pop %v2578
        %v2663 = vrcp.pop %v2581
        %v2664 = vrcp.pop %v2584
        %v2665 = vrcp.pop %v2587
        %v2666 = vrcp.pop %v2590
        %v2667 = vrcp.pop %v2593
        %v2668 = vrcp.pop %v2596
        %v2669 = vrcp.pop %v2599
        %v2670 = vrcp.pop %v2602
        %v2671 = vrcp.pop %v2605
        %v2672 = vrcp.pop %v2608
        %v2673 = vrcp.pop %v2611
        %v2674 = vrcp.pop %v2614
        %v2675 = vrcp.pop %v2617
        %v2676 = vrcp.pop %v2620
        %v2677 = vrcp.pop %v2623
        %v2678 = vrcp.pop %v2626
        %v2679 = vrcp.pop %v2629
        %v2680 = vrcp.pop %v2632
        %v2681 = vrcp.pop %v2635
        %v2682 = vrcp.pop %v2638
        %v2683 = vrcp.pop %v2641
        %v2684 = vrcp.pop %v2644
        %v2685 = vrcp.pop %v2647
        %v2686 = vrcp.pop %v2650
        %v2687 = vrcp.pop %v2653
        %v2688 = vrcp.pop %v2656
        %v2689 = vmul.f32 %v2498, %v2657
        %v2690 = vmul.f32 %v2500, %v2658
        %v2691 = vmul.f32 %v2502, %v2659
        %v2692 = vmul.f32 %v2504, %v2660
        %v2693 = vmul.f32 %v2506, %v2661
        %v2694 = vmul.f32 %v2508, %v2662
        %v2695 = vmul.f32 %v2510, %v2663
        %v2696 = vmul.f32 %v2512, %v2664
        %v2697 = vmul.f32 %v2514, %v2665
        %v2698 = vmul.f32 %v2516, %v2666
        %v2699 = vmul.f32 %v2518, %v2667
        %v2700 = vmul.f32 %v2520, %v2668
        %v2701 = vmul.f32 %v2522, %v2669
        %v2702 = vmul.f32 %v2524, %v2670
        %v2703 = vmul.f32 %v2526, %v2671
        %v2704 = vmul.f32 %v2528, %v2672
        %v2705 = vmul.f32 %v2530, %v2673
        %v2706 = vmul.f32 %v2532, %v2674
        %v2707 = vmul.f32 %v2534, %v2675
        %v2708 = vmul.f32 %v2536, %v2676
        %v2709 = vmul.f32 %v2538, %v2677
        %v2710 = vmul.f32 %v2540, %v2678
        %v2711 = vmul.f32 %v2542, %v2679
        %v2712 = vmul.f32 %v2544, %v2680
        %v2713 = vmul.f32 %v2546, %v2681
        %v2714 = vmul.f32 %v2548, %v2682
        %v2715 = vmul.f32 %v2550, %v2683
        %v2716 = vmul.f32 %v2552, %v2684
        %v2717 = vmul.f32 %v2554, %v2685
        %v2718 = vmul.f32 %v2556, %v2686
        %v2719 = vmul.f32 %v2558, %v2687
        %v2720 = vmul.f32 %v2560, %v2688
        %v2722 = vsel %vm2368, %v2689, 0
        %v2725 = vsel %vm2368, %v2690, 0
        %2727 = vmatprep.subr.mxu0 0.0
        %2728 = vmatpush1.msra.mxu0 0.0
        %2729 = vmatprep.subr.mxu0 0.0
        %2730 = vmatpush1.msra.mxu0 0.0
        %2731 = vmatprep.subr.mxu0 0.0
        %2732 = vmatpush1.msra.mxu0 0.0
        %2733 = vmatprep.subr.mxu0 0.0
        %2734 = vmatpush1.msra.mxu0 0.0
        %2735 = vmatprep.subr.mxu0 0.0
        %2736 = vmatpush1.msra.mxu0 0.0
        %2737 = vmatprep.subr.mxu0 0.0
        %2738 = vmatpush1.msra.mxu0 0.0
        %2739 = vmatprep.subr.mxu0 0.0
        %2740 = vmatpush1.msra.mxu0 0.0
        %2741 = vmatprep.subr.mxu0 0.0
        %2742 = vmatpush1.msra.mxu0 0.0
        %2743 = vmatprep.subr.mxu0 0.0
        %2744 = vmatpush1.msra.mxu0 0.0
        %2745 = vmatprep.subr.mxu0 0.0
        %2746 = vmatpush1.msra.mxu0 0.0
        %2747 = vmatprep.subr.mxu0 0.0
        %2748 = vmatpush1.msra.mxu0 0.0
        %2749 = vmatprep.subr.mxu0 0.0
        %2750 = vmatpush1.msra.mxu0 0.0
        %2751 = vmatprep.subr.mxu0 0.0
        %2752 = vmatpush1.msra.mxu0 0.0
        %2753 = vmatprep.subr.mxu0 0.0
        %2754 = vmatpush1.msra.mxu0 0.0
        %2755 = vmatprep.subr.mxu0 0.0
        %2756 = vmatpush1.msra.mxu0 %v452
        %2757 = vmatprep.subr.mxu0 0.0
        %2758 = vmatpush1.msra.mxu0 %v451
        %2759 = vmatprep.subr.mxu0 0.0
        %2760 = vmatpush2.msra.mxu0 0.0
        %2761 = vmatprep.subr.mxu0 0.0
        %2762 = vmatpush2.msra.mxu0 0.0
        %2763 = vmatprep.subr.mxu0 0.0
        %2764 = vmatpush2.msra.mxu0 0.0
        %2765 = vmatprep.subr.mxu0 0.0
        %2766 = vmatpush2.msra.mxu0 0.0
        %2767 = vmatprep.subr.mxu0 0.0
        %2768 = vmatpush2.msra.mxu0 0.0
        %2769 = vmatprep.subr.mxu0 0.0
        %2770 = vmatpush2.msra.mxu0 0.0
        %2771 = vmatprep.subr.mxu0 0.0
        %2772 = vmatpush2.msra.mxu0 0.0
        %2773 = vmatprep.subr.mxu0 0.0
        %2774 = vmatpush2.msra.mxu0 0.0
        %2775 = vmatprep.subr.mxu0 0.0
        %2776 = vmatpush2.msra.mxu0 0.0
        %2777 = vmatprep.subr.mxu0 0.0
        %2778 = vmatpush2.msra.mxu0 0.0
        %2779 = vmatprep.subr.mxu0 0.0
        %2780 = vmatpush2.msra.mxu0 0.0
        %2781 = vmatprep.subr.mxu0 0.0
        %2782 = vmatpush2.msra.mxu0 0.0
        %2783 = vmatprep.subr.mxu0 0.0
        %2784 = vmatpush2.msra.mxu0 0.0
        %2785 = vmatprep.subr.mxu0 0.0
        %2786 = vmatpush2.msra.mxu0 0.0
        %2787 = vmatprep.subr.mxu0 0.0
        %2788 = vmatpush2.msra.mxu0 0.0
        %2789 = vmatprep.subr.mxu0 0.0
        %2790 = vmatpush2.msra.mxu0 0.0
        %2791 = vmatprep.mubr.f32.mxu0 0.0
        %2792 = vmatmul.mubr.f32.gmra.mxu0 %v2722
        %v2793 = vpop.f32.mrf.mxu0
        %v2794 = vadd.f32 0.0, %v2793
        %v2795 = vpop.f32.mrf.mxu0
        %2796 = vmatprep.mubr.f32.mxu0 0.0
        %2797 = vmatmul.mubr.f32.gmra.mxu0 %v2725
        %v2798 = vpop.f32.mrf.mxu0
        %v2799 = vadd.f32 0.0, %v2798
        %v2800 = vpop.f32.mrf.mxu0
        %2801 = vdwg.mxu0
        %v2803 = vsel %vm2368, %v2691, 0
        %v2806 = vsel %vm2368, %v2692, 0
        %2808 = vmatprep.subr.mxu0 0.0
        %2809 = vmatpush1.msra.mxu0 0.0
        %2810 = vmatprep.subr.mxu0 0.0
        %2811 = vmatpush1.msra.mxu0 0.0
        %2812 = vmatprep.subr.mxu0 0.0
        %2813 = vmatpush1.msra.mxu0 0.0
        %2814 = vmatprep.subr.mxu0 0.0
        %2815 = vmatpush1.msra.mxu0 0.0
        %2816 = vmatprep.subr.mxu0 0.0
        %2817 = vmatpush1.msra.mxu0 0.0
        %2818 = vmatprep.subr.mxu0 0.0
        %2819 = vmatpush1.msra.mxu0 0.0
        %2820 = vmatprep.subr.mxu0 0.0
        %2821 = vmatpush1.msra.mxu0 0.0
        %2822 = vmatprep.subr.mxu0 0.0
        %2823 = vmatpush1.msra.mxu0 0.0
        %2824 = vmatprep.subr.mxu0 0.0
        %2825 = vmatpush1.msra.mxu0 0.0
        %2826 = vmatprep.subr.mxu0 0.0
        %2827 = vmatpush1.msra.mxu0 0.0
        %2828 = vmatprep.subr.mxu0 0.0
        %2829 = vmatpush1.msra.mxu0 0.0
        %2830 = vmatprep.subr.mxu0 0.0
        %2831 = vmatpush1.msra.mxu0 0.0
        %2832 = vmatprep.subr.mxu0 0.0
        %2833 = vmatpush1.msra.mxu0 0.0
        %2834 = vmatprep.subr.mxu0 0.0
        %2835 = vmatpush1.msra.mxu0 0.0
        %2836 = vmatprep.subr.mxu0 0.0
        %2837 = vmatpush1.msra.mxu0 %v484
        %2838 = vmatprep.subr.mxu0 0.0
        %2839 = vmatpush1.msra.mxu0 %v483
        %2840 = vmatprep.subr.mxu0 0.0
        %2841 = vmatpush2.msra.mxu0 0.0
        %2842 = vmatprep.subr.mxu0 0.0
        %2843 = vmatpush2.msra.mxu0 0.0
        %2844 = vmatprep.subr.mxu0 0.0
        %2845 = vmatpush2.msra.mxu0 0.0
        %2846 = vmatprep.subr.mxu0 0.0
        %2847 = vmatpush2.msra.mxu0 0.0
        %2848 = vmatprep.subr.mxu0 0.0
        %2849 = vmatpush2.msra.mxu0 0.0
        %2850 = vmatprep.subr.mxu0 0.0
        %2851 = vmatpush2.msra.mxu0 0.0
        %2852 = vmatprep.subr.mxu0 0.0
        %2853 = vmatpush2.msra.mxu0 0.0
        %2854 = vmatprep.subr.mxu0 0.0
        %2855 = vmatpush2.msra.mxu0 0.0
        %2856 = vmatprep.subr.mxu0 0.0
        %2857 = vmatpush2.msra.mxu0 0.0
        %2858 = vmatprep.subr.mxu0 0.0
        %2859 = vmatpush2.msra.mxu0 0.0
        %2860 = vmatprep.subr.mxu0 0.0
        %2861 = vmatpush2.msra.mxu0 0.0
        %2862 = vmatprep.subr.mxu0 0.0
        %2863 = vmatpush2.msra.mxu0 0.0
        %2864 = vmatprep.subr.mxu0 0.0
        %2865 = vmatpush2.msra.mxu0 0.0
        %2866 = vmatprep.subr.mxu0 0.0
        %2867 = vmatpush2.msra.mxu0 0.0
        %2868 = vmatprep.subr.mxu0 0.0
        %2869 = vmatpush2.msra.mxu0 0.0
        %2870 = vmatprep.subr.mxu0 0.0
        %2871 = vmatpush2.msra.mxu0 0.0
        %2872 = vmatprep.mubr.f32.mxu0 0.0
        %2873 = vmatmul.mubr.f32.gmra.mxu0 %v2803
        %v2874 = vpop.f32.mrf.mxu0
        %v2875 = vadd.f32 0.0, %v2874
        %v2876 = vpop.f32.mrf.mxu0
        %2877 = vmatprep.mubr.f32.mxu0 0.0
        %2878 = vmatmul.mubr.f32.gmra.mxu0 %v2806
        %v2879 = vpop.f32.mrf.mxu0
        %v2880 = vadd.f32 0.0, %v2879
        %v2881 = vpop.f32.mrf.mxu0
        %2882 = vdwg.mxu0
        %v2884 = vsel %vm2368, %v2693, 0
        %v2887 = vsel %vm2368, %v2694, 0
        %2889 = vmatprep.subr.mxu0 0.0
        %2890 = vmatpush1.msra.mxu0 0.0
        %2891 = vmatprep.subr.mxu0 0.0
        %2892 = vmatpush1.msra.mxu0 0.0
        %2893 = vmatprep.subr.mxu0 0.0
        %2894 = vmatpush1.msra.mxu0 0.0
        %2895 = vmatprep.subr.mxu0 0.0
        %2896 = vmatpush1.msra.mxu0 0.0
        %2897 = vmatprep.subr.mxu0 0.0
        %2898 = vmatpush1.msra.mxu0 0.0
        %2899 = vmatprep.subr.mxu0 0.0
        %2900 = vmatpush1.msra.mxu0 0.0
        %2901 = vmatprep.subr.mxu0 0.0
        %2902 = vmatpush1.msra.mxu0 0.0
        %2903 = vmatprep.subr.mxu0 0.0
        %2904 = vmatpush1.msra.mxu0 0.0
        %2905 = vmatprep.subr.mxu0 0.0
        %2906 = vmatpush1.msra.mxu0 0.0
        %2907 = vmatprep.subr.mxu0 0.0
        %2908 = vmatpush1.msra.mxu0 0.0
        %2909 = vmatprep.subr.mxu0 0.0
        %2910 = vmatpush1.msra.mxu0 0.0
        %2911 = vmatprep.subr.mxu0 0.0
        %2912 = vmatpush1.msra.mxu0 0.0
        %2913 = vmatprep.subr.mxu0 0.0
        %2914 = vmatpush1.msra.mxu0 0.0
        %2915 = vmatprep.subr.mxu0 0.0
        %2916 = vmatpush1.msra.mxu0 0.0
        %2917 = vmatprep.subr.mxu0 0.0
        %2918 = vmatpush1.msra.mxu0 %v516
        %2919 = vmatprep.subr.mxu0 0.0
        %2920 = vmatpush1.msra.mxu0 %v515
        %2921 = vmatprep.subr.mxu0 0.0
        %2922 = vmatpush2.msra.mxu0 0.0
        %2923 = vmatprep.subr.mxu0 0.0
        %2924 = vmatpush2.msra.mxu0 0.0
        %2925 = vmatprep.subr.mxu0 0.0
        %2926 = vmatpush2.msra.mxu0 0.0
        %2927 = vmatprep.subr.mxu0 0.0
        %2928 = vmatpush2.msra.mxu0 0.0
        %2929 = vmatprep.subr.mxu0 0.0
        %2930 = vmatpush2.msra.mxu0 0.0
        %2931 = vmatprep.subr.mxu0 0.0
        %2932 = vmatpush2.msra.mxu0 0.0
        %2933 = vmatprep.subr.mxu0 0.0
        %2934 = vmatpush2.msra.mxu0 0.0
        %2935 = vmatprep.subr.mxu0 0.0
        %2936 = vmatpush2.msra.mxu0 0.0
        %2937 = vmatprep.subr.mxu0 0.0
        %2938 = vmatpush2.msra.mxu0 0.0
        %2939 = vmatprep.subr.mxu0 0.0
        %2940 = vmatpush2.msra.mxu0 0.0
        %2941 = vmatprep.subr.mxu0 0.0
        %2942 = vmatpush2.msra.mxu0 0.0
        %2943 = vmatprep.subr.mxu0 0.0
        %2944 = vmatpush2.msra.mxu0 0.0
        %2945 = vmatprep.subr.mxu0 0.0
        %2946 = vmatpush2.msra.mxu0 0.0
        %2947 = vmatprep.subr.mxu0 0.0
        %2948 = vmatpush2.msra.mxu0 0.0
        %2949 = vmatprep.subr.mxu0 0.0
        %2950 = vmatpush2.msra.mxu0 0.0
        %2951 = vmatprep.subr.mxu0 0.0
        %2952 = vmatpush2.msra.mxu0 0.0
        %2953 = vmatprep.mubr.f32.mxu0 0.0
        %2954 = vmatmul.mubr.f32.gmra.mxu0 %v2884
        %v2955 = vpop.f32.mrf.mxu0
        %v2956 = vadd.f32 0.0, %v2955
        %v2957 = vpop.f32.mrf.mxu0
        %2958 = vmatprep.mubr.f32.mxu0 0.0
        %2959 = vmatmul.mubr.f32.gmra.mxu0 %v2887
        %v2960 = vpop.f32.mrf.mxu0
        %v2961 = vadd.f32 0.0, %v2960
        %v2962 = vpop.f32.mrf.mxu0
        %2963 = vdwg.mxu0
        %v2965 = vsel %vm2368, %v2695, 0
        %v2968 = vsel %vm2368, %v2696, 0
        %2970 = vmatprep.subr.mxu0 0.0
        %2971 = vmatpush1.msra.mxu0 0.0
        %2972 = vmatprep.subr.mxu0 0.0
        %2973 = vmatpush1.msra.mxu0 0.0
        %2974 = vmatprep.subr.mxu0 0.0
        %2975 = vmatpush1.msra.mxu0 0.0
        %2976 = vmatprep.subr.mxu0 0.0
        %2977 = vmatpush1.msra.mxu0 0.0
        %2978 = vmatprep.subr.mxu0 0.0
        %2979 = vmatpush1.msra.mxu0 0.0
        %2980 = vmatprep.subr.mxu0 0.0
        %2981 = vmatpush1.msra.mxu0 0.0
        %2982 = vmatprep.subr.mxu0 0.0
        %2983 = vmatpush1.msra.mxu0 0.0
        %2984 = vmatprep.subr.mxu0 0.0
        %2985 = vmatpush1.msra.mxu0 0.0
        %2986 = vmatprep.subr.mxu0 0.0
        %2987 = vmatpush1.msra.mxu0 0.0
        %2988 = vmatprep.subr.mxu0 0.0
        %2989 = vmatpush1.msra.mxu0 0.0
        %2990 = vmatprep.subr.mxu0 0.0
        %2991 = vmatpush1.msra.mxu0 0.0
        %2992 = vmatprep.subr.mxu0 0.0
        %2993 = vmatpush1.msra.mxu0 0.0
        %2994 = vmatprep.subr.mxu0 0.0
        %2995 = vmatpush1.msra.mxu0 0.0
        %2996 = vmatprep.subr.mxu0 0.0
        %2997 = vmatpush1.msra.mxu0 0.0
        %2998 = vmatprep.subr.mxu0 0.0
        %2999 = vmatpush1.msra.mxu0 %v548
        %3000 = vmatprep.subr.mxu0 0.0
        %3001 = vmatpush1.msra.mxu0 %v547
        %3002 = vmatprep.subr.mxu0 0.0
        %3003 = vmatpush2.msra.mxu0 0.0
        %3004 = vmatprep.subr.mxu0 0.0
        %3005 = vmatpush2.msra.mxu0 0.0
        %3006 = vmatprep.subr.mxu0 0.0
        %3007 = vmatpush2.msra.mxu0 0.0
        %3008 = vmatprep.subr.mxu0 0.0
        %3009 = vmatpush2.msra.mxu0 0.0
        %3010 = vmatprep.subr.mxu0 0.0
        %3011 = vmatpush2.msra.mxu0 0.0
        %3012 = vmatprep.subr.mxu0 0.0
        %3013 = vmatpush2.msra.mxu0 0.0
        %3014 = vmatprep.subr.mxu0 0.0
        %3015 = vmatpush2.msra.mxu0 0.0
        %3016 = vmatprep.subr.mxu0 0.0
        %3017 = vmatpush2.msra.mxu0 0.0
        %3018 = vmatprep.subr.mxu0 0.0
        %3019 = vmatpush2.msra.mxu0 0.0
        %3020 = vmatprep.subr.mxu0 0.0
        %3021 = vmatpush2.msra.mxu0 0.0
        %3022 = vmatprep.subr.mxu0 0.0
        %3023 = vmatpush2.msra.mxu0 0.0
        %3024 = vmatprep.subr.mxu0 0.0
        %3025 = vmatpush2.msra.mxu0 0.0
        %3026 = vmatprep.subr.mxu0 0.0
        %3027 = vmatpush2.msra.mxu0 0.0
        %3028 = vmatprep.subr.mxu0 0.0
        %3029 = vmatpush2.msra.mxu0 0.0
        %3030 = vmatprep.subr.mxu0 0.0
        %3031 = vmatpush2.msra.mxu0 0.0
        %3032 = vmatprep.subr.mxu0 0.0
        %3033 = vmatpush2.msra.mxu0 0.0
        %3034 = vmatprep.mubr.f32.mxu0 0.0
        %3035 = vmatmul.mubr.f32.gmra.mxu0 %v2965
        %v3036 = vpop.f32.mrf.mxu0
        %v3037 = vadd.f32 0.0, %v3036
        %v3038 = vpop.f32.mrf.mxu0
        %3039 = vmatprep.mubr.f32.mxu0 0.0
        %3040 = vmatmul.mubr.f32.gmra.mxu0 %v2968
        %v3041 = vpop.f32.mrf.mxu0
        %v3042 = vadd.f32 0.0, %v3041
        %v3043 = vpop.f32.mrf.mxu0
        %3044 = vdwg.mxu0
        %v3046 = vsel %vm2368, %v2697, 0
        %v3049 = vsel %vm2368, %v2698, 0
        %3051 = vmatprep.subr.mxu0 0.0
        %3052 = vmatpush1.msra.mxu0 0.0
        %3053 = vmatprep.subr.mxu0 0.0
        %3054 = vmatpush1.msra.mxu0 0.0
        %3055 = vmatprep.subr.mxu0 0.0
        %3056 = vmatpush1.msra.mxu0 0.0
        %3057 = vmatprep.subr.mxu0 0.0
        %3058 = vmatpush1.msra.mxu0 0.0
        %3059 = vmatprep.subr.mxu0 0.0
        %3060 = vmatpush1.msra.mxu0 0.0
        %3061 = vmatprep.subr.mxu0 0.0
        %3062 = vmatpush1.msra.mxu0 0.0
        %3063 = vmatprep.subr.mxu0 0.0
        %3064 = vmatpush1.msra.mxu0 0.0
        %3065 = vmatprep.subr.mxu0 0.0
        %3066 = vmatpush1.msra.mxu0 0.0
        %3067 = vmatprep.subr.mxu0 0.0
        %3068 = vmatpush1.msra.mxu0 0.0
        %3069 = vmatprep.subr.mxu0 0.0
        %3070 = vmatpush1.msra.mxu0 0.0
        %3071 = vmatprep.subr.mxu0 0.0
        %3072 = vmatpush1.msra.mxu0 0.0
        %3073 = vmatprep.subr.mxu0 0.0
        %3074 = vmatpush1.msra.mxu0 0.0
        %3075 = vmatprep.subr.mxu0 0.0
        %3076 = vmatpush1.msra.mxu0 0.0
        %3077 = vmatprep.subr.mxu0 0.0
        %3078 = vmatpush1.msra.mxu0 0.0
        %3079 = vmatprep.subr.mxu0 0.0
        %3080 = vmatpush1.msra.mxu0 %v580
        %3081 = vmatprep.subr.mxu0 0.0
        %3082 = vmatpush1.msra.mxu0 %v579
        %3083 = vmatprep.subr.mxu0 0.0
        %3084 = vmatpush2.msra.mxu0 0.0
        %3085 = vmatprep.subr.mxu0 0.0
        %3086 = vmatpush2.msra.mxu0 0.0
        %3087 = vmatprep.subr.mxu0 0.0
        %3088 = vmatpush2.msra.mxu0 0.0
        %3089 = vmatprep.subr.mxu0 0.0
        %3090 = vmatpush2.msra.mxu0 0.0
        %3091 = vmatprep.subr.mxu0 0.0
        %3092 = vmatpush2.msra.mxu0 0.0
        %3093 = vmatprep.subr.mxu0 0.0
        %3094 = vmatpush2.msra.mxu0 0.0
        %3095 = vmatprep.subr.mxu0 0.0
        %3096 = vmatpush2.msra.mxu0 0.0
        %3097 = vmatprep.subr.mxu0 0.0
        %3098 = vmatpush2.msra.mxu0 0.0
        %3099 = vmatprep.subr.mxu0 0.0
        %3100 = vmatpush2.msra.mxu0 0.0
        %3101 = vmatprep.subr.mxu0 0.0
        %3102 = vmatpush2.msra.mxu0 0.0
        %3103 = vmatprep.subr.mxu0 0.0
        %3104 = vmatpush2.msra.mxu0 0.0
        %3105 = vmatprep.subr.mxu0 0.0
        %3106 = vmatpush2.msra.mxu0 0.0
        %3107 = vmatprep.subr.mxu0 0.0
        %3108 = vmatpush2.msra.mxu0 0.0
        %3109 = vmatprep.subr.mxu0 0.0
        %3110 = vmatpush2.msra.mxu0 0.0
        %3111 = vmatprep.subr.mxu0 0.0
        %3112 = vmatpush2.msra.mxu0 0.0
        %3113 = vmatprep.subr.mxu0 0.0
        %3114 = vmatpush2.msra.mxu0 0.0
        %3115 = vmatprep.mubr.f32.mxu0 0.0
        %3116 = vmatmul.mubr.f32.gmra.mxu0 %v3046
        %v3117 = vpop.f32.mrf.mxu0
        %v3118 = vadd.f32 0.0, %v3117
        %v3119 = vpop.f32.mrf.mxu0
        %3120 = vmatprep.mubr.f32.mxu0 0.0
        %3121 = vmatmul.mubr.f32.gmra.mxu0 %v3049
        %v3122 = vpop.f32.mrf.mxu0
        %v3123 = vadd.f32 0.0, %v3122
        %v3124 = vpop.f32.mrf.mxu0
        %3125 = vdwg.mxu0
        %v3127 = vsel %vm2368, %v2699, 0
        %v3130 = vsel %vm2368, %v2700, 0
        %3132 = vmatprep.subr.mxu0 0.0
        %3133 = vmatpush1.msra.mxu0 0.0
        %3134 = vmatprep.subr.mxu0 0.0
        %3135 = vmatpush1.msra.mxu0 0.0
        %3136 = vmatprep.subr.mxu0 0.0
        %3137 = vmatpush1.msra.mxu0 0.0
        %3138 = vmatprep.subr.mxu0 0.0
        %3139 = vmatpush1.msra.mxu0 0.0
        %3140 = vmatprep.subr.mxu0 0.0
        %3141 = vmatpush1.msra.mxu0 0.0
        %3142 = vmatprep.subr.mxu0 0.0
        %3143 = vmatpush1.msra.mxu0 0.0
        %3144 = vmatprep.subr.mxu0 0.0
        %3145 = vmatpush1.msra.mxu0 0.0
        %3146 = vmatprep.subr.mxu0 0.0
        %3147 = vmatpush1.msra.mxu0 0.0
        %3148 = vmatprep.subr.mxu0 0.0
        %3149 = vmatpush1.msra.mxu0 0.0
        %3150 = vmatprep.subr.mxu0 0.0
        %3151 = vmatpush1.msra.mxu0 0.0
        %3152 = vmatprep.subr.mxu0 0.0
        %3153 = vmatpush1.msra.mxu0 0.0
        %3154 = vmatprep.subr.mxu0 0.0
        %3155 = vmatpush1.msra.mxu0 0.0
        %3156 = vmatprep.subr.mxu0 0.0
        %3157 = vmatpush1.msra.mxu0 0.0
        %3158 = vmatprep.subr.mxu0 0.0
        %3159 = vmatpush1.msra.mxu0 0.0
        %3160 = vmatprep.subr.mxu0 0.0
        %3161 = vmatpush1.msra.mxu0 %v612
        %3162 = vmatprep.subr.mxu0 0.0
        %3163 = vmatpush1.msra.mxu0 %v611
        %3164 = vmatprep.subr.mxu0 0.0
        %3165 = vmatpush2.msra.mxu0 0.0
        %3166 = vmatprep.subr.mxu0 0.0
        %3167 = vmatpush2.msra.mxu0 0.0
        %3168 = vmatprep.subr.mxu0 0.0
        %3169 = vmatpush2.msra.mxu0 0.0
        %3170 = vmatprep.subr.mxu0 0.0
        %3171 = vmatpush2.msra.mxu0 0.0
        %3172 = vmatprep.subr.mxu0 0.0
        %3173 = vmatpush2.msra.mxu0 0.0
        %3174 = vmatprep.subr.mxu0 0.0
        %3175 = vmatpush2.msra.mxu0 0.0
        %3176 = vmatprep.subr.mxu0 0.0
        %3177 = vmatpush2.msra.mxu0 0.0
        %3178 = vmatprep.subr.mxu0 0.0
        %3179 = vmatpush2.msra.mxu0 0.0
        %3180 = vmatprep.subr.mxu0 0.0
        %3181 = vmatpush2.msra.mxu0 0.0
        %3182 = vmatprep.subr.mxu0 0.0
        %3183 = vmatpush2.msra.mxu0 0.0
        %3184 = vmatprep.subr.mxu0 0.0
        %3185 = vmatpush2.msra.mxu0 0.0
        %3186 = vmatprep.subr.mxu0 0.0
        %3187 = vmatpush2.msra.mxu0 0.0
        %3188 = vmatprep.subr.mxu0 0.0
        %3189 = vmatpush2.msra.mxu0 0.0
        %3190 = vmatprep.subr.mxu0 0.0
        %3191 = vmatpush2.msra.mxu0 0.0
        %3192 = vmatprep.subr.mxu0 0.0
        %3193 = vmatpush2.msra.mxu0 0.0
        %3194 = vmatprep.subr.mxu0 0.0
        %3195 = vmatpush2.msra.mxu0 0.0
        %3196 = vmatprep.mubr.f32.mxu0 0.0
        %3197 = vmatmul.mubr.f32.gmra.mxu0 %v3127
        %v3198 = vpop.f32.mrf.mxu0
        %v3199 = vadd.f32 0.0, %v3198
        %v3200 = vpop.f32.mrf.mxu0
        %3201 = vmatprep.mubr.f32.mxu0 0.0
        %3202 = vmatmul.mubr.f32.gmra.mxu0 %v3130
        %v3203 = vpop.f32.mrf.mxu0
        %v3204 = vadd.f32 0.0, %v3203
        %v3205 = vpop.f32.mrf.mxu0
        %3206 = vdwg.mxu0
        %v3208 = vsel %vm2368, %v2701, 0
        %v3211 = vsel %vm2368, %v2702, 0
        %3213 = vmatprep.subr.mxu0 0.0
        %3214 = vmatpush1.msra.mxu0 0.0
        %3215 = vmatprep.subr.mxu0 0.0
        %3216 = vmatpush1.msra.mxu0 0.0
        %3217 = vmatprep.subr.mxu0 0.0
        %3218 = vmatpush1.msra.mxu0 0.0
        %3219 = vmatprep.subr.mxu0 0.0
        %3220 = vmatpush1.msra.mxu0 0.0
        %3221 = vmatprep.subr.mxu0 0.0
        %3222 = vmatpush1.msra.mxu0 0.0
        %3223 = vmatprep.subr.mxu0 0.0
        %3224 = vmatpush1.msra.mxu0 0.0
        %3225 = vmatprep.subr.mxu0 0.0
        %3226 = vmatpush1.msra.mxu0 0.0
        %3227 = vmatprep.subr.mxu0 0.0
        %3228 = vmatpush1.msra.mxu0 0.0
        %3229 = vmatprep.subr.mxu0 0.0
        %3230 = vmatpush1.msra.mxu0 0.0
        %3231 = vmatprep.subr.mxu0 0.0
        %3232 = vmatpush1.msra.mxu0 0.0
        %3233 = vmatprep.subr.mxu0 0.0
        %3234 = vmatpush1.msra.mxu0 0.0
        %3235 = vmatprep.subr.mxu0 0.0
        %3236 = vmatpush1.msra.mxu0 0.0
        %3237 = vmatprep.subr.mxu0 0.0
        %3238 = vmatpush1.msra.mxu0 0.0
        %3239 = vmatprep.subr.mxu0 0.0
        %3240 = vmatpush1.msra.mxu0 0.0
        %3241 = vmatprep.subr.mxu0 0.0
        %3242 = vmatpush1.msra.mxu0 %v644
        %3243 = vmatprep.subr.mxu0 0.0
        %3244 = vmatpush1.msra.mxu0 %v643
        %3245 = vmatprep.subr.mxu0 0.0
        %3246 = vmatpush2.msra.mxu0 0.0
        %3247 = vmatprep.subr.mxu0 0.0
        %3248 = vmatpush2.msra.mxu0 0.0
        %3249 = vmatprep.subr.mxu0 0.0
        %3250 = vmatpush2.msra.mxu0 0.0
        %3251 = vmatprep.subr.mxu0 0.0
        %3252 = vmatpush2.msra.mxu0 0.0
        %3253 = vmatprep.subr.mxu0 0.0
        %3254 = vmatpush2.msra.mxu0 0.0
        %3255 = vmatprep.subr.mxu0 0.0
        %3256 = vmatpush2.msra.mxu0 0.0
        %3257 = vmatprep.subr.mxu0 0.0
        %3258 = vmatpush2.msra.mxu0 0.0
        %3259 = vmatprep.subr.mxu0 0.0
        %3260 = vmatpush2.msra.mxu0 0.0
        %3261 = vmatprep.subr.mxu0 0.0
        %3262 = vmatpush2.msra.mxu0 0.0
        %3263 = vmatprep.subr.mxu0 0.0
        %3264 = vmatpush2.msra.mxu0 0.0
        %3265 = vmatprep.subr.mxu0 0.0
        %3266 = vmatpush2.msra.mxu0 0.0
        %3267 = vmatprep.subr.mxu0 0.0
        %3268 = vmatpush2.msra.mxu0 0.0
        %3269 = vmatprep.subr.mxu0 0.0
        %3270 = vmatpush2.msra.mxu0 0.0
        %3271 = vmatprep.subr.mxu0 0.0
        %3272 = vmatpush2.msra.mxu0 0.0
        %3273 = vmatprep.subr.mxu0 0.0
        %3274 = vmatpush2.msra.mxu0 0.0
        %3275 = vmatprep.subr.mxu0 0.0
        %3276 = vmatpush2.msra.mxu0 0.0
        %3277 = vmatprep.mubr.f32.mxu0 0.0
        %3278 = vmatmul.mubr.f32.gmra.mxu0 %v3208
        %v3279 = vpop.f32.mrf.mxu0
        %v3280 = vadd.f32 0.0, %v3279
        %v3281 = vpop.f32.mrf.mxu0
        %3282 = vmatprep.mubr.f32.mxu0 0.0
        %3283 = vmatmul.mubr.f32.gmra.mxu0 %v3211
        %v3284 = vpop.f32.mrf.mxu0
        %v3285 = vadd.f32 0.0, %v3284
        %v3286 = vpop.f32.mrf.mxu0
        %3287 = vdwg.mxu0
        %v3289 = vsel %vm2368, %v2703, 0
        %v3292 = vsel %vm2368, %v2704, 0
        %3294 = vmatprep.subr.mxu0 0.0
        %3295 = vmatpush1.msra.mxu0 0.0
        %3296 = vmatprep.subr.mxu0 0.0
        %3297 = vmatpush1.msra.mxu0 0.0
        %3298 = vmatprep.subr.mxu0 0.0
        %3299 = vmatpush1.msra.mxu0 0.0
        %3300 = vmatprep.subr.mxu0 0.0
        %3301 = vmatpush1.msra.mxu0 0.0
        %3302 = vmatprep.subr.mxu0 0.0
        %3303 = vmatpush1.msra.mxu0 0.0
        %3304 = vmatprep.subr.mxu0 0.0
        %3305 = vmatpush1.msra.mxu0 0.0
        %3306 = vmatprep.subr.mxu0 0.0
        %3307 = vmatpush1.msra.mxu0 0.0
        %3308 = vmatprep.subr.mxu0 0.0
        %3309 = vmatpush1.msra.mxu0 0.0
        %3310 = vmatprep.subr.mxu0 0.0
        %3311 = vmatpush1.msra.mxu0 0.0
        %3312 = vmatprep.subr.mxu0 0.0
        %3313 = vmatpush1.msra.mxu0 0.0
        %3314 = vmatprep.subr.mxu0 0.0
        %3315 = vmatpush1.msra.mxu0 0.0
        %3316 = vmatprep.subr.mxu0 0.0
        %3317 = vmatpush1.msra.mxu0 0.0
        %3318 = vmatprep.subr.mxu0 0.0
        %3319 = vmatpush1.msra.mxu0 0.0
        %3320 = vmatprep.subr.mxu0 0.0
        %3321 = vmatpush1.msra.mxu0 0.0
        %3322 = vmatprep.subr.mxu0 0.0
        %3323 = vmatpush1.msra.mxu0 %v676
        %3324 = vmatprep.subr.mxu0 0.0
        %3325 = vmatpush1.msra.mxu0 %v675
        %3326 = vmatprep.subr.mxu0 0.0
        %3327 = vmatpush2.msra.mxu0 0.0
        %3328 = vmatprep.subr.mxu0 0.0
        %3329 = vmatpush2.msra.mxu0 0.0
        %3330 = vmatprep.subr.mxu0 0.0
        %3331 = vmatpush2.msra.mxu0 0.0
        %3332 = vmatprep.subr.mxu0 0.0
        %3333 = vmatpush2.msra.mxu0 0.0
        %3334 = vmatprep.subr.mxu0 0.0
        %3335 = vmatpush2.msra.mxu0 0.0
        %3336 = vmatprep.subr.mxu0 0.0
        %3337 = vmatpush2.msra.mxu0 0.0
        %3338 = vmatprep.subr.mxu0 0.0
        %3339 = vmatpush2.msra.mxu0 0.0
        %3340 = vmatprep.subr.mxu0 0.0
        %3341 = vmatpush2.msra.mxu0 0.0
        %3342 = vmatprep.subr.mxu0 0.0
        %3343 = vmatpush2.msra.mxu0 0.0
        %3344 = vmatprep.subr.mxu0 0.0
        %3345 = vmatpush2.msra.mxu0 0.0
        %3346 = vmatprep.subr.mxu0 0.0
        %3347 = vmatpush2.msra.mxu0 0.0
        %3348 = vmatprep.subr.mxu0 0.0
        %3349 = vmatpush2.msra.mxu0 0.0
        %3350 = vmatprep.subr.mxu0 0.0
        %3351 = vmatpush2.msra.mxu0 0.0
        %3352 = vmatprep.subr.mxu0 0.0
        %3353 = vmatpush2.msra.mxu0 0.0
        %3354 = vmatprep.subr.mxu0 0.0
        %3355 = vmatpush2.msra.mxu0 0.0
        %3356 = vmatprep.subr.mxu0 0.0
        %3357 = vmatpush2.msra.mxu0 0.0
        %3358 = vmatprep.mubr.f32.mxu0 0.0
        %3359 = vmatmul.mubr.f32.gmra.mxu0 %v3289
        %v3360 = vpop.f32.mrf.mxu0
        %v3361 = vadd.f32 0.0, %v3360
        %v3362 = vpop.f32.mrf.mxu0
        %3363 = vmatprep.mubr.f32.mxu0 0.0
        %3364 = vmatmul.mubr.f32.gmra.mxu0 %v3292
        %v3365 = vpop.f32.mrf.mxu0
        %v3366 = vadd.f32 0.0, %v3365
        %v3367 = vpop.f32.mrf.mxu0
        %3368 = vdwg.mxu0
        %v3370 = vsel %vm2368, %v2705, 0
        %v3373 = vsel %vm2368, %v2706, 0
        %3375 = vmatprep.subr.mxu0 0.0
        %3376 = vmatpush1.msra.mxu0 0.0
        %3377 = vmatprep.subr.mxu0 0.0
        %3378 = vmatpush1.msra.mxu0 0.0
        %3379 = vmatprep.subr.mxu0 0.0
        %3380 = vmatpush1.msra.mxu0 0.0
        %3381 = vmatprep.subr.mxu0 0.0
        %3382 = vmatpush1.msra.mxu0 0.0
        %3383 = vmatprep.subr.mxu0 0.0
        %3384 = vmatpush1.msra.mxu0 0.0
        %3385 = vmatprep.subr.mxu0 0.0
        %3386 = vmatpush1.msra.mxu0 0.0
        %3387 = vmatprep.subr.mxu0 0.0
        %3388 = vmatpush1.msra.mxu0 0.0
        %3389 = vmatprep.subr.mxu0 0.0
        %3390 = vmatpush1.msra.mxu0 0.0
        %3391 = vmatprep.subr.mxu0 0.0
        %3392 = vmatpush1.msra.mxu0 0.0
        %3393 = vmatprep.subr.mxu0 0.0
        %3394 = vmatpush1.msra.mxu0 0.0
        %3395 = vmatprep.subr.mxu0 0.0
        %3396 = vmatpush1.msra.mxu0 0.0
        %3397 = vmatprep.subr.mxu0 0.0
        %3398 = vmatpush1.msra.mxu0 0.0
        %3399 = vmatprep.subr.mxu0 0.0
        %3400 = vmatpush1.msra.mxu0 0.0
        %3401 = vmatprep.subr.mxu0 0.0
        %3402 = vmatpush1.msra.mxu0 0.0
        %3403 = vmatprep.subr.mxu0 0.0
        %3404 = vmatpush1.msra.mxu0 %v708
        %3405 = vmatprep.subr.mxu0 0.0
        %3406 = vmatpush1.msra.mxu0 %v707
        %3407 = vmatprep.subr.mxu0 0.0
        %3408 = vmatpush2.msra.mxu0 0.0
        %3409 = vmatprep.subr.mxu0 0.0
        %3410 = vmatpush2.msra.mxu0 0.0
        %3411 = vmatprep.subr.mxu0 0.0
        %3412 = vmatpush2.msra.mxu0 0.0
        %3413 = vmatprep.subr.mxu0 0.0
        %3414 = vmatpush2.msra.mxu0 0.0
        %3415 = vmatprep.subr.mxu0 0.0
        %3416 = vmatpush2.msra.mxu0 0.0
        %3417 = vmatprep.subr.mxu0 0.0
        %3418 = vmatpush2.msra.mxu0 0.0
        %3419 = vmatprep.subr.mxu0 0.0
        %3420 = vmatpush2.msra.mxu0 0.0
        %3421 = vmatprep.subr.mxu0 0.0
        %3422 = vmatpush2.msra.mxu0 0.0
        %3423 = vmatprep.subr.mxu0 0.0
        %3424 = vmatpush2.msra.mxu0 0.0
        %3425 = vmatprep.subr.mxu0 0.0
        %3426 = vmatpush2.msra.mxu0 0.0
        %3427 = vmatprep.subr.mxu0 0.0
        %3428 = vmatpush2.msra.mxu0 0.0
        %3429 = vmatprep.subr.mxu0 0.0
        %3430 = vmatpush2.msra.mxu0 0.0
        %3431 = vmatprep.subr.mxu0 0.0
        %3432 = vmatpush2.msra.mxu0 0.0
        %3433 = vmatprep.subr.mxu0 0.0
        %3434 = vmatpush2.msra.mxu0 0.0
        %3435 = vmatprep.subr.mxu0 0.0
        %3436 = vmatpush2.msra.mxu0 0.0
        %3437 = vmatprep.subr.mxu0 0.0
        %3438 = vmatpush2.msra.mxu0 0.0
        %3439 = vmatprep.mubr.f32.mxu0 0.0
        %3440 = vmatmul.mubr.f32.gmra.mxu0 %v3370
        %v3441 = vpop.f32.mrf.mxu0
        %v3442 = vadd.f32 0.0, %v3441
        %v3443 = vpop.f32.mrf.mxu0
        %3444 = vmatprep.mubr.f32.mxu0 0.0
        %3445 = vmatmul.mubr.f32.gmra.mxu0 %v3373
        %v3446 = vpop.f32.mrf.mxu0
        %v3447 = vadd.f32 0.0, %v3446
        %v3448 = vpop.f32.mrf.mxu0
        %3449 = vdwg.mxu0
        %v3451 = vsel %vm2368, %v2707, 0
        %v3454 = vsel %vm2368, %v2708, 0
        %3456 = vmatprep.subr.mxu0 0.0
        %3457 = vmatpush1.msra.mxu0 0.0
        %3458 = vmatprep.subr.mxu0 0.0
        %3459 = vmatpush1.msra.mxu0 0.0
        %3460 = vmatprep.subr.mxu0 0.0
        %3461 = vmatpush1.msra.mxu0 0.0
        %3462 = vmatprep.subr.mxu0 0.0
        %3463 = vmatpush1.msra.mxu0 0.0
        %3464 = vmatprep.subr.mxu0 0.0
        %3465 = vmatpush1.msra.mxu0 0.0
        %3466 = vmatprep.subr.mxu0 0.0
        %3467 = vmatpush1.msra.mxu0 0.0
        %3468 = vmatprep.subr.mxu0 0.0
        %3469 = vmatpush1.msra.mxu0 0.0
        %3470 = vmatprep.subr.mxu0 0.0
        %3471 = vmatpush1.msra.mxu0 0.0
        %3472 = vmatprep.subr.mxu0 0.0
        %3473 = vmatpush1.msra.mxu0 0.0
        %3474 = vmatprep.subr.mxu0 0.0
        %3475 = vmatpush1.msra.mxu0 0.0
        %3476 = vmatprep.subr.mxu0 0.0
        %3477 = vmatpush1.msra.mxu0 0.0
        %3478 = vmatprep.subr.mxu0 0.0
        %3479 = vmatpush1.msra.mxu0 0.0
        %3480 = vmatprep.subr.mxu0 0.0
        %3481 = vmatpush1.msra.mxu0 0.0
        %3482 = vmatprep.subr.mxu0 0.0
        %3483 = vmatpush1.msra.mxu0 0.0
        %3484 = vmatprep.subr.mxu0 0.0
        %3485 = vmatpush1.msra.mxu0 %v740
        %3486 = vmatprep.subr.mxu0 0.0
        %3487 = vmatpush1.msra.mxu0 %v739
        %3488 = vmatprep.subr.mxu0 0.0
        %3489 = vmatpush2.msra.mxu0 0.0
        %3490 = vmatprep.subr.mxu0 0.0
        %3491 = vmatpush2.msra.mxu0 0.0
        %3492 = vmatprep.subr.mxu0 0.0
        %3493 = vmatpush2.msra.mxu0 0.0
        %3494 = vmatprep.subr.mxu0 0.0
        %3495 = vmatpush2.msra.mxu0 0.0
        %3496 = vmatprep.subr.mxu0 0.0
        %3497 = vmatpush2.msra.mxu0 0.0
        %3498 = vmatprep.subr.mxu0 0.0
        %3499 = vmatpush2.msra.mxu0 0.0
        %3500 = vmatprep.subr.mxu0 0.0
        %3501 = vmatpush2.msra.mxu0 0.0
        %3502 = vmatprep.subr.mxu0 0.0
        %3503 = vmatpush2.msra.mxu0 0.0
        %3504 = vmatprep.subr.mxu0 0.0
        %3505 = vmatpush2.msra.mxu0 0.0
        %3506 = vmatprep.subr.mxu0 0.0
        %3507 = vmatpush2.msra.mxu0 0.0
        %3508 = vmatprep.subr.mxu0 0.0
        %3509 = vmatpush2.msra.mxu0 0.0
        %3510 = vmatprep.subr.mxu0 0.0
        %3511 = vmatpush2.msra.mxu0 0.0
        %3512 = vmatprep.subr.mxu0 0.0
        %3513 = vmatpush2.msra.mxu0 0.0
        %3514 = vmatprep.subr.mxu0 0.0
        %3515 = vmatpush2.msra.mxu0 0.0
        %3516 = vmatprep.subr.mxu0 0.0
        %3517 = vmatpush2.msra.mxu0 0.0
        %3518 = vmatprep.subr.mxu0 0.0
        %3519 = vmatpush2.msra.mxu0 0.0
        %3520 = vmatprep.mubr.f32.mxu0 0.0
        %3521 = vmatmul.mubr.f32.gmra.mxu0 %v3451
        %v3522 = vpop.f32.mrf.mxu0
        %v3523 = vadd.f32 0.0, %v3522
        %v3524 = vpop.f32.mrf.mxu0
        %3525 = vmatprep.mubr.f32.mxu0 0.0
        %3526 = vmatmul.mubr.f32.gmra.mxu0 %v3454
        %v3527 = vpop.f32.mrf.mxu0
        %v3528 = vadd.f32 0.0, %v3527
        %v3529 = vpop.f32.mrf.mxu0
        %3530 = vdwg.mxu0
        %v3532 = vsel %vm2368, %v2709, 0
        %v3535 = vsel %vm2368, %v2710, 0
        %3537 = vmatprep.subr.mxu0 0.0
        %3538 = vmatpush1.msra.mxu0 0.0
        %3539 = vmatprep.subr.mxu0 0.0
        %3540 = vmatpush1.msra.mxu0 0.0
        %3541 = vmatprep.subr.mxu0 0.0
        %3542 = vmatpush1.msra.mxu0 0.0
        %3543 = vmatprep.subr.mxu0 0.0
        %3544 = vmatpush1.msra.mxu0 0.0
        %3545 = vmatprep.subr.mxu0 0.0
        %3546 = vmatpush1.msra.mxu0 0.0
        %3547 = vmatprep.subr.mxu0 0.0
        %3548 = vmatpush1.msra.mxu0 0.0
        %3549 = vmatprep.subr.mxu0 0.0
        %3550 = vmatpush1.msra.mxu0 0.0
        %3551 = vmatprep.subr.mxu0 0.0
        %3552 = vmatpush1.msra.mxu0 0.0
        %3553 = vmatprep.subr.mxu0 0.0
        %3554 = vmatpush1.msra.mxu0 0.0
        %3555 = vmatprep.subr.mxu0 0.0
        %3556 = vmatpush1.msra.mxu0 0.0
        %3557 = vmatprep.subr.mxu0 0.0
        %3558 = vmatpush1.msra.mxu0 0.0
        %3559 = vmatprep.subr.mxu0 0.0
        %3560 = vmatpush1.msra.mxu0 0.0
        %3561 = vmatprep.subr.mxu0 0.0
        %3562 = vmatpush1.msra.mxu0 0.0
        %3563 = vmatprep.subr.mxu0 0.0
        %3564 = vmatpush1.msra.mxu0 0.0
        %3565 = vmatprep.subr.mxu0 0.0
        %3566 = vmatpush1.msra.mxu0 %v772
        %3567 = vmatprep.subr.mxu0 0.0
        %3568 = vmatpush1.msra.mxu0 %v771
        %3569 = vmatprep.subr.mxu0 0.0
        %3570 = vmatpush2.msra.mxu0 0.0
        %3571 = vmatprep.subr.mxu0 0.0
        %3572 = vmatpush2.msra.mxu0 0.0
        %3573 = vmatprep.subr.mxu0 0.0
        %3574 = vmatpush2.msra.mxu0 0.0
        %3575 = vmatprep.subr.mxu0 0.0
        %3576 = vmatpush2.msra.mxu0 0.0
        %3577 = vmatprep.subr.mxu0 0.0
        %3578 = vmatpush2.msra.mxu0 0.0
        %3579 = vmatprep.subr.mxu0 0.0
        %3580 = vmatpush2.msra.mxu0 0.0
        %3581 = vmatprep.subr.mxu0 0.0
        %3582 = vmatpush2.msra.mxu0 0.0
        %3583 = vmatprep.subr.mxu0 0.0
        %3584 = vmatpush2.msra.mxu0 0.0
        %3585 = vmatprep.subr.mxu0 0.0
        %3586 = vmatpush2.msra.mxu0 0.0
        %3587 = vmatprep.subr.mxu0 0.0
        %3588 = vmatpush2.msra.mxu0 0.0
        %3589 = vmatprep.subr.mxu0 0.0
        %3590 = vmatpush2.msra.mxu0 0.0
        %3591 = vmatprep.subr.mxu0 0.0
        %3592 = vmatpush2.msra.mxu0 0.0
        %3593 = vmatprep.subr.mxu0 0.0
        %3594 = vmatpush2.msra.mxu0 0.0
        %3595 = vmatprep.subr.mxu0 0.0
        %3596 = vmatpush2.msra.mxu0 0.0
        %3597 = vmatprep.subr.mxu0 0.0
        %3598 = vmatpush2.msra.mxu0 0.0
        %3599 = vmatprep.subr.mxu0 0.0
        %3600 = vmatpush2.msra.mxu0 0.0
        %3601 = vmatprep.mubr.f32.mxu0 0.0
        %3602 = vmatmul.mubr.f32.gmra.mxu0 %v3532
        %v3603 = vpop.f32.mrf.mxu0
        %v3604 = vadd.f32 0.0, %v3603
        %v3605 = vpop.f32.mrf.mxu0
        %3606 = vmatprep.mubr.f32.mxu0 0.0
        %3607 = vmatmul.mubr.f32.gmra.mxu0 %v3535
        %v3608 = vpop.f32.mrf.mxu0
        %v3609 = vadd.f32 0.0, %v3608
        %v3610 = vpop.f32.mrf.mxu0
        %3611 = vdwg.mxu0
        %v3613 = vsel %vm2368, %v2711, 0
        %v3616 = vsel %vm2368, %v2712, 0
        %3618 = vmatprep.subr.mxu0 0.0
        %3619 = vmatpush1.msra.mxu0 0.0
        %3620 = vmatprep.subr.mxu0 0.0
        %3621 = vmatpush1.msra.mxu0 0.0
        %3622 = vmatprep.subr.mxu0 0.0
        %3623 = vmatpush1.msra.mxu0 0.0
        %3624 = vmatprep.subr.mxu0 0.0
        %3625 = vmatpush1.msra.mxu0 0.0
        %3626 = vmatprep.subr.mxu0 0.0
        %3627 = vmatpush1.msra.mxu0 0.0
        %3628 = vmatprep.subr.mxu0 0.0
        %3629 = vmatpush1.msra.mxu0 0.0
        %3630 = vmatprep.subr.mxu0 0.0
        %3631 = vmatpush1.msra.mxu0 0.0
        %3632 = vmatprep.subr.mxu0 0.0
        %3633 = vmatpush1.msra.mxu0 0.0
        %3634 = vmatprep.subr.mxu0 0.0
        %3635 = vmatpush1.msra.mxu0 0.0
        %3636 = vmatprep.subr.mxu0 0.0
        %3637 = vmatpush1.msra.mxu0 0.0
        %3638 = vmatprep.subr.mxu0 0.0
        %3639 = vmatpush1.msra.mxu0 0.0
        %3640 = vmatprep.subr.mxu0 0.0
        %3641 = vmatpush1.msra.mxu0 0.0
        %3642 = vmatprep.subr.mxu0 0.0
        %3643 = vmatpush1.msra.mxu0 0.0
        %3644 = vmatprep.subr.mxu0 0.0
        %3645 = vmatpush1.msra.mxu0 0.0
        %3646 = vmatprep.subr.mxu0 0.0
        %3647 = vmatpush1.msra.mxu0 %v804
        %3648 = vmatprep.subr.mxu0 0.0
        %3649 = vmatpush1.msra.mxu0 %v803
        %3650 = vmatprep.subr.mxu0 0.0
        %3651 = vmatpush2.msra.mxu0 0.0
        %3652 = vmatprep.subr.mxu0 0.0
        %3653 = vmatpush2.msra.mxu0 0.0
        %3654 = vmatprep.subr.mxu0 0.0
        %3655 = vmatpush2.msra.mxu0 0.0
        %3656 = vmatprep.subr.mxu0 0.0
        %3657 = vmatpush2.msra.mxu0 0.0
        %3658 = vmatprep.subr.mxu0 0.0
        %3659 = vmatpush2.msra.mxu0 0.0
        %3660 = vmatprep.subr.mxu0 0.0
        %3661 = vmatpush2.msra.mxu0 0.0
        %3662 = vmatprep.subr.mxu0 0.0
        %3663 = vmatpush2.msra.mxu0 0.0
        %3664 = vmatprep.subr.mxu0 0.0
        %3665 = vmatpush2.msra.mxu0 0.0
        %3666 = vmatprep.subr.mxu0 0.0
        %3667 = vmatpush2.msra.mxu0 0.0
        %3668 = vmatprep.subr.mxu0 0.0
        %3669 = vmatpush2.msra.mxu0 0.0
        %3670 = vmatprep.subr.mxu0 0.0
        %3671 = vmatpush2.msra.mxu0 0.0
        %3672 = vmatprep.subr.mxu0 0.0
        %3673 = vmatpush2.msra.mxu0 0.0
        %3674 = vmatprep.subr.mxu0 0.0
        %3675 = vmatpush2.msra.mxu0 0.0
        %3676 = vmatprep.subr.mxu0 0.0
        %3677 = vmatpush2.msra.mxu0 0.0
        %3678 = vmatprep.subr.mxu0 0.0
        %3679 = vmatpush2.msra.mxu0 0.0
        %3680 = vmatprep.subr.mxu0 0.0
        %3681 = vmatpush2.msra.mxu0 0.0
        %3682 = vmatprep.mubr.f32.mxu0 0.0
        %3683 = vmatmul.mubr.f32.gmra.mxu0 %v3613
        %v3684 = vpop.f32.mrf.mxu0
        %v3685 = vadd.f32 0.0, %v3684
        %v3686 = vpop.f32.mrf.mxu0
        %3687 = vmatprep.mubr.f32.mxu0 0.0
        %3688 = vmatmul.mubr.f32.gmra.mxu0 %v3616
        %v3689 = vpop.f32.mrf.mxu0
        %v3690 = vadd.f32 0.0, %v3689
        %v3691 = vpop.f32.mrf.mxu0
        %3692 = vdwg.mxu0
        %v3694 = vsel %vm2368, %v2713, 0
        %v3697 = vsel %vm2368, %v2714, 0
        %3699 = vmatprep.subr.mxu0 0.0
        %3700 = vmatpush1.msra.mxu0 0.0
        %3701 = vmatprep.subr.mxu0 0.0
        %3702 = vmatpush1.msra.mxu0 0.0
        %3703 = vmatprep.subr.mxu0 0.0
        %3704 = vmatpush1.msra.mxu0 0.0
        %3705 = vmatprep.subr.mxu0 0.0
        %3706 = vmatpush1.msra.mxu0 0.0
        %3707 = vmatprep.subr.mxu0 0.0
        %3708 = vmatpush1.msra.mxu0 0.0
        %3709 = vmatprep.subr.mxu0 0.0
        %3710 = vmatpush1.msra.mxu0 0.0
        %3711 = vmatprep.subr.mxu0 0.0
        %3712 = vmatpush1.msra.mxu0 0.0
        %3713 = vmatprep.subr.mxu0 0.0
        %3714 = vmatpush1.msra.mxu0 0.0
        %3715 = vmatprep.subr.mxu0 0.0
        %3716 = vmatpush1.msra.mxu0 0.0
        %3717 = vmatprep.subr.mxu0 0.0
        %3718 = vmatpush1.msra.mxu0 0.0
        %3719 = vmatprep.subr.mxu0 0.0
        %3720 = vmatpush1.msra.mxu0 0.0
        %3721 = vmatprep.subr.mxu0 0.0
        %3722 = vmatpush1.msra.mxu0 0.0
        %3723 = vmatprep.subr.mxu0 0.0
        %3724 = vmatpush1.msra.mxu0 0.0
        %3725 = vmatprep.subr.mxu0 0.0
        %3726 = vmatpush1.msra.mxu0 0.0
        %3727 = vmatprep.subr.mxu0 0.0
        %3728 = vmatpush1.msra.mxu0 %v836
        %3729 = vmatprep.subr.mxu0 0.0
        %3730 = vmatpush1.msra.mxu0 %v835
        %3731 = vmatprep.subr.mxu0 0.0
        %3732 = vmatpush2.msra.mxu0 0.0
        %3733 = vmatprep.subr.mxu0 0.0
        %3734 = vmatpush2.msra.mxu0 0.0
        %3735 = vmatprep.subr.mxu0 0.0
        %3736 = vmatpush2.msra.mxu0 0.0
        %3737 = vmatprep.subr.mxu0 0.0
        %3738 = vmatpush2.msra.mxu0 0.0
        %3739 = vmatprep.subr.mxu0 0.0
        %3740 = vmatpush2.msra.mxu0 0.0
        %3741 = vmatprep.subr.mxu0 0.0
        %3742 = vmatpush2.msra.mxu0 0.0
        %3743 = vmatprep.subr.mxu0 0.0
        %3744 = vmatpush2.msra.mxu0 0.0
        %3745 = vmatprep.subr.mxu0 0.0
        %3746 = vmatpush2.msra.mxu0 0.0
        %3747 = vmatprep.subr.mxu0 0.0
        %3748 = vmatpush2.msra.mxu0 0.0
        %3749 = vmatprep.subr.mxu0 0.0
        %3750 = vmatpush2.msra.mxu0 0.0
        %3751 = vmatprep.subr.mxu0 0.0
        %3752 = vmatpush2.msra.mxu0 0.0
        %3753 = vmatprep.subr.mxu0 0.0
        %3754 = vmatpush2.msra.mxu0 0.0
        %3755 = vmatprep.subr.mxu0 0.0
        %3756 = vmatpush2.msra.mxu0 0.0
        %3757 = vmatprep.subr.mxu0 0.0
        %3758 = vmatpush2.msra.mxu0 0.0
        %3759 = vmatprep.subr.mxu0 0.0
        %3760 = vmatpush2.msra.mxu0 0.0
        %3761 = vmatprep.subr.mxu0 0.0
        %3762 = vmatpush2.msra.mxu0 0.0
        %3763 = vmatprep.mubr.f32.mxu0 0.0
        %3764 = vmatmul.mubr.f32.gmra.mxu0 %v3694
        %v3765 = vpop.f32.mrf.mxu0
        %v3766 = vadd.f32 0.0, %v3765
        %v3767 = vpop.f32.mrf.mxu0
        %3768 = vmatprep.mubr.f32.mxu0 0.0
        %3769 = vmatmul.mubr.f32.gmra.mxu0 %v3697
        %v3770 = vpop.f32.mrf.mxu0
        %v3771 = vadd.f32 0.0, %v3770
        %v3772 = vpop.f32.mrf.mxu0
        %3773 = vdwg.mxu0
        %v3775 = vsel %vm2368, %v2715, 0
        %v3778 = vsel %vm2368, %v2716, 0
        %3780 = vmatprep.subr.mxu0 0.0
        %3781 = vmatpush1.msra.mxu0 0.0
        %3782 = vmatprep.subr.mxu0 0.0
        %3783 = vmatpush1.msra.mxu0 0.0
        %3784 = vmatprep.subr.mxu0 0.0
        %3785 = vmatpush1.msra.mxu0 0.0
        %3786 = vmatprep.subr.mxu0 0.0
        %3787 = vmatpush1.msra.mxu0 0.0
        %3788 = vmatprep.subr.mxu0 0.0
        %3789 = vmatpush1.msra.mxu0 0.0
        %3790 = vmatprep.subr.mxu0 0.0
        %3791 = vmatpush1.msra.mxu0 0.0
        %3792 = vmatprep.subr.mxu0 0.0
        %3793 = vmatpush1.msra.mxu0 0.0
        %3794 = vmatprep.subr.mxu0 0.0
        %3795 = vmatpush1.msra.mxu0 0.0
        %3796 = vmatprep.subr.mxu0 0.0
        %3797 = vmatpush1.msra.mxu0 0.0
        %3798 = vmatprep.subr.mxu0 0.0
        %3799 = vmatpush1.msra.mxu0 0.0
        %3800 = vmatprep.subr.mxu0 0.0
        %3801 = vmatpush1.msra.mxu0 0.0
        %3802 = vmatprep.subr.mxu0 0.0
        %3803 = vmatpush1.msra.mxu0 0.0
        %3804 = vmatprep.subr.mxu0 0.0
        %3805 = vmatpush1.msra.mxu0 0.0
        %3806 = vmatprep.subr.mxu0 0.0
        %3807 = vmatpush1.msra.mxu0 0.0
        %3808 = vmatprep.subr.mxu0 0.0
        %3809 = vmatpush1.msra.mxu0 %v868
        %3810 = vmatprep.subr.mxu0 0.0
        %3811 = vmatpush1.msra.mxu0 %v867
        %3812 = vmatprep.subr.mxu0 0.0
        %3813 = vmatpush2.msra.mxu0 0.0
        %3814 = vmatprep.subr.mxu0 0.0
        %3815 = vmatpush2.msra.mxu0 0.0
        %3816 = vmatprep.subr.mxu0 0.0
        %3817 = vmatpush2.msra.mxu0 0.0
        %3818 = vmatprep.subr.mxu0 0.0
        %3819 = vmatpush2.msra.mxu0 0.0
        %3820 = vmatprep.subr.mxu0 0.0
        %3821 = vmatpush2.msra.mxu0 0.0
        %3822 = vmatprep.subr.mxu0 0.0
        %3823 = vmatpush2.msra.mxu0 0.0
        %3824 = vmatprep.subr.mxu0 0.0
        %3825 = vmatpush2.msra.mxu0 0.0
        %3826 = vmatprep.subr.mxu0 0.0
        %3827 = vmatpush2.msra.mxu0 0.0
        %3828 = vmatprep.subr.mxu0 0.0
        %3829 = vmatpush2.msra.mxu0 0.0
        %3830 = vmatprep.subr.mxu0 0.0
        %3831 = vmatpush2.msra.mxu0 0.0
        %3832 = vmatprep.subr.mxu0 0.0
        %3833 = vmatpush2.msra.mxu0 0.0
        %3834 = vmatprep.subr.mxu0 0.0
        %3835 = vmatpush2.msra.mxu0 0.0
        %3836 = vmatprep.subr.mxu0 0.0
        %3837 = vmatpush2.msra.mxu0 0.0
        %3838 = vmatprep.subr.mxu0 0.0
        %3839 = vmatpush2.msra.mxu0 0.0
        %3840 = vmatprep.subr.mxu0 0.0
        %3841 = vmatpush2.msra.mxu0 0.0
        %3842 = vmatprep.subr.mxu0 0.0
        %3843 = vmatpush2.msra.mxu0 0.0
        %3844 = vmatprep.mubr.f32.mxu0 0.0
        %3845 = vmatmul.mubr.f32.gmra.mxu0 %v3775
        %v3846 = vpop.f32.mrf.mxu0
        %v3847 = vadd.f32 0.0, %v3846
        %v3848 = vpop.f32.mrf.mxu0
        %3849 = vmatprep.mubr.f32.mxu0 0.0
        %3850 = vmatmul.mubr.f32.gmra.mxu0 %v3778
        %v3851 = vpop.f32.mrf.mxu0
        %v3852 = vadd.f32 0.0, %v3851
        %v3853 = vpop.f32.mrf.mxu0
        %3854 = vdwg.mxu0
        %v3856 = vsel %vm2368, %v2717, 0
        %v3859 = vsel %vm2368, %v2718, 0
        %3861 = vmatprep.subr.mxu0 0.0
        %3862 = vmatpush1.msra.mxu0 0.0
        %3863 = vmatprep.subr.mxu0 0.0
        %3864 = vmatpush1.msra.mxu0 0.0
        %3865 = vmatprep.subr.mxu0 0.0
        %3866 = vmatpush1.msra.mxu0 0.0
        %3867 = vmatprep.subr.mxu0 0.0
        %3868 = vmatpush1.msra.mxu0 0.0
        %3869 = vmatprep.subr.mxu0 0.0
        %3870 = vmatpush1.msra.mxu0 0.0
        %3871 = vmatprep.subr.mxu0 0.0
        %3872 = vmatpush1.msra.mxu0 0.0
        %3873 = vmatprep.subr.mxu0 0.0
        %3874 = vmatpush1.msra.mxu0 0.0
        %3875 = vmatprep.subr.mxu0 0.0
        %3876 = vmatpush1.msra.mxu0 0.0
        %3877 = vmatprep.subr.mxu0 0.0
        %3878 = vmatpush1.msra.mxu0 0.0
        %3879 = vmatprep.subr.mxu0 0.0
        %3880 = vmatpush1.msra.mxu0 0.0
        %3881 = vmatprep.subr.mxu0 0.0
        %3882 = vmatpush1.msra.mxu0 0.0
        %3883 = vmatprep.subr.mxu0 0.0
        %3884 = vmatpush1.msra.mxu0 0.0
        %3885 = vmatprep.subr.mxu0 0.0
        %3886 = vmatpush1.msra.mxu0 0.0
        %3887 = vmatprep.subr.mxu0 0.0
        %3888 = vmatpush1.msra.mxu0 0.0
        %3889 = vmatprep.subr.mxu0 0.0
        %3890 = vmatpush1.msra.mxu0 %v900
        %3891 = vmatprep.subr.mxu0 0.0
        %3892 = vmatpush1.msra.mxu0 %v899
        %3893 = vmatprep.subr.mxu0 0.0
        %3894 = vmatpush2.msra.mxu0 0.0
        %3895 = vmatprep.subr.mxu0 0.0
        %3896 = vmatpush2.msra.mxu0 0.0
        %3897 = vmatprep.subr.mxu0 0.0
        %3898 = vmatpush2.msra.mxu0 0.0
        %3899 = vmatprep.subr.mxu0 0.0
        %3900 = vmatpush2.msra.mxu0 0.0
        %3901 = vmatprep.subr.mxu0 0.0
        %3902 = vmatpush2.msra.mxu0 0.0
        %3903 = vmatprep.subr.mxu0 0.0
        %3904 = vmatpush2.msra.mxu0 0.0
        %3905 = vmatprep.subr.mxu0 0.0
        %3906 = vmatpush2.msra.mxu0 0.0
        %3907 = vmatprep.subr.mxu0 0.0
        %3908 = vmatpush2.msra.mxu0 0.0
        %3909 = vmatprep.subr.mxu0 0.0
        %3910 = vmatpush2.msra.mxu0 0.0
        %3911 = vmatprep.subr.mxu0 0.0
        %3912 = vmatpush2.msra.mxu0 0.0
        %3913 = vmatprep.subr.mxu0 0.0
        %3914 = vmatpush2.msra.mxu0 0.0
        %3915 = vmatprep.subr.mxu0 0.0
        %3916 = vmatpush2.msra.mxu0 0.0
        %3917 = vmatprep.subr.mxu0 0.0
        %3918 = vmatpush2.msra.mxu0 0.0
        %3919 = vmatprep.subr.mxu0 0.0
        %3920 = vmatpush2.msra.mxu0 0.0
        %3921 = vmatprep.subr.mxu0 0.0
        %3922 = vmatpush2.msra.mxu0 0.0
        %3923 = vmatprep.subr.mxu0 0.0
        %3924 = vmatpush2.msra.mxu0 0.0
        %3925 = vmatprep.mubr.f32.mxu0 0.0
        %3926 = vmatmul.mubr.f32.gmra.mxu0 %v3856
        %v3927 = vpop.f32.mrf.mxu0
        %v3928 = vadd.f32 0.0, %v3927
        %v3929 = vpop.f32.mrf.mxu0
        %3930 = vmatprep.mubr.f32.mxu0 0.0
        %3931 = vmatmul.mubr.f32.gmra.mxu0 %v3859
        %v3932 = vpop.f32.mrf.mxu0
        %v3933 = vadd.f32 0.0, %v3932
        %v3934 = vpop.f32.mrf.mxu0
        %3935 = vdwg.mxu0
        %v3937 = vsel %vm2368, %v2719, 0
        %v3940 = vsel %vm2368, %v2720, 0
        %3942 = vmatprep.subr.mxu0 0.0
        %3943 = vmatpush1.msra.mxu0 0.0
        %3944 = vmatprep.subr.mxu0 0.0
        %3945 = vmatpush1.msra.mxu0 0.0
        %3946 = vmatprep.subr.mxu0 0.0
        %3947 = vmatpush1.msra.mxu0 0.0
        %3948 = vmatprep.subr.mxu0 0.0
        %3949 = vmatpush1.msra.mxu0 0.0
        %3950 = vmatprep.subr.mxu0 0.0
        %3951 = vmatpush1.msra.mxu0 0.0
        %3952 = vmatprep.subr.mxu0 0.0
        %3953 = vmatpush1.msra.mxu0 0.0
        %3954 = vmatprep.subr.mxu0 0.0
        %3955 = vmatpush1.msra.mxu0 0.0
        %3956 = vmatprep.subr.mxu0 0.0
        %3957 = vmatpush1.msra.mxu0 0.0
        %3958 = vmatprep.subr.mxu0 0.0
        %3959 = vmatpush1.msra.mxu0 0.0
        %3960 = vmatprep.subr.mxu0 0.0
        %3961 = vmatpush1.msra.mxu0 0.0
        %3962 = vmatprep.subr.mxu0 0.0
        %3963 = vmatpush1.msra.mxu0 0.0
        %3964 = vmatprep.subr.mxu0 0.0
        %3965 = vmatpush1.msra.mxu0 0.0
        %3966 = vmatprep.subr.mxu0 0.0
        %3967 = vmatpush1.msra.mxu0 0.0
        %3968 = vmatprep.subr.mxu0 0.0
        %3969 = vmatpush1.msra.mxu0 0.0
        %3970 = vmatprep.subr.mxu0 0.0
        %3971 = vmatpush1.msra.mxu0 %v932
        %3972 = vmatprep.subr.mxu0 0.0
        %3973 = vmatpush1.msra.mxu0 %v931
        %3974 = vmatprep.subr.mxu0 0.0
        %3975 = vmatpush2.msra.mxu0 0.0
        %3976 = vmatprep.subr.mxu0 0.0
        %3977 = vmatpush2.msra.mxu0 0.0
        %3978 = vmatprep.subr.mxu0 0.0
        %3979 = vmatpush2.msra.mxu0 0.0
        %3980 = vmatprep.subr.mxu0 0.0
        %3981 = vmatpush2.msra.mxu0 0.0
        %3982 = vmatprep.subr.mxu0 0.0
        %3983 = vmatpush2.msra.mxu0 0.0
        %3984 = vmatprep.subr.mxu0 0.0
        %3985 = vmatpush2.msra.mxu0 0.0
        %3986 = vmatprep.subr.mxu0 0.0
        %3987 = vmatpush2.msra.mxu0 0.0
        %3988 = vmatprep.subr.mxu0 0.0
        %3989 = vmatpush2.msra.mxu0 0.0
        %3990 = vmatprep.subr.mxu0 0.0
        %3991 = vmatpush2.msra.mxu0 0.0
        %3992 = vmatprep.subr.mxu0 0.0
        %3993 = vmatpush2.msra.mxu0 0.0
        %3994 = vmatprep.subr.mxu0 0.0
        %3995 = vmatpush2.msra.mxu0 0.0
        %3996 = vmatprep.subr.mxu0 0.0
        %3997 = vmatpush2.msra.mxu0 0.0
        %3998 = vmatprep.subr.mxu0 0.0
        %3999 = vmatpush2.msra.mxu0 0.0
        %4000 = vmatprep.subr.mxu0 0.0
        %4001 = vmatpush2.msra.mxu0 0.0
        %4002 = vmatprep.subr.mxu0 0.0
        %4003 = vmatpush2.msra.mxu0 0.0
        %4004 = vmatprep.subr.mxu0 0.0
        %4005 = vmatpush2.msra.mxu0 0.0
        %4006 = vmatprep.mubr.f32.mxu0 0.0
        %4007 = vmatmul.mubr.f32.gmra.mxu0 %v3937
        %v4008 = vpop.f32.mrf.mxu0
        %v4009 = vadd.f32 0.0, %v4008
        %v4010 = vpop.f32.mrf.mxu0
        %4011 = vmatprep.mubr.f32.mxu0 0.0
        %4012 = vmatmul.mubr.f32.gmra.mxu0 %v3940
        %v4013 = vpop.f32.mrf.mxu0
        %v4014 = vadd.f32 0.0, %v4013
        %v4015 = vpop.f32.mrf.mxu0
        %4016 = vdwg.mxu0
        %4017 = vxpose.xlu0.b32.start [1/16] %v2794, 128
        %4018 = vxpose.xlu0.b32.cont [2/16] %v2799, 128
        %4019 = vxpose.xlu0.b32.cont [3/16] 0.0, 128
        %4020 = vxpose.xlu0.b32.cont [4/16] 0.0, 128
        %4021 = vxpose.xlu0.b32.cont [5/16] 0.0, 128
        %4022 = vxpose.xlu0.b32.cont [6/16] 0.0, 128
        %4023 = vxpose.xlu0.b32.cont [7/16] 0.0, 128
        %4024 = vxpose.xlu0.b32.cont [8/16] 0.0, 128
        %4025 = vxpose.xlu0.b32.cont [9/16] 0.0, 128
        %4026 = vxpose.xlu0.b32.cont [10/16] 0.0, 128
        %4027 = vxpose.xlu0.b32.cont [11/16] 0.0, 128
        %4028 = vxpose.xlu0.b32.cont [12/16] 0.0, 128
        %4029 = vxpose.xlu0.b32.cont [13/16] 0.0, 128
        %4030 = vxpose.xlu0.b32.cont [14/16] 0.0, 128
        %4031 = vxpose.xlu0.b32.cont [15/16] 0.0, 128
        %4032 = vxpose.xlu0.b32.end [16/16] 0.0, 128
        %v4033 = vpop.trf.xlu0
        %v4034 = vpop.trf.xlu0
        %v4035 = vpop.trf.xlu0
        %v4036 = vpop.trf.xlu0
        %v4037 = vpop.trf.xlu0
        %v4038 = vpop.trf.xlu0
        %v4039 = vpop.trf.xlu0
        %v4040 = vpop.trf.xlu0
        %v4041 = vpop.trf.xlu0
        %v4042 = vpop.trf.xlu0
        %v4043 = vpop.trf.xlu0
        %v4044 = vpop.trf.xlu0
        %v4045 = vpop.trf.xlu0
        %v4046 = vpop.trf.xlu0
        %v4047 = vpop.trf.xlu0
        %v4048 = vpop.trf.xlu0
        %4049 = vxpose.xlu0.b32.start [1/16] %v2875, 128
        %4050 = vxpose.xlu0.b32.cont [2/16] %v2880, 128
        %4051 = vxpose.xlu0.b32.cont [3/16] 0.0, 128
        %4052 = vxpose.xlu0.b32.cont [4/16] 0.0, 128
        %4053 = vxpose.xlu0.b32.cont [5/16] 0.0, 128
        %4054 = vxpose.xlu0.b32.cont [6/16] 0.0, 128
        %4055 = vxpose.xlu0.b32.cont [7/16] 0.0, 128
        %4056 = vxpose.xlu0.b32.cont [8/16] 0.0, 128
        %4057 = vxpose.xlu0.b32.cont [9/16] 0.0, 128
        %4058 = vxpose.xlu0.b32.cont [10/16] 0.0, 128
        %4059 = vxpose.xlu0.b32.cont [11/16] 0.0, 128
        %4060 = vxpose.xlu0.b32.cont [12/16] 0.0, 128
        %4061 = vxpose.xlu0.b32.cont [13/16] 0.0, 128
        %4062 = vxpose.xlu0.b32.cont [14/16] 0.0, 128
        %4063 = vxpose.xlu0.b32.cont [15/16] 0.0, 128
        %4064 = vxpose.xlu0.b32.end [16/16] 0.0, 128
        %v4065 = vpop.trf.xlu0
        %v4066 = vpop.trf.xlu0
        %v4067 = vpop.trf.xlu0
        %v4068 = vpop.trf.xlu0
        %v4069 = vpop.trf.xlu0
        %v4070 = vpop.trf.xlu0
        %v4071 = vpop.trf.xlu0
        %v4072 = vpop.trf.xlu0
        %v4073 = vpop.trf.xlu0
        %v4074 = vpop.trf.xlu0
        %v4075 = vpop.trf.xlu0
        %v4076 = vpop.trf.xlu0
        %v4077 = vpop.trf.xlu0
        %v4078 = vpop.trf.xlu0
        %v4079 = vpop.trf.xlu0
        %v4080 = vpop.trf.xlu0
        %4081 = vxpose.xlu0.b32.start [1/16] %v2956, 128
        %4082 = vxpose.xlu0.b32.cont [2/16] %v2961, 128
        %4083 = vxpose.xlu0.b32.cont [3/16] 0.0, 128
        %4084 = vxpose.xlu0.b32.cont [4/16] 0.0, 128
        %4085 = vxpose.xlu0.b32.cont [5/16] 0.0, 128
        %4086 = vxpose.xlu0.b32.cont [6/16] 0.0, 128
        %4087 = vxpose.xlu0.b32.cont [7/16] 0.0, 128
        %4088 = vxpose.xlu0.b32.cont [8/16] 0.0, 128
        %4089 = vxpose.xlu0.b32.cont [9/16] 0.0, 128
        %4090 = vxpose.xlu0.b32.cont [10/16] 0.0, 128
        %4091 = vxpose.xlu0.b32.cont [11/16] 0.0, 128
        %4092 = vxpose.xlu0.b32.cont [12/16] 0.0, 128
        %4093 = vxpose.xlu0.b32.cont [13/16] 0.0, 128
        %4094 = vxpose.xlu0.b32.cont [14/16] 0.0, 128
        %4095 = vxpose.xlu0.b32.cont [15/16] 0.0, 128
        %4096 = vxpose.xlu0.b32.end [16/16] 0.0, 128
        %v4097 = vpop.trf.xlu0
        %v4098 = vpop.trf.xlu0
        %v4099 = vpop.trf.xlu0
        %v4100 = vpop.trf.xlu0
        %v4101 = vpop.trf.xlu0
        %v4102 = vpop.trf.xlu0
        %v4103 = vpop.trf.xlu0
        %v4104 = vpop.trf.xlu0
        %v4105 = vpop.trf.xlu0
        %v4106 = vpop.trf.xlu0
        %v4107 = vpop.trf.xlu0
        %v4108 = vpop.trf.xlu0
        %v4109 = vpop.trf.xlu0
        %v4110 = vpop.trf.xlu0
        %v4111 = vpop.trf.xlu0
        %v4112 = vpop.trf.xlu0
        %4113 = vxpose.xlu0.b32.start [1/16] %v3037, 128
        %4114 = vxpose.xlu0.b32.cont [2/16] %v3042, 128
        %4115 = vxpose.xlu0.b32.cont [3/16] 0.0, 128
        %4116 = vxpose.xlu0.b32.cont [4/16] 0.0, 128
        %4117 = vxpose.xlu0.b32.cont [5/16] 0.0, 128
        %4118 = vxpose.xlu0.b32.cont [6/16] 0.0, 128
        %4119 = vxpose.xlu0.b32.cont [7/16] 0.0, 128
        %4120 = vxpose.xlu0.b32.cont [8/16] 0.0, 128
        %4121 = vxpose.xlu0.b32.cont [9/16] 0.0, 128
        %4122 = vxpose.xlu0.b32.cont [10/16] 0.0, 128
        %4123 = vxpose.xlu0.b32.cont [11/16] 0.0, 128
        %4124 = vxpose.xlu0.b32.cont [12/16] 0.0, 128
        %4125 = vxpose.xlu0.b32.cont [13/16] 0.0, 128
        %4126 = vxpose.xlu0.b32.cont [14/16] 0.0, 128
        %4127 = vxpose.xlu0.b32.cont [15/16] 0.0, 128
        %4128 = vxpose.xlu0.b32.end [16/16] 0.0, 128
        %v4129 = vpop.trf.xlu0
        %v4130 = vpop.trf.xlu0
        %v4131 = vpop.trf.xlu0
        %v4132 = vpop.trf.xlu0
        %v4133 = vpop.trf.xlu0
        %v4134 = vpop.trf.xlu0
        %v4135 = vpop.trf.xlu0
        %v4136 = vpop.trf.xlu0
        %v4137 = vpop.trf.xlu0
        %v4138 = vpop.trf.xlu0
        %v4139 = vpop.trf.xlu0
        %v4140 = vpop.trf.xlu0
        %v4141 = vpop.trf.xlu0
        %v4142 = vpop.trf.xlu0
        %v4143 = vpop.trf.xlu0
        %v4144 = vpop.trf.xlu0
        %4145 = vxpose.xlu0.b32.start [1/16] %v3118, 128
        %4146 = vxpose.xlu0.b32.cont [2/16] %v3123, 128
        %4147 = vxpose.xlu0.b32.cont [3/16] 0.0, 128
        %4148 = vxpose.xlu0.b32.cont [4/16] 0.0, 128
        %4149 = vxpose.xlu0.b32.cont [5/16] 0.0, 128
        %4150 = vxpose.xlu0.b32.cont [6/16] 0.0, 128
        %4151 = vxpose.xlu0.b32.cont [7/16] 0.0, 128
        %4152 = vxpose.xlu0.b32.cont [8/16] 0.0, 128
        %4153 = vxpose.xlu0.b32.cont [9/16] 0.0, 128
        %4154 = vxpose.xlu0.b32.cont [10/16] 0.0, 128
        %4155 = vxpose.xlu0.b32.cont [11/16] 0.0, 128
        %4156 = vxpose.xlu0.b32.cont [12/16] 0.0, 128
        %4157 = vxpose.xlu0.b32.cont [13/16] 0.0, 128
        %4158 = vxpose.xlu0.b32.cont [14/16] 0.0, 128
        %4159 = vxpose.xlu0.b32.cont [15/16] 0.0, 128
        %4160 = vxpose.xlu0.b32.end [16/16] 0.0, 128
        %v4161 = vpop.trf.xlu0
        %v4162 = vpop.trf.xlu0
        %v4163 = vpop.trf.xlu0
        %v4164 = vpop.trf.xlu0
        %v4165 = vpop.trf.xlu0
        %v4166 = vpop.trf.xlu0
        %v4167 = vpop.trf.xlu0
        %v4168 = vpop.trf.xlu0
        %v4169 = vpop.trf.xlu0
        %v4170 = vpop.trf.xlu0
        %v4171 = vpop.trf.xlu0
        %v4172 = vpop.trf.xlu0
        %v4173 = vpop.trf.xlu0
        %v4174 = vpop.trf.xlu0
        %v4175 = vpop.trf.xlu0
        %v4176 = vpop.trf.xlu0
        %4177 = vxpose.xlu0.b32.start [1/16] %v3199, 128
        %4178 = vxpose.xlu0.b32.cont [2/16] %v3204, 128
        %4179 = vxpose.xlu0.b32.cont [3/16] 0.0, 128
        %4180 = vxpose.xlu0.b32.cont [4/16] 0.0, 128
        %4181 = vxpose.xlu0.b32.cont [5/16] 0.0, 128
        %4182 = vxpose.xlu0.b32.cont [6/16] 0.0, 128
        %4183 = vxpose.xlu0.b32.cont [7/16] 0.0, 128
        %4184 = vxpose.xlu0.b32.cont [8/16] 0.0, 128
        %4185 = vxpose.xlu0.b32.cont [9/16] 0.0, 128
        %4186 = vxpose.xlu0.b32.cont [10/16] 0.0, 128
        %4187 = vxpose.xlu0.b32.cont [11/16] 0.0, 128
        %4188 = vxpose.xlu0.b32.cont [12/16] 0.0, 128
        %4189 = vxpose.xlu0.b32.cont [13/16] 0.0, 128
        %4190 = vxpose.xlu0.b32.cont [14/16] 0.0, 128
        %4191 = vxpose.xlu0.b32.cont [15/16] 0.0, 128
        %4192 = vxpose.xlu0.b32.end [16/16] 0.0, 128
        %v4193 = vpop.trf.xlu0
        %v4194 = vpop.trf.xlu0
        %v4195 = vpop.trf.xlu0
        %v4196 = vpop.trf.xlu0
        %v4197 = vpop.trf.xlu0
        %v4198 = vpop.trf.xlu0
        %v4199 = vpop.trf.xlu0
        %v4200 = vpop.trf.xlu0
        %v4201 = vpop.trf.xlu0
        %v4202 = vpop.trf.xlu0
        %v4203 = vpop.trf.xlu0
        %v4204 = vpop.trf.xlu0
        %v4205 = vpop.trf.xlu0
        %v4206 = vpop.trf.xlu0
        %v4207 = vpop.trf.xlu0
        %v4208 = vpop.trf.xlu0
        %4209 = vxpose.xlu0.b32.start [1/16] %v3280, 128
        %4210 = vxpose.xlu0.b32.cont [2/16] %v3285, 128
        %4211 = vxpose.xlu0.b32.cont [3/16] 0.0, 128
        %4212 = vxpose.xlu0.b32.cont [4/16] 0.0, 128
        %4213 = vxpose.xlu0.b32.cont [5/16] 0.0, 128
        %4214 = vxpose.xlu0.b32.cont [6/16] 0.0, 128
        %4215 = vxpose.xlu0.b32.cont [7/16] 0.0, 128
        %4216 = vxpose.xlu0.b32.cont [8/16] 0.0, 128
        %4217 = vxpose.xlu0.b32.cont [9/16] 0.0, 128
        %4218 = vxpose.xlu0.b32.cont [10/16] 0.0, 128
        %4219 = vxpose.xlu0.b32.cont [11/16] 0.0, 128
        %4220 = vxpose.xlu0.b32.cont [12/16] 0.0, 128
        %4221 = vxpose.xlu0.b32.cont [13/16] 0.0, 128
        %4222 = vxpose.xlu0.b32.cont [14/16] 0.0, 128
        %4223 = vxpose.xlu0.b32.cont [15/16] 0.0, 128
        %4224 = vxpose.xlu0.b32.end [16/16] 0.0, 128
        %v4225 = vpop.trf.xlu0
        %v4226 = vpop.trf.xlu0
        %v4227 = vpop.trf.xlu0
        %v4228 = vpop.trf.xlu0
        %v4229 = vpop.trf.xlu0
        %v4230 = vpop.trf.xlu0
        %v4231 = vpop.trf.xlu0
        %v4232 = vpop.trf.xlu0
        %v4233 = vpop.trf.xlu0
        %v4234 = vpop.trf.xlu0
        %v4235 = vpop.trf.xlu0
        %v4236 = vpop.trf.xlu0
        %v4237 = vpop.trf.xlu0
        %v4238 = vpop.trf.xlu0
        %v4239 = vpop.trf.xlu0
        %v4240 = vpop.trf.xlu0
        %4241 = vxpose.xlu0.b32.start [1/16] %v3361, 128
        %4242 = vxpose.xlu0.b32.cont [2/16] %v3366, 128
        %4243 = vxpose.xlu0.b32.cont [3/16] 0.0, 128
        %4244 = vxpose.xlu0.b32.cont [4/16] 0.0, 128
        %4245 = vxpose.xlu0.b32.cont [5/16] 0.0, 128
        %4246 = vxpose.xlu0.b32.cont [6/16] 0.0, 128
        %4247 = vxpose.xlu0.b32.cont [7/16] 0.0, 128
        %4248 = vxpose.xlu0.b32.cont [8/16] 0.0, 128
        %4249 = vxpose.xlu0.b32.cont [9/16] 0.0, 128
        %4250 = vxpose.xlu0.b32.cont [10/16] 0.0, 128
        %4251 = vxpose.xlu0.b32.cont [11/16] 0.0, 128
        %4252 = vxpose.xlu0.b32.cont [12/16] 0.0, 128
        %4253 = vxpose.xlu0.b32.cont [13/16] 0.0, 128
        %4254 = vxpose.xlu0.b32.cont [14/16] 0.0, 128
        %4255 = vxpose.xlu0.b32.cont [15/16] 0.0, 128
        %4256 = vxpose.xlu0.b32.end [16/16] 0.0, 128
        %v4257 = vpop.trf.xlu0
        %v4258 = vpop.trf.xlu0
        %v4259 = vpop.trf.xlu0
        %v4260 = vpop.trf.xlu0
        %v4261 = vpop.trf.xlu0
        %v4262 = vpop.trf.xlu0
        %v4263 = vpop.trf.xlu0
        %v4264 = vpop.trf.xlu0
        %v4265 = vpop.trf.xlu0
        %v4266 = vpop.trf.xlu0
        %v4267 = vpop.trf.xlu0
        %v4268 = vpop.trf.xlu0
        %v4269 = vpop.trf.xlu0
        %v4270 = vpop.trf.xlu0
        %v4271 = vpop.trf.xlu0
        %v4272 = vpop.trf.xlu0
        %4273 = vxpose.xlu0.b32.start [1/16] %v3442, 128
        %4274 = vxpose.xlu0.b32.cont [2/16] %v3447, 128
        %4275 = vxpose.xlu0.b32.cont [3/16] 0.0, 128
        %4276 = vxpose.xlu0.b32.cont [4/16] 0.0, 128
        %4277 = vxpose.xlu0.b32.cont [5/16] 0.0, 128
        %4278 = vxpose.xlu0.b32.cont [6/16] 0.0, 128
        %4279 = vxpose.xlu0.b32.cont [7/16] 0.0, 128
        %4280 = vxpose.xlu0.b32.cont [8/16] 0.0, 128
        %4281 = vxpose.xlu0.b32.cont [9/16] 0.0, 128
        %4282 = vxpose.xlu0.b32.cont [10/16] 0.0, 128
        %4283 = vxpose.xlu0.b32.cont [11/16] 0.0, 128
        %4284 = vxpose.xlu0.b32.cont [12/16] 0.0, 128
        %4285 = vxpose.xlu0.b32.cont [13/16] 0.0, 128
        %4286 = vxpose.xlu0.b32.cont [14/16] 0.0, 128
        %4287 = vxpose.xlu0.b32.cont [15/16] 0.0, 128
        %4288 = vxpose.xlu0.b32.end [16/16] 0.0, 128
        %v4289 = vpop.trf.xlu0
        %v4290 = vpop.trf.xlu0
        %v4291 = vpop.trf.xlu0
        %v4292 = vpop.trf.xlu0
        %v4293 = vpop.trf.xlu0
        %v4294 = vpop.trf.xlu0
        %v4295 = vpop.trf.xlu0
        %v4296 = vpop.trf.xlu0
        %v4297 = vpop.trf.xlu0
        %v4298 = vpop.trf.xlu0
        %v4299 = vpop.trf.xlu0
        %v4300 = vpop.trf.xlu0
        %v4301 = vpop.trf.xlu0
        %v4302 = vpop.trf.xlu0
        %v4303 = vpop.trf.xlu0
        %v4304 = vpop.trf.xlu0
        %4305 = vxpose.xlu0.b32.start [1/16] %v3523, 128
        %4306 = vxpose.xlu0.b32.cont [2/16] %v3528, 128
        %4307 = vxpose.xlu0.b32.cont [3/16] 0.0, 128
        %4308 = vxpose.xlu0.b32.cont [4/16] 0.0, 128
        %4309 = vxpose.xlu0.b32.cont [5/16] 0.0, 128
        %4310 = vxpose.xlu0.b32.cont [6/16] 0.0, 128
        %4311 = vxpose.xlu0.b32.cont [7/16] 0.0, 128
        %4312 = vxpose.xlu0.b32.cont [8/16] 0.0, 128
        %4313 = vxpose.xlu0.b32.cont [9/16] 0.0, 128
        %4314 = vxpose.xlu0.b32.cont [10/16] 0.0, 128
        %4315 = vxpose.xlu0.b32.cont [11/16] 0.0, 128
        %4316 = vxpose.xlu0.b32.cont [12/16] 0.0, 128
        %4317 = vxpose.xlu0.b32.cont [13/16] 0.0, 128
        %4318 = vxpose.xlu0.b32.cont [14/16] 0.0, 128
        %4319 = vxpose.xlu0.b32.cont [15/16] 0.0, 128
        %4320 = vxpose.xlu0.b32.end [16/16] 0.0, 128
        %v4321 = vpop.trf.xlu0
        %v4322 = vpop.trf.xlu0
        %v4323 = vpop.trf.xlu0
        %v4324 = vpop.trf.xlu0
        %v4325 = vpop.trf.xlu0
        %v4326 = vpop.trf.xlu0
        %v4327 = vpop.trf.xlu0
        %v4328 = vpop.trf.xlu0
        %v4329 = vpop.trf.xlu0
        %v4330 = vpop.trf.xlu0
        %v4331 = vpop.trf.xlu0
        %v4332 = vpop.trf.xlu0
        %v4333 = vpop.trf.xlu0
        %v4334 = vpop.trf.xlu0
        %v4335 = vpop.trf.xlu0
        %v4336 = vpop.trf.xlu0
        %4337 = vxpose.xlu0.b32.start [1/16] %v3604, 128
        %4338 = vxpose.xlu0.b32.cont [2/16] %v3609, 128
        %4339 = vxpose.xlu0.b32.cont [3/16] 0.0, 128
        %4340 = vxpose.xlu0.b32.cont [4/16] 0.0, 128
        %4341 = vxpose.xlu0.b32.cont [5/16] 0.0, 128
        %4342 = vxpose.xlu0.b32.cont [6/16] 0.0, 128
        %4343 = vxpose.xlu0.b32.cont [7/16] 0.0, 128
        %4344 = vxpose.xlu0.b32.cont [8/16] 0.0, 128
        %4345 = vxpose.xlu0.b32.cont [9/16] 0.0, 128
        %4346 = vxpose.xlu0.b32.cont [10/16] 0.0, 128
        %4347 = vxpose.xlu0.b32.cont [11/16] 0.0, 128
        %4348 = vxpose.xlu0.b32.cont [12/16] 0.0, 128
        %4349 = vxpose.xlu0.b32.cont [13/16] 0.0, 128
        %4350 = vxpose.xlu0.b32.cont [14/16] 0.0, 128
        %4351 = vxpose.xlu0.b32.cont [15/16] 0.0, 128
        %4352 = vxpose.xlu0.b32.end [16/16] 0.0, 128
        %v4353 = vpop.trf.xlu0
        %v4354 = vpop.trf.xlu0
        %v4355 = vpop.trf.xlu0
        %v4356 = vpop.trf.xlu0
        %v4357 = vpop.trf.xlu0
        %v4358 = vpop.trf.xlu0
        %v4359 = vpop.trf.xlu0
        %v4360 = vpop.trf.xlu0
        %v4361 = vpop.trf.xlu0
        %v4362 = vpop.trf.xlu0
        %v4363 = vpop.trf.xlu0
        %v4364 = vpop.trf.xlu0
        %v4365 = vpop.trf.xlu0
        %v4366 = vpop.trf.xlu0
        %v4367 = vpop.trf.xlu0
        %v4368 = vpop.trf.xlu0
        %4369 = vxpose.xlu0.b32.start [1/16] %v3685, 128
        %4370 = vxpose.xlu0.b32.cont [2/16] %v3690, 128
        %4371 = vxpose.xlu0.b32.cont [3/16] 0.0, 128
        %4372 = vxpose.xlu0.b32.cont [4/16] 0.0, 128
        %4373 = vxpose.xlu0.b32.cont [5/16] 0.0, 128
        %4374 = vxpose.xlu0.b32.cont [6/16] 0.0, 128
        %4375 = vxpose.xlu0.b32.cont [7/16] 0.0, 128
        %4376 = vxpose.xlu0.b32.cont [8/16] 0.0, 128
        %4377 = vxpose.xlu0.b32.cont [9/16] 0.0, 128
        %4378 = vxpose.xlu0.b32.cont [10/16] 0.0, 128
        %4379 = vxpose.xlu0.b32.cont [11/16] 0.0, 128
        %4380 = vxpose.xlu0.b32.cont [12/16] 0.0, 128
        %4381 = vxpose.xlu0.b32.cont [13/16] 0.0, 128
        %4382 = vxpose.xlu0.b32.cont [14/16] 0.0, 128
        %4383 = vxpose.xlu0.b32.cont [15/16] 0.0, 128
        %4384 = vxpose.xlu0.b32.end [16/16] 0.0, 128
        %v4385 = vpop.trf.xlu0
        %v4386 = vpop.trf.xlu0
        %v4387 = vpop.trf.xlu0
        %v4388 = vpop.trf.xlu0
        %v4389 = vpop.trf.xlu0
        %v4390 = vpop.trf.xlu0
        %v4391 = vpop.trf.xlu0
        %v4392 = vpop.trf.xlu0
        %v4393 = vpop.trf.xlu0
        %v4394 = vpop.trf.xlu0
        %v4395 = vpop.trf.xlu0
        %v4396 = vpop.trf.xlu0
        %v4397 = vpop.trf.xlu0
        %v4398 = vpop.trf.xlu0
        %v4399 = vpop.trf.xlu0
        %v4400 = vpop.trf.xlu0
        %4401 = vxpose.xlu0.b32.start [1/16] %v3766, 128
        %4402 = vxpose.xlu0.b32.cont [2/16] %v3771, 128
        %4403 = vxpose.xlu0.b32.cont [3/16] 0.0, 128
        %4404 = vxpose.xlu0.b32.cont [4/16] 0.0, 128
        %4405 = vxpose.xlu0.b32.cont [5/16] 0.0, 128
        %4406 = vxpose.xlu0.b32.cont [6/16] 0.0, 128
        %4407 = vxpose.xlu0.b32.cont [7/16] 0.0, 128
        %4408 = vxpose.xlu0.b32.cont [8/16] 0.0, 128
        %4409 = vxpose.xlu0.b32.cont [9/16] 0.0, 128
        %4410 = vxpose.xlu0.b32.cont [10/16] 0.0, 128
        %4411 = vxpose.xlu0.b32.cont [11/16] 0.0, 128
        %4412 = vxpose.xlu0.b32.cont [12/16] 0.0, 128
        %4413 = vxpose.xlu0.b32.cont [13/16] 0.0, 128
        %4414 = vxpose.xlu0.b32.cont [14/16] 0.0, 128
        %4415 = vxpose.xlu0.b32.cont [15/16] 0.0, 128
        %4416 = vxpose.xlu0.b32.end [16/16] 0.0, 128
        %v4417 = vpop.trf.xlu0
        %v4418 = vpop.trf.xlu0
        %v4419 = vpop.trf.xlu0
        %v4420 = vpop.trf.xlu0
        %v4421 = vpop.trf.xlu0
        %v4422 = vpop.trf.xlu0
        %v4423 = vpop.trf.xlu0
        %v4424 = vpop.trf.xlu0
        %v4425 = vpop.trf.xlu0
        %v4426 = vpop.trf.xlu0
        %v4427 = vpop.trf.xlu0
        %v4428 = vpop.trf.xlu0
        %v4429 = vpop.trf.xlu0
        %v4430 = vpop.trf.xlu0
        %v4431 = vpop.trf.xlu0
        %v4432 = vpop.trf.xlu0
        %4433 = vxpose.xlu0.b32.start [1/16] %v3847, 128
        %4434 = vxpose.xlu0.b32.cont [2/16] %v3852, 128
        %4435 = vxpose.xlu0.b32.cont [3/16] 0.0, 128
        %4436 = vxpose.xlu0.b32.cont [4/16] 0.0, 128
        %4437 = vxpose.xlu0.b32.cont [5/16] 0.0, 128
        %4438 = vxpose.xlu0.b32.cont [6/16] 0.0, 128
        %4439 = vxpose.xlu0.b32.cont [7/16] 0.0, 128
        %4440 = vxpose.xlu0.b32.cont [8/16] 0.0, 128
        %4441 = vxpose.xlu0.b32.cont [9/16] 0.0, 128
        %4442 = vxpose.xlu0.b32.cont [10/16] 0.0, 128
        %4443 = vxpose.xlu0.b32.cont [11/16] 0.0, 128
        %4444 = vxpose.xlu0.b32.cont [12/16] 0.0, 128
        %4445 = vxpose.xlu0.b32.cont [13/16] 0.0, 128
        %4446 = vxpose.xlu0.b32.cont [14/16] 0.0, 128
        %4447 = vxpose.xlu0.b32.cont [15/16] 0.0, 128
        %4448 = vxpose.xlu0.b32.end [16/16] 0.0, 128
        %v4449 = vpop.trf.xlu0
        %v4450 = vpop.trf.xlu0
        %v4451 = vpop.trf.xlu0
        %v4452 = vpop.trf.xlu0
        %v4453 = vpop.trf.xlu0
        %v4454 = vpop.trf.xlu0
        %v4455 = vpop.trf.xlu0
        %v4456 = vpop.trf.xlu0
        %v4457 = vpop.trf.xlu0
        %v4458 = vpop.trf.xlu0
        %v4459 = vpop.trf.xlu0
        %v4460 = vpop.trf.xlu0
        %v4461 = vpop.trf.xlu0
        %v4462 = vpop.trf.xlu0
        %v4463 = vpop.trf.xlu0
        %v4464 = vpop.trf.xlu0
        %4465 = vxpose.xlu0.b32.start [1/16] %v3928, 128
        %4466 = vxpose.xlu0.b32.cont [2/16] %v3933, 128
        %4467 = vxpose.xlu0.b32.cont [3/16] 0.0, 128
        %4468 = vxpose.xlu0.b32.cont [4/16] 0.0, 128
        %4469 = vxpose.xlu0.b32.cont [5/16] 0.0, 128
        %4470 = vxpose.xlu0.b32.cont [6/16] 0.0, 128
        %4471 = vxpose.xlu0.b32.cont [7/16] 0.0, 128
        %4472 = vxpose.xlu0.b32.cont [8/16] 0.0, 128
        %4473 = vxpose.xlu0.b32.cont [9/16] 0.0, 128
        %4474 = vxpose.xlu0.b32.cont [10/16] 0.0, 128
        %4475 = vxpose.xlu0.b32.cont [11/16] 0.0, 128
        %4476 = vxpose.xlu0.b32.cont [12/16] 0.0, 128
        %4477 = vxpose.xlu0.b32.cont [13/16] 0.0, 128
        %4478 = vxpose.xlu0.b32.cont [14/16] 0.0, 128
        %4479 = vxpose.xlu0.b32.cont [15/16] 0.0, 128
        %4480 = vxpose.xlu0.b32.end [16/16] 0.0, 128
        %v4481 = vpop.trf.xlu0
        %v4482 = vpop.trf.xlu0
        %v4483 = vpop.trf.xlu0
        %v4484 = vpop.trf.xlu0
        %v4485 = vpop.trf.xlu0
        %v4486 = vpop.trf.xlu0
        %v4487 = vpop.trf.xlu0
        %v4488 = vpop.trf.xlu0
        %v4489 = vpop.trf.xlu0
        %v4490 = vpop.trf.xlu0
        %v4491 = vpop.trf.xlu0
        %v4492 = vpop.trf.xlu0
        %v4493 = vpop.trf.xlu0
        %v4494 = vpop.trf.xlu0
        %v4495 = vpop.trf.xlu0
        %v4496 = vpop.trf.xlu0
        %4497 = vxpose.xlu0.b32.start [1/16] %v4009, 128
        %4498 = vxpose.xlu0.b32.cont [2/16] %v4014, 128
        %4499 = vxpose.xlu0.b32.cont [3/16] 0.0, 128
        %4500 = vxpose.xlu0.b32.cont [4/16] 0.0, 128
        %4501 = vxpose.xlu0.b32.cont [5/16] 0.0, 128
        %4502 = vxpose.xlu0.b32.cont [6/16] 0.0, 128
        %4503 = vxpose.xlu0.b32.cont [7/16] 0.0, 128
        %4504 = vxpose.xlu0.b32.cont [8/16] 0.0, 128
        %4505 = vxpose.xlu0.b32.cont [9/16] 0.0, 128
        %4506 = vxpose.xlu0.b32.cont [10/16] 0.0, 128
        %4507 = vxpose.xlu0.b32.cont [11/16] 0.0, 128
        %4508 = vxpose.xlu0.b32.cont [12/16] 0.0, 128
        %4509 = vxpose.xlu0.b32.cont [13/16] 0.0, 128
        %4510 = vxpose.xlu0.b32.cont [14/16] 0.0, 128
        %4511 = vxpose.xlu0.b32.cont [15/16] 0.0, 128
        %4512 = vxpose.xlu0.b32.end [16/16] 0.0, 128
        %v4513 = vpop.trf.xlu0
        %v4514 = vpop.trf.xlu0
        %v4515 = vpop.trf.xlu0
        %v4516 = vpop.trf.xlu0
        %v4517 = vpop.trf.xlu0
        %v4518 = vpop.trf.xlu0
        %v4519 = vpop.trf.xlu0
        %v4520 = vpop.trf.xlu0
        %v4521 = vpop.trf.xlu0
        %v4522 = vpop.trf.xlu0
        %v4523 = vpop.trf.xlu0
        %v4524 = vpop.trf.xlu0
        %v4525 = vpop.trf.xlu0
        %v4526 = vpop.trf.xlu0
        %v4527 = vpop.trf.xlu0
        %v4528 = vpop.trf.xlu0
        %4529 = vxpose.xlu0.b32.start [1/16] %v4033, 128
        %4530 = vxpose.xlu0.b32.cont [2/16] %v4065, 128
        %4531 = vxpose.xlu0.b32.cont [3/16] %v4097, 128
        %4532 = vxpose.xlu0.b32.cont [4/16] %v4129, 128
        %4533 = vxpose.xlu0.b32.cont [5/16] %v4161, 128
        %4534 = vxpose.xlu0.b32.cont [6/16] %v4193, 128
        %4535 = vxpose.xlu0.b32.cont [7/16] %v4225, 128
        %4536 = vxpose.xlu0.b32.cont [8/16] %v4257, 128
        %4537 = vxpose.xlu0.b32.cont [9/16] %v4289, 128
        %4538 = vxpose.xlu0.b32.cont [10/16] %v4321, 128
        %4539 = vxpose.xlu0.b32.cont [11/16] %v4353, 128
        %4540 = vxpose.xlu0.b32.cont [12/16] %v4385, 128
        %4541 = vxpose.xlu0.b32.cont [13/16] %v4417, 128
        %4542 = vxpose.xlu0.b32.cont [14/16] %v4449, 128
        %4543 = vxpose.xlu0.b32.cont [15/16] %v4481, 128
        %4544 = vxpose.xlu0.b32.end [16/16] %v4513, 128
        %v4545 = vpop.trf.xlu0
        %v4546 = vpop.trf.xlu0
        %v4547 = vpop.trf.xlu0
        %v4548 = vpop.trf.xlu0
        %v4549 = vpop.trf.xlu0
        %v4550 = vpop.trf.xlu0
        %v4551 = vpop.trf.xlu0
        %v4552 = vpop.trf.xlu0
        %v4553 = vpop.trf.xlu0
        %v4554 = vpop.trf.xlu0
        %v4555 = vpop.trf.xlu0
        %v4556 = vpop.trf.xlu0
        %v4557 = vpop.trf.xlu0
        %v4558 = vpop.trf.xlu0
        %v4559 = vpop.trf.xlu0
        %v4560 = vpop.trf.xlu0
        %4561 = vxpose.xlu0.b32.start [1/16] %v2689, 128
        %4562 = vxpose.xlu0.b32.cont [2/16] %v2690, 128
        %4563 = vxpose.xlu0.b32.cont [3/16] %v2691, 128
        %4564 = vxpose.xlu0.b32.cont [4/16] %v2692, 128
        %4565 = vxpose.xlu0.b32.cont [5/16] %v2693, 128
        %4566 = vxpose.xlu0.b32.cont [6/16] %v2694, 128
        %4567 = vxpose.xlu0.b32.cont [7/16] %v2695, 128
        %4568 = vxpose.xlu0.b32.cont [8/16] %v2696, 128
        %4569 = vxpose.xlu0.b32.cont [9/16] %v2697, 128
        %4570 = vxpose.xlu0.b32.cont [10/16] %v2698, 128
        %4571 = vxpose.xlu0.b32.cont [11/16] %v2699, 128
        %4572 = vxpose.xlu0.b32.cont [12/16] %v2700, 128
        %4573 = vxpose.xlu0.b32.cont [13/16] %v2701, 128
        %4574 = vxpose.xlu0.b32.cont [14/16] %v2702, 128
        %4575 = vxpose.xlu0.b32.cont [15/16] %v2703, 128
        %4576 = vxpose.xlu0.b32.end [16/16] %v2704, 128
        %v4577 = vpop.trf.xlu0
        %v4578 = vpop.trf.xlu0
        %v4579 = vpop.trf.xlu0
        %v4580 = vpop.trf.xlu0
        %v4581 = vpop.trf.xlu0
        %v4582 = vpop.trf.xlu0
        %v4583 = vpop.trf.xlu0
        %v4584 = vpop.trf.xlu0
        %v4585 = vpop.trf.xlu0
        %v4586 = vpop.trf.xlu0
        %v4587 = vpop.trf.xlu0
        %v4588 = vpop.trf.xlu0
        %v4589 = vpop.trf.xlu0
        %v4590 = vpop.trf.xlu0
        %v4591 = vpop.trf.xlu0
        %v4592 = vpop.trf.xlu0
        %4593 = vxpose.xlu0.b32.start [1/16] %v2705, 128
        %4594 = vxpose.xlu0.b32.cont [2/16] %v2706, 128
        %4595 = vxpose.xlu0.b32.cont [3/16] %v2707, 128
        %4596 = vxpose.xlu0.b32.cont [4/16] %v2708, 128
        %4597 = vxpose.xlu0.b32.cont [5/16] %v2709, 128
        %4598 = vxpose.xlu0.b32.cont [6/16] %v2710, 128
        %4599 = vxpose.xlu0.b32.cont [7/16] %v2711, 128
        %4600 = vxpose.xlu0.b32.cont [8/16] %v2712, 128
        %4601 = vxpose.xlu0.b32.cont [9/16] %v2713, 128
        %4602 = vxpose.xlu0.b32.cont [10/16] %v2714, 128
        %4603 = vxpose.xlu0.b32.cont [11/16] %v2715, 128
        %4604 = vxpose.xlu0.b32.cont [12/16] %v2716, 128
        %4605 = vxpose.xlu0.b32.cont [13/16] %v2717, 128
        %4606 = vxpose.xlu0.b32.cont [14/16] %v2718, 128
        %4607 = vxpose.xlu0.b32.cont [15/16] %v2719, 128
        %4608 = vxpose.xlu0.b32.end [16/16] %v2720, 128
        %v4609 = vpop.trf.xlu0
        %v4610 = vpop.trf.xlu0
        %v4611 = vpop.trf.xlu0
        %v4612 = vpop.trf.xlu0
        %v4613 = vpop.trf.xlu0
        %v4614 = vpop.trf.xlu0
        %v4615 = vpop.trf.xlu0
        %v4616 = vpop.trf.xlu0
        %v4617 = vpop.trf.xlu0
        %v4618 = vpop.trf.xlu0
        %v4619 = vpop.trf.xlu0
        %v4620 = vpop.trf.xlu0
        %v4621 = vpop.trf.xlu0
        %v4622 = vpop.trf.xlu0
        %v4623 = vpop.trf.xlu0
        %v4624 = vpop.trf.xlu0
        %4625 = vst [vmem:[%s195] sm:$0xff] %v4545
        %4626 = vst [vmem:[%s195 + $0x8] sm:$0xff] %v4546
        %4627 = vst [vmem:[%s202] sm:$0xff] %v4577
        %4628 = vst [vmem:[%s202 + $0x8] sm:$0xff] %v4609
        %4629 = vst [vmem:[%s202 + $0x10] sm:$0xff] %v4578
        %4630 = vst [vmem:[%s202 + $0x18] sm:$0xff] %v4610
        %s4631 = sand.u32 %s98, 1
        %s4632 = scalar_lea.sflag [#allocation3], %s4631
        %s4633 = sand.u32 %s98, 1
        %s4634 = smul.addr %s4633, 16
        %s4635 = scalar_lea.vmem [#allocation2], %s4634
        %s4636 = sand.u32 %s124, 1
        %s4637 = scalar_lea.sflag [#allocation5], %s4636
        %s4638 = sand.u32 %s124, 1
        %s4639 = smul.addr %s4638, 32
        %s4640 = scalar_lea.vmem [#allocation4], %s4639
        // Predicated region
        $region33: #{tpu_custom_call.1} parent=31 // pred_check
          %p4641 = pneg %p108
        $region34: #{tpu_custom_call.1} parent=31 // pred_check_branch
          %4643 = sbr.rel (%p4641) target = $region36
        $region35: #{tpu_custom_call.1} parent=31 // pred_region
          %s4645 = ssub.s32 256, 256
          %4646 = vsyncadd %s4632, %s4645
          %s4647 = smul.addr %s22, 128
          %s4648 = scalar_lea.hbm %s3, %s4647
          %s4649 = sshll.u32 %s4635, 4
          %s4650 = int_to_ptr.vmem [resolvable:$true] %s4649
          %4655 = dma.vmem_to_hbm [thread:$0]  %s4650, 256, %s4648, %s4632, 128, 256, 8
        $region36: #{tpu_custom_call.1} parent=31 // pred_fallthru
          _
        // Predicated region
        $region37: #{tpu_custom_call.1} parent=31 // pred_check
          %p4656 = pneg %p134
        $region38: #{tpu_custom_call.1} parent=31 // pred_check_branch
          %4658 = sbr.rel (%p4656) target = $region40
        $region39: #{tpu_custom_call.1} parent=31 // pred_region
          %s4659 = smul.u32 2, %s22
          %s4661 = ssub.s32 512, 512
          %4662 = vsyncadd %s4637, %s4661
          %s4663 = smul.addr %s4659, 128
          %s4664 = scalar_lea.hbm %s4, %s4663
          %s4665 = sshll.u32 %s4640, 4
          %s4666 = int_to_ptr.vmem [resolvable:$true] %s4665
          %4671 = dma.vmem_to_hbm [thread:$0]  %s4666, 512, %s4664, %s4637, 256, 512, 16
        $region40: #{tpu_custom_call.1} parent=31 // pred_fallthru
          _
      $region32: #{tpu_custom_call.1} parent=5 // pred_fallthru
        _
      %p4672 = scmp.le.s32.totalorder 2, %s17
      // Predicated region
      $region41: #{tpu_custom_call.1} parent=5 // pred_check
        %p4673 = pneg %p4672
      $region42: #{tpu_custom_call.1} parent=5 // pred_check_branch
        %4675 = sbr.rel (%p4673) target = $region44
      $region43: #{tpu_custom_call.1} parent=5 // pred_region
        %s4676 = ssub.s32 %s17, 2
        // Predicated region
        $region45: #{tpu_custom_call.1} parent=43 // pred_check
          %p4677 = pneg %p114
        $region46: #{tpu_custom_call.1} parent=43 // pred_check_branch
          %4679 = sbr.rel (%p4677) target = $region48
        $region47: #{tpu_custom_call.1} parent=43 // pred_region
          %s4680 = sand.u32 %s99, 1
          %s4681 = scalar_lea.sflag [#allocation3], %s4680
          %s4682 = sand.u32 %s99, 1
          %s4683 = smul.addr %s4682, 16
          %s4684 = scalar_lea.vmem [#allocation2], %s4683
          %4685 = dma.done %s4681, 256
        $region48: #{tpu_custom_call.1} parent=43 // pred_fallthru
          _
        // Predicated region
        $region49: #{tpu_custom_call.1} parent=43 // pred_check
          %p4686 = pneg %p140
        $region50: #{tpu_custom_call.1} parent=43 // pred_check_branch
          %4688 = sbr.rel (%p4686) target = $region52
        $region51: #{tpu_custom_call.1} parent=43 // pred_region
          %s4689 = sand.u32 %s125, 1
          %s4690 = scalar_lea.sflag [#allocation5], %s4689
          %s4691 = sand.u32 %s125, 1
          %s4692 = smul.addr %s4691, 32
          %s4693 = scalar_lea.vmem [#allocation4], %s4692
          %4694 = dma.done %s4690, 512
        $region52: #{tpu_custom_call.1} parent=43 // pred_fallthru
          _
      $region44: #{tpu_custom_call.1} parent=5 // pred_fallthru
        _
    $region6: #{tpu_custom_call.1} parent=1 // loop_footer
      %s21 = sadd.s32 1, %s17
    $region7: #{tpu_custom_call.1} parent=1 // loop_footer_branch
      %16 = sbr.rel target = $region3
    $region8: #{tpu_custom_call.1} parent=1 // loop_exit
      _
    %4695 = vsyncpa [#allocation3], 1
    %s4696 = scalar_lea.sflag [#allocation3], 1
    %4697 = vsyncpa %s4696, 1
    %4698 = vsyncpa [#allocation5], 1
    %s4699 = scalar_lea.sflag [#allocation5], 1
    %4700 = vsyncpa %s4699, 1

</llo_original>
